<compile_context>
chip_gen: v7x
topology: tpu7x:2x2x1
jax: 0.10.0
libtpu: 0.0.40
codegen_flags: <defaults>
</compile_context>

<pallas_src>
import functools
import math

import numpy as np
import jax
import jax.numpy as jnp
from jax import lax
from jax.experimental import pallas as pl
from jax.experimental.pallas import tpu as pltpu


# Row layout of the packed per-layer parameter-vector array (padded to 16 rows
# so the block is sublane-aligned; collapses 9 tiny DMAs into one).
_ROW_QB, _ROW_KB, _ROW_VB = 0, 1, 2
_ROW_OUTB = 3
_ROW_LIN2B = 4
_ROW_N1G, _ROW_N1B = 5, 6
_ROW_N2G, _ROW_N2B = 7, 8
_NUM_VEC_ROWS = 16


def _layernorm(x, gamma, beta, eps):
    mean = jnp.mean(x, axis=-1, keepdims=True)
    xc = x - mean
    var = jnp.mean(xc * xc, axis=-1, keepdims=True)
    inv = lax.rsqrt(var + eps)
    return xc * inv * gamma + beta


def _activation(x, kind):
    if kind == "relu":
        return jnp.maximum(x, 0.0)
    if kind == "gelu":
        # torch F.gelu default (erf based)
        return 0.5 * x * (1.0 + lax.erf(x / math.sqrt(2.0)))
    raise ValueError(f"unsupported activation: {kind}")


# ---------------------------------------------------------------------------
# Fused Pallas kernel: the whole nn.TransformerEncoder stack for one batch
# block. Grid = (batch_blocks, num_layers); layer axis is innermost and
# "arbitrary" so the activation carry in VMEM scratch is valid.
# ---------------------------------------------------------------------------
def _fused_encoder_kernel(
    x_ref,      # (Bb, S, H)  f32  input activations (constant over layer axis)
    wqkv_ref,   # (H, 3H)     bf16 in_proj_weight^T (Q cols pre-scaled), layer l
    wout_ref,   # (H, H)      bf16 out_proj.weight^T, layer l
    w1_ref,     # (H, F)      bf16 linear1.weight^T, layer l
    w2_ref,     # (F, H)      bf16 linear2.weight^T, layer l
    vecs_ref,   # (16, H)     f32  packed biases + LN gammas/betas, layer l
    b1_ref,     # (1, F)      f32  linear1.bias, layer l
    out_ref,    # (Bb, S, H)  f32
    act_ref,    # scratch (Bb*S, H) f32 : layer-to-layer activation carry
    ctx_ref,    # scratch (Bb*S, H) f32 : per-head attention context assembly
    *,
    nhead,
    activation,
    eps,
    ff_chunk,
):
    Bb, S, H = x_ref.shape
    BS = Bb * S
    Dh = H // nhead
    F = w1_ref.shape[1]
    l = pl.program_id(1)

    # Load the input activations into the resident scratch on the first layer.
    @pl.when(l == 0)
    def _():
        act_ref[...] = x_ref[...].reshape(BS, H).astype(jnp.float32)

    x2d = act_ref[...]                                   # (BS, H) f32

    # ---- QKV projection (bf16 MXU matmul, f32 accumulation) ----------------
    # 1/sqrt(Dh) is pre-folded into the Q columns of wqkv and the Q bias.
    qkv = jnp.dot(x2d.astype(jnp.bfloat16), wqkv_ref[...],
                  preferred_element_type=jnp.float32)    # (BS, 3H)
    q = (qkv[:, 0:H] + vecs_ref[_ROW_QB:_ROW_QB + 1, :]
         ).reshape(Bb, S, H).astype(jnp.bfloat16)
    k = (qkv[:, H:2 * H] + vecs_ref[_ROW_KB:_ROW_KB + 1, :]
         ).reshape(Bb, S, H).astype(jnp.bfloat16)
    v = (qkv[:, 2 * H:3 * H] + vecs_ref[_ROW_VB:_ROW_VB + 1, :]
         ).reshape(Bb, S, H).astype(jnp.bfloat16)

    # ---- Multi-head attention ----------------------------------------------
    # Per-head contexts are written into lane slices of ctx_ref so the
    # out-projection is a single K=H matmul instead of nhead K=Dh matmuls.
    for h in range(nhead):
        lo, hi = h * Dh, (h + 1) * Dh
        s = jnp.einsum("bqd,bkd->bqk", q[:, :, lo:hi], k[:, :, lo:hi],
                       preferred_element_type=jnp.float32)       # (Bb,S,S)
        m = jnp.max(s, axis=-1, keepdims=True)
        p = jnp.exp(s - m)
        denom = jnp.sum(p, axis=-1, keepdims=True)
        ctx_h = jnp.einsum("bqk,bkd->bqd", p.astype(jnp.bfloat16),
                           v[:, :, lo:hi],
                           preferred_element_type=jnp.float32)   # (Bb,S,Dh)
        # Deferred softmax normalization on the smaller (Bb,S,Dh) tensor,
        # divide moved to the EUP via approximate reciprocal.
        ctx_h = ctx_h * pl.reciprocal(denom, approx=True)
        ctx_ref[:, lo:hi] = ctx_h.reshape(BS, Dh)

    attn_out = (jnp.dot(ctx_ref[...].astype(jnp.bfloat16), wout_ref[...],
                        preferred_element_type=jnp.float32)
                + vecs_ref[_ROW_OUTB:_ROW_OUTB + 1, :])

    # ---- Residual + LayerNorm 1 (post-norm, norm_first=False) --------------
    h1 = _layernorm(
        x2d + attn_out,
        vecs_ref[_ROW_N1G:_ROW_N1G + 1, :],
        vecs_ref[_ROW_N1B:_ROW_N1B + 1, :],
        eps,
    )

    # ---- Feed-forward block, chunked over F (dropout = identity in eval) ---
    h1_bf = h1.astype(jnp.bfloat16)
    ff_out = jnp.zeros((BS, H), jnp.float32)
    for fc in range(0, F, ff_chunk):
        ff_c = (jnp.dot(h1_bf, w1_ref[:, fc:fc + ff_chunk],
                        preferred_element_type=jnp.float32)
                + b1_ref[:, fc:fc + ff_chunk])
        ff_c = _activation(ff_c, activation)
        ff_out = ff_out + jnp.dot(ff_c.astype(jnp.bfloat16),
                                  w2_ref[fc:fc + ff_chunk, :],
                                  preferred_element_type=jnp.float32)
    ff_out = ff_out + vecs_ref[_ROW_LIN2B:_ROW_LIN2B + 1, :]

    # ---- Residual + LayerNorm 2 --------------------------------------------
    h2 = _layernorm(
        h1 + ff_out,
        vecs_ref[_ROW_N2G:_ROW_N2G + 1, :],
        vecs_ref[_ROW_N2B:_ROW_N2B + 1, :],
        eps,
    )
    act_ref[...] = h2

    # Emit the output only after the last layer.
    @pl.when(l == pl.num_programs(1) - 1)
    def _():
        out_ref[...] = act_ref[...].reshape(Bb, S, H).astype(out_ref.dtype)


def _pick_block_b(B, max_block=8):
    """Largest divisor of B that is <= max_block and leaves >= 2 grid steps."""
    if B <= 1:
        return 1
    target = min(max(B // 2, 1), max_block)
    for cand in range(target, 0, -1):
        if B % cand == 0:
            return cand
    return 1


def transformer_encoder_pallas(x, pp, *, nhead, activation, eps=1e-5,
                               block_b=None):
    """x: (B, S, H) f32. Runs the full stacked-layer encoder in one kernel."""
    B, S, H = x.shape
    L = pp["wqkv_T"].shape[0]
    F = pp["w1_T"].shape[2]
    if block_b is None:
        block_b = _pick_block_b(B)
    assert B % block_b == 0, "block_b must divide B"
    nb = B // block_b
    BS = block_b * S
    ff_chunk = 512 if (F % 512 == 0 and F > 512) else F

    # Advisory cost estimate for the whole call (all grid steps).
    flops_step = (2 * BS * H * 3 * H          # QKV
                  + 4 * block_b * S * S * H   # QK^T and PV over all heads
                  + 2 * BS * H * H            # out-projection
                  + 4 * BS * H * F)           # FFN
    trans_step = block_b * nhead * S * S + BS * nhead
    bytes_step = (2 * (3 * H * H + H * H + 2 * H * F)   # bf16 weights
                  + 4 * (_NUM_VEC_ROWS * H + F)         # f32 vecs + b1
                  + 8 * BS * H)                          # activations in/out
    cost = pl.CostEstimate(flops=flops_step * nb * L,
                           transcendentals=trans_step * nb * L,
                           bytes_accessed=bytes_step * nb * L)

    grid_spec = pltpu.PrefetchScalarGridSpec(
        num_scalar_prefetch=0,
        grid=(nb, L),                                      # layer axis innermost
        in_specs=[
            pl.BlockSpec((block_b, S, H), lambda b, l: (b, 0, 0)),   # x
            pl.BlockSpec((None, H, 3 * H), lambda b, l: (l, 0, 0)),  # Wqkv^T
            pl.BlockSpec((None, H, H), lambda b, l: (l, 0, 0)),      # Wout^T
            pl.BlockSpec((None, H, F), lambda b, l: (l, 0, 0)),      # W1^T
            pl.BlockSpec((None, F, H), lambda b, l: (l, 0, 0)),      # W2^T
            pl.BlockSpec((None, _NUM_VEC_ROWS, H), lambda b, l: (l, 0, 0)),
            pl.BlockSpec((None, 1, F), lambda b, l: (l, 0, 0)),      # b1
        ],
        out_specs=pl.BlockSpec((block_b, S, H), lambda b, l: (b, 0, 0)),
        scratch_shapes=[
            pltpu.VMEM((BS, H), jnp.float32),   # activation carry across layers
            pltpu.VMEM((BS, H), jnp.float32),   # per-head context assembly
        ],
    )

    return pl.pallas_call(
        functools.partial(_fused_encoder_kernel, nhead=nhead,
                          activation=activation, eps=eps, ff_chunk=ff_chunk),
        out_shape=jax.ShapeDtypeStruct((B, S, H), x.dtype),
        grid_spec=grid_spec,
        compiler_params=pltpu.CompilerParams(
            dimension_semantics=("parallel", "arbitrary"),
            vmem_limit_bytes=32 * 1024 * 1024,
        ),
        cost_estimate=cost,
    )(x, pp["wqkv_T"], pp["wout_T"], pp["w1_T"], pp["w2_T"],
      pp["vecs"], pp["b1"])


# ---------------------------------------------------------------------------
# MultimodalTransformerEncoder.forward
# ---------------------------------------------------------------------------
def multimodal_transformer_encoder_forward(
    obj_embedding,                       # (B, num_obj, H)
    ocr_embedding,                       # (B, num_ocr, H)
    semantic_representation_ocr_tokens,  # (B, num_ocr, H)
    visual_concept_embedding,            # (B, top_K, H)
    pallas_params,
    config,
):
    # Modality concat along the sequence axis (pure data-movement glue).
    x = jnp.concatenate(
        [obj_embedding, ocr_embedding,
         semantic_representation_ocr_tokens, visual_concept_embedding],
        axis=1,
    )
    # TODO(synk): nn.TransformerEncoder is built with norm=None, so there is
    # no final LayerNorm after the stacked layers.
    return transformer_encoder_pallas(
        x, pallas_params, nhead=config["nhead"],
        activation=config["activation"])


# ---------------------------------------------------------------------------
# Parameter init (torch layout) + host-side conversion to Pallas layout.
# ---------------------------------------------------------------------------
def init_torch_layer_params(key, H, F):
    ks = jax.random.split(key, 12)
    std = 0.05
    return {
        "in_proj_w": jax.random.normal(ks[0], (3 * H, H), jnp.float32) * std,
        "in_proj_b": jax.random.normal(ks[1], (3 * H,), jnp.float32) * std,
        "out_w": jax.random.normal(ks[2], (H, H), jnp.float32) * std,
        "out_b": jax.random.normal(ks[3], (H,), jnp.float32) * std,
        "w1": jax.random.normal(ks[4], (F, H), jnp.float32) * std,
        "b1": jax.random.normal(ks[5], (F,), jnp.float32) * std,
        "w2": jax.random.normal(ks[6], (H, F), jnp.float32) * std,
        "b2": jax.random.normal(ks[7], (H,), jnp.float32) * std,
        "ln1_g": 1.0 + 0.1 * jax.random.normal(ks[8], (H,), jnp.float32),
        "ln1_b": 0.05 * jax.random.normal(ks[9], (H,), jnp.float32),
        "ln2_g": 1.0 + 0.1 * jax.random.normal(ks[10], (H,), jnp.float32),
        "ln2_b": 0.05 * jax.random.normal(ks[11], (H,), jnp.float32),
    }


def prepare_pallas_params(torch_layers, nhead):
    """Stack per-layer weights (leading layer axis), pre-transpose, fold the
    attention scale into Q, pack bias/LN vectors, cast matmul weights bf16."""
    H = torch_layers[0]["out_w"].shape[0]
    F = torch_layers[0]["b1"].shape[0]
    Dh = H // nhead
    scale = 1.0 / math.sqrt(Dh)

    wqkv_T, wout_T, w1_T, w2_T, vecs, b1 = [], [], [], [], [], []
    for p in torch_layers:
        wq = jnp.transpose(p["in_proj_w"])          # (H, 3H); cols [0:H] = Q
        wq = wq.at[:, 0:H].multiply(scale)          # fold 1/sqrt(Dh) into Q
        wqkv_T.append(wq.astype(jnp.bfloat16))
        wout_T.append(jnp.transpose(p["out_w"]).astype(jnp.bfloat16))
        w1_T.append(jnp.transpose(p["w1"]).astype(jnp.bfloat16))
        w2_T.append(jnp.transpose(p["w2"]).astype(jnp.bfloat16))

        vv = jnp.zeros((_NUM_VEC_ROWS, H), jnp.float32)
        vv = vv.at[_ROW_QB].set(p["in_proj_b"][0:H] * scale)
        vv = vv.at[_ROW_KB].set(p["in_proj_b"][H:2 * H])
        vv = vv.at[_ROW_VB].set(p["in_proj_b"][2 * H:3 * H])
        vv = vv.at[_ROW_OUTB].set(p["out_b"])
        vv = vv.at[_ROW_LIN2B].set(p["b2"])
        vv = vv.at[_ROW_N1G].set(p["ln1_g"])
        vv = vv.at[_ROW_N1B].set(p["ln1_b"])
        vv = vv.at[_ROW_N2G].set(p["ln2_g"])
        vv = vv.at[_ROW_N2B].set(p["ln2_b"])
        vecs.append(vv)
        b1.append(p["b1"].reshape(1, F))

    return {
        "wqkv_T": jnp.stack(wqkv_T),   # (L, H, 3H) bf16
        "wout_T": jnp.stack(wout_T),   # (L, H, H)  bf16
        "w1_T": jnp.stack(w1_T),       # (L, H, F)  bf16
        "w2_T": jnp.stack(w2_T),       # (L, F, H)  bf16
        "vecs": jnp.stack(vecs),       # (L, 16, H) f32
        "b1": jnp.stack(b1),           # (L, 1, F)  f32
    }


# ---------------------------------------------------------------------------
# Pure-JAX f32 reference (torch semantics) for a correctness check.
# ---------------------------------------------------------------------------
def _encoder_layer_ref(x, p, *, nhead, activation, eps=1e-5):
    hp = lax.Precision.HIGHEST
    B, S, H = x.shape
    Dh = H // nhead
    scale = 1.0 / math.sqrt(Dh)
    x2d = x.reshape(B * S, H)

    qkv = jnp.dot(x2d, p["in_proj_w"].T, precision=hp) + p["in_proj_b"]
    q = qkv[:, :H].reshape(B, S, nhead, Dh)
    k = qkv[:, H:2 * H].reshape(B, S, nhead, Dh)
    v = qkv[:, 2 * H:].reshape(B, S, nhead, Dh)

    s = jnp.einsum("bqhd,bkhd->bhqk", q, k, precision=hp) * scale
    attn = jax.nn.softmax(s, axis=-1)
    ctx = jnp.einsum("bhqk,bkhd->bqhd", attn, v, precision=hp).reshape(B * S, H)
    attn_out = jnp.dot(ctx, p["out_w"].T, precision=hp) + p["out_b"]

    def ln(z, g, b):
        mu = z.mean(-1, keepdims=True)
        var = ((z - mu) ** 2).mean(-1, keepdims=True)
        return (z - mu) * lax.rsqrt(var + eps) * g + b

    h1 = ln(x2d + attn_out, p["ln1_g"], p["ln1_b"])
    ff = jnp.dot(h1, p["w1"].T, precision=hp) + p["b1"]
    ff = _activation(ff, activation)
    ff = jnp.dot(ff, p["w2"].T, precision=hp) + p["b2"]
    h2 = ln(h1 + ff, p["ln2_g"], p["ln2_b"])
    return h2.reshape(B, S, H)


if __name__ == "__main__":
    B = 2
    H = 128            # hidden_size (multiple of 128 -> lane-dense stores)
    NHEAD = 4
    NUM_LAYERS = 2
    DIM_FF = 2048      # nn.TransformerEncoderLayer default dim_feedforward
    NUM_OBJ = 8
    NUM_OCR = 8
    TOP_K = 8

    config = {
        "max_length": 16,
        "nhead": NHEAD,
        "activation": "relu",
        "num_layers": NUM_LAYERS,
    }

    key = jax.random.PRNGKey(0)
    k1, k2, k3, k4, kp = jax.random.split(key, 5)
    obj_embedding = jax.random.normal(k1, (B, NUM_OBJ, H), jnp.float32)
    ocr_embedding = jax.random.normal(k2, (B, NUM_OCR, H), jnp.float32)
    semantic_ocr = jax.random.normal(k3, (B, NUM_OCR, H), jnp.float32)
    visual_concept = jax.random.normal(k4, (B, TOP_K, H), jnp.float32)

    layer_keys = jax.random.split(kp, NUM_LAYERS)
    torch_layers = [init_torch_layer_params(k, H, DIM_FF) for k in layer_keys]
    pallas_params = prepare_pallas_params(torch_layers, NHEAD)

    out = multimodal_transformer_encoder_forward(
        obj_embedding, ocr_embedding, semantic_ocr, visual_concept,
        pallas_params, config,
    )
    out = jax.block_until_ready(out)

    S = NUM_OBJ + NUM_OCR + NUM_OCR + TOP_K
    assert out.shape == (B, S, H)
    assert bool(jnp.all(jnp.isfinite(out)))

    # Correctness check against the f32 torch-semantics reference.
    # Tolerance accounts for bf16 matmul operands (f32 accumulation kept).
    x_ref = jnp.concatenate(
        [obj_embedding, ocr_embedding, semantic_ocr, visual_concept], axis=1)
    for p in torch_layers:
        x_ref = _encoder_layer_ref(x_ref, p, nhead=NHEAD,
                                   activation=config["activation"])
    np.testing.assert_allclose(np.asarray(out), np.asarray(x_ref),
                               atol=5e-2, rtol=5e-2)

    print("KERNEL_OK")
</pallas_src>

<mosaic_0001>
module attributes {stable_mosaic.version = 11 : i64} {
  func.func @_fused_encoder_kernel(%arg0: i32, %arg1: i32, %arg2: memref<1x32x128xf32, #tpu.memory_space<vmem>>, %arg3: memref<1x128x384xbf16, #tpu.memory_space<vmem>>, %arg4: memref<1x128x128xbf16, #tpu.memory_space<vmem>>, %arg5: memref<1x128x2048xbf16, #tpu.memory_space<vmem>>, %arg6: memref<1x2048x128xbf16, #tpu.memory_space<vmem>>, %arg7: memref<1x16x128xf32, #tpu.memory_space<vmem>>, %arg8: memref<1x1x2048xf32, #tpu.memory_space<vmem>>, %arg9: memref<1x32x128xf32, #tpu.memory_space<vmem>>, %arg10: memref<32x128xf32, #tpu.memory_space<vmem>>, %arg11: memref<32x128xf32, #tpu.memory_space<vmem>>) attributes {dimension_semantics = [#tpu.dimension_semantics<parallel>, #tpu.dimension_semantics<arbitrary>], iteration_bounds = array<i64: 2, 2>, scalar_prefetch = 0 : i64, scratch_operands = 2 : i64, tpu.core_type = #tpu.core_type<tc>, window_params = [{transform_indices = @transform_0, window_bounds = array<i64: 1, 32, 128>}, {transform_indices = @transform_1, window_bounds = array<i64: 1, 128, 384>}, {transform_indices = @transform_2, window_bounds = array<i64: 1, 128, 128>}, {transform_indices = @transform_3, window_bounds = array<i64: 1, 128, 2048>}, {transform_indices = @transform_4, window_bounds = array<i64: 1, 2048, 128>}, {transform_indices = @transform_5, window_bounds = array<i64: 1, 16, 128>}, {transform_indices = @transform_6, window_bounds = array<i64: 1, 1, 2048>}, {transform_indices = @transform_7, window_bounds = array<i64: 1, 32, 128>}]} {
    %c0_i32 = arith.constant 0 : i32
    %0 = arith.cmpi eq, %arg1, %c0_i32 : i32
    %1 = arith.extui %0 : i1 to i32
    %c0_i32_0 = arith.constant 0 : i32
    %2 = arith.cmpi ne, %1, %c0_i32_0 : i32
    scf.if %2 {
      %c0_110 = arith.constant 0 : index
      %c0_111 = arith.constant 0 : index
      %c0_112 = arith.constant 0 : index
      %226 = vector.load %arg2[%c0_110, %c0_111, %c0_112] : memref<1x32x128xf32, #tpu.memory_space<vmem>>, vector<1x32x128xf32>
      %227 = vector.shape_cast %226 : vector<1x32x128xf32> to vector<32x128xf32>
      %c0_113 = arith.constant 0 : index
      %c0_114 = arith.constant 0 : index
      %228 = vector.load %arg10[%c0_113, %c0_114] : memref<32x128xf32, #tpu.memory_space<vmem>>, vector<32x128xf32>
      tpu.vector_store %arg10[%c0_113, %c0_114], %227 {strides = array<i32>} : memref<32x128xf32, #tpu.memory_space<vmem>>, vector<32x128xf32>,
    } else {
    }
    %c0 = arith.constant 0 : index
    %c0_1 = arith.constant 0 : index
    %3 = vector.load %arg10[%c0, %c0_1] : memref<32x128xf32, #tpu.memory_space<vmem>>, vector<32x128xf32>
    %4 = arith.truncf %3 : vector<32x128xf32> to vector<32x128xbf16>
    %c0_2 = arith.constant 0 : index
    %c0_3 = arith.constant 0 : index
    %c0_4 = arith.constant 0 : index
    %5 = vector.load %arg3[%c0_2, %c0_3, %c0_4] : memref<1x128x384xbf16, #tpu.memory_space<vmem>>, vector<1x128x384xbf16>
    %6 = vector.shape_cast %5 : vector<1x128x384xbf16> to vector<128x384xbf16>
    %cst = arith.constant dense<0.000000e+00> : vector<32x384xf32>
    %7 = tpu.matmul %4, %6, %cst {dimension_numbers = #tpu.dot_dimension_numbers<[1], [0], [0], [1], [0, 0, 1, 1], [], []>} : vector<32x128xbf16>, vector<128x384xbf16>, vector<32x384xf32> -> vector<32x384xf32>
    %8 = vector.extract_strided_slice %7 {offsets = [0, 0], sizes = [32, 128], strides = [1, 1]} : vector<32x384xf32> to vector<32x128xf32>
    %c0_5 = arith.constant 0 : index
    %c0_6 = arith.constant 0 : index
    %c0_7 = arith.constant 0 : index
    %9 = vector.load %arg7[%c0_5, %c0_6, %c0_7] : memref<1x16x128xf32, #tpu.memory_space<vmem>>, vector<1x1x128xf32>
    %10 = vector.shape_cast %9 : vector<1x1x128xf32> to vector<1x128xf32>
    %11 = vector.broadcast %10 : vector<1x128xf32> to vector<32x128xf32>
    %12 = arith.addf %8, %11 : vector<32x128xf32>
    %13 = vector.shape_cast %12 : vector<32x128xf32> to vector<1x32x128xf32>
    %14 = arith.truncf %13 : vector<1x32x128xf32> to vector<1x32x128xbf16>
    %15 = vector.extract_strided_slice %7 {offsets = [0, 128], sizes = [32, 128], strides = [1, 1]} : vector<32x384xf32> to vector<32x128xf32>
    %c0_8 = arith.constant 0 : index
    %c1 = arith.constant 1 : index
    %c0_9 = arith.constant 0 : index
    %16 = vector.load %arg7[%c0_8, %c1, %c0_9] : memref<1x16x128xf32, #tpu.memory_space<vmem>>, vector<1x1x128xf32>
    %17 = vector.shape_cast %16 : vector<1x1x128xf32> to vector<1x128xf32>
    %18 = vector.broadcast %17 : vector<1x128xf32> to vector<32x128xf32>
    %19 = arith.addf %15, %18 : vector<32x128xf32>
    %20 = vector.shape_cast %19 : vector<32x128xf32> to vector<1x32x128xf32>
    %21 = arith.truncf %20 : vector<1x32x128xf32> to vector<1x32x128xbf16>
    %22 = vector.extract_strided_slice %7 {offsets = [0, 256], sizes = [32, 128], strides = [1, 1]} : vector<32x384xf32> to vector<32x128xf32>
    %c0_10 = arith.constant 0 : index
    %c2 = arith.constant 2 : index
    %c0_11 = arith.constant 0 : index
    %23 = vector.load %arg7[%c0_10, %c2, %c0_11] : memref<1x16x128xf32, #tpu.memory_space<vmem>>, vector<1x1x128xf32>
    %24 = vector.shape_cast %23 : vector<1x1x128xf32> to vector<1x128xf32>
    %25 = vector.broadcast %24 : vector<1x128xf32> to vector<32x128xf32>
    %26 = arith.addf %22, %25 : vector<32x128xf32>
    %27 = vector.shape_cast %26 : vector<32x128xf32> to vector<1x32x128xf32>
    %28 = arith.truncf %27 : vector<1x32x128xf32> to vector<1x32x128xbf16>
    %29 = vector.extract_strided_slice %14 {offsets = [0, 0, 0], sizes = [1, 32, 32], strides = [1, 1, 1]} : vector<1x32x128xbf16> to vector<1x32x32xbf16>
    %30 = vector.extract_strided_slice %21 {offsets = [0, 0, 0], sizes = [1, 32, 32], strides = [1, 1, 1]} : vector<1x32x128xbf16> to vector<1x32x32xbf16>
    "tpu.trace_start"() <{level = 10 : i32, message = "bqd,bkd->bqk"}> : () -> ()
    %cst_12 = arith.constant dense<0.000000e+00> : vector<1x32x32xf32>
    %31 = tpu.matmul %29, %30, %cst_12 {dimension_numbers = #tpu.dot_dimension_numbers<[2], [2], [1], [1], [0, 0, 0, 1, 1, 1], [0], [0]>} : vector<1x32x32xbf16>, vector<1x32x32xbf16>, vector<1x32x32xf32> -> vector<1x32x32xf32>
    "tpu.trace_stop"() : () -> ()
    %cst_13 = arith.constant dense<0xFF800000> : vector<1x32xf32>
    %32 = vector.multi_reduction <maximumf>, %31, %cst_13 [2] : vector<1x32x32xf32> to vector<1x32xf32>
    %33 = vector.shape_cast %32 : vector<1x32xf32> to vector<1x32x1xf32>
    %34 = vector.broadcast %33 : vector<1x32x1xf32> to vector<1x32x32xf32>
    %35 = arith.subf %31, %34 : vector<1x32x32xf32>
    %36 = math.exp %35 : vector<1x32x32xf32>
    %cst_14 = arith.constant dense<0.000000e+00> : vector<1x32xf32>
    %37 = vector.multi_reduction <add>, %36, %cst_14 [2] : vector<1x32x32xf32> to vector<1x32xf32>
    %38 = vector.shape_cast %37 : vector<1x32xf32> to vector<1x32x1xf32>
    %39 = arith.truncf %36 : vector<1x32x32xf32> to vector<1x32x32xbf16>
    %40 = vector.extract_strided_slice %28 {offsets = [0, 0, 0], sizes = [1, 32, 32], strides = [1, 1, 1]} : vector<1x32x128xbf16> to vector<1x32x32xbf16>
    "tpu.trace_start"() <{level = 10 : i32, message = "bqk,bkd->bqd"}> : () -> ()
    %cst_15 = arith.constant dense<0.000000e+00> : vector<1x32x32xf32>
    %41 = tpu.matmul %39, %40, %cst_15 {dimension_numbers = #tpu.dot_dimension_numbers<[2], [1], [1], [2], [0, 0, 0, 1, 1, 2], [0], [0]>} : vector<1x32x32xbf16>, vector<1x32x32xbf16>, vector<1x32x32xf32> -> vector<1x32x32xf32>
    "tpu.trace_stop"() : () -> ()
    %42 = tpu.reciprocal %38 {approx = true} : vector<1x32x1xf32> -> vector<1x32x1xf32>
    %43 = vector.broadcast %42 : vector<1x32x1xf32> to vector<1x32x32xf32>
    %44 = arith.mulf %41, %43 : vector<1x32x32xf32>
    %45 = vector.shape_cast %44 : vector<1x32x32xf32> to vector<32x32xf32>
    %c0_16 = arith.constant 0 : index
    %c0_17 = arith.constant 0 : index
    %46 = vector.load %arg11[%c0_16, %c0_17] : memref<32x128xf32, #tpu.memory_space<vmem>>, vector<32x32xf32>
    tpu.vector_store %arg11[%c0_16, %c0_17], %45 {strides = array<i32>} : memref<32x128xf32, #tpu.memory_space<vmem>>, vector<32x32xf32>,
    %47 = vector.extract_strided_slice %14 {offsets = [0, 0, 32], sizes = [1, 32, 32], strides = [1, 1, 1]} : vector<1x32x128xbf16> to vector<1x32x32xbf16>
    %48 = vector.extract_strided_slice %21 {offsets = [0, 0, 32], sizes = [1, 32, 32], strides = [1, 1, 1]} : vector<1x32x128xbf16> to vector<1x32x32xbf16>
    "tpu.trace_start"() <{level = 10 : i32, message = "bqd,bkd->bqk"}> : () -> ()
    %cst_18 = arith.constant dense<0.000000e+00> : vector<1x32x32xf32>
    %49 = tpu.matmul %47, %48, %cst_18 {dimension_numbers = #tpu.dot_dimension_numbers<[2], [2], [1], [1], [0, 0, 0, 1, 1, 1], [0], [0]>} : vector<1x32x32xbf16>, vector<1x32x32xbf16>, vector<1x32x32xf32> -> vector<1x32x32xf32>
    "tpu.trace_stop"() : () -> ()
    %cst_19 = arith.constant dense<0xFF800000> : vector<1x32xf32>
    %50 = vector.multi_reduction <maximumf>, %49, %cst_19 [2] : vector<1x32x32xf32> to vector<1x32xf32>
    %51 = vector.shape_cast %50 : vector<1x32xf32> to vector<1x32x1xf32>
    %52 = vector.broadcast %51 : vector<1x32x1xf32> to vector<1x32x32xf32>
    %53 = arith.subf %49, %52 : vector<1x32x32xf32>
    %54 = math.exp %53 : vector<1x32x32xf32>
    %cst_20 = arith.constant dense<0.000000e+00> : vector<1x32xf32>
    %55 = vector.multi_reduction <add>, %54, %cst_20 [2] : vector<1x32x32xf32> to vector<1x32xf32>
    %56 = vector.shape_cast %55 : vector<1x32xf32> to vector<1x32x1xf32>
    %57 = arith.truncf %54 : vector<1x32x32xf32> to vector<1x32x32xbf16>
    %58 = vector.extract_strided_slice %28 {offsets = [0, 0, 32], sizes = [1, 32, 32], strides = [1, 1, 1]} : vector<1x32x128xbf16> to vector<1x32x32xbf16>
    "tpu.trace_start"() <{level = 10 : i32, message = "bqk,bkd->bqd"}> : () -> ()
    %cst_21 = arith.constant dense<0.000000e+00> : vector<1x32x32xf32>
    %59 = tpu.matmul %57, %58, %cst_21 {dimension_numbers = #tpu.dot_dimension_numbers<[2], [1], [1], [2], [0, 0, 0, 1, 1, 2], [0], [0]>} : vector<1x32x32xbf16>, vector<1x32x32xbf16>, vector<1x32x32xf32> -> vector<1x32x32xf32>
    "tpu.trace_stop"() : () -> ()
    %60 = tpu.reciprocal %56 {approx = true} : vector<1x32x1xf32> -> vector<1x32x1xf32>
    %61 = vector.broadcast %60 : vector<1x32x1xf32> to vector<1x32x32xf32>
    %62 = arith.mulf %59, %61 : vector<1x32x32xf32>
    %63 = vector.shape_cast %62 : vector<1x32x32xf32> to vector<32x32xf32>
    %c0_22 = arith.constant 0 : index
    %c32 = arith.constant 32 : index
    %64 = vector.load %arg11[%c0_22, %c32] : memref<32x128xf32, #tpu.memory_space<vmem>>, vector<32x32xf32>
    tpu.vector_store %arg11[%c0_22, %c32], %63 {strides = array<i32>} : memref<32x128xf32, #tpu.memory_space<vmem>>, vector<32x32xf32>,
    %65 = vector.extract_strided_slice %14 {offsets = [0, 0, 64], sizes = [1, 32, 32], strides = [1, 1, 1]} : vector<1x32x128xbf16> to vector<1x32x32xbf16>
    %66 = vector.extract_strided_slice %21 {offsets = [0, 0, 64], sizes = [1, 32, 32], strides = [1, 1, 1]} : vector<1x32x128xbf16> to vector<1x32x32xbf16>
    "tpu.trace_start"() <{level = 10 : i32, message = "bqd,bkd->bqk"}> : () -> ()
    %cst_23 = arith.constant dense<0.000000e+00> : vector<1x32x32xf32>
    %67 = tpu.matmul %65, %66, %cst_23 {dimension_numbers = #tpu.dot_dimension_numbers<[2], [2], [1], [1], [0, 0, 0, 1, 1, 1], [0], [0]>} : vector<1x32x32xbf16>, vector<1x32x32xbf16>, vector<1x32x32xf32> -> vector<1x32x32xf32>
    "tpu.trace_stop"() : () -> ()
    %cst_24 = arith.constant dense<0xFF800000> : vector<1x32xf32>
    %68 = vector.multi_reduction <maximumf>, %67, %cst_24 [2] : vector<1x32x32xf32> to vector<1x32xf32>
    %69 = vector.shape_cast %68 : vector<1x32xf32> to vector<1x32x1xf32>
    %70 = vector.broadcast %69 : vector<1x32x1xf32> to vector<1x32x32xf32>
    %71 = arith.subf %67, %70 : vector<1x32x32xf32>
    %72 = math.exp %71 : vector<1x32x32xf32>
    %cst_25 = arith.constant dense<0.000000e+00> : vector<1x32xf32>
    %73 = vector.multi_reduction <add>, %72, %cst_25 [2] : vector<1x32x32xf32> to vector<1x32xf32>
    %74 = vector.shape_cast %73 : vector<1x32xf32> to vector<1x32x1xf32>
    %75 = arith.truncf %72 : vector<1x32x32xf32> to vector<1x32x32xbf16>
    %76 = vector.extract_strided_slice %28 {offsets = [0, 0, 64], sizes = [1, 32, 32], strides = [1, 1, 1]} : vector<1x32x128xbf16> to vector<1x32x32xbf16>
    "tpu.trace_start"() <{level = 10 : i32, message = "bqk,bkd->bqd"}> : () -> ()
    %cst_26 = arith.constant dense<0.000000e+00> : vector<1x32x32xf32>
    %77 = tpu.matmul %75, %76, %cst_26 {dimension_numbers = #tpu.dot_dimension_numbers<[2], [1], [1], [2], [0, 0, 0, 1, 1, 2], [0], [0]>} : vector<1x32x32xbf16>, vector<1x32x32xbf16>, vector<1x32x32xf32> -> vector<1x32x32xf32>
    "tpu.trace_stop"() : () -> ()
    %78 = tpu.reciprocal %74 {approx = true} : vector<1x32x1xf32> -> vector<1x32x1xf32>
    %79 = vector.broadcast %78 : vector<1x32x1xf32> to vector<1x32x32xf32>
    %80 = arith.mulf %77, %79 : vector<1x32x32xf32>
    %81 = vector.shape_cast %80 : vector<1x32x32xf32> to vector<32x32xf32>
    %c0_27 = arith.constant 0 : index
    %c64 = arith.constant 64 : index
    %82 = vector.load %arg11[%c0_27, %c64] : memref<32x128xf32, #tpu.memory_space<vmem>>, vector<32x32xf32>
    tpu.vector_store %arg11[%c0_27, %c64], %81 {strides = array<i32>} : memref<32x128xf32, #tpu.memory_space<vmem>>, vector<32x32xf32>,
    %83 = vector.extract_strided_slice %14 {offsets = [0, 0, 96], sizes = [1, 32, 32], strides = [1, 1, 1]} : vector<1x32x128xbf16> to vector<1x32x32xbf16>
    %84 = vector.extract_strided_slice %21 {offsets = [0, 0, 96], sizes = [1, 32, 32], strides = [1, 1, 1]} : vector<1x32x128xbf16> to vector<1x32x32xbf16>
    "tpu.trace_start"() <{level = 10 : i32, message = "bqd,bkd->bqk"}> : () -> ()
    %cst_28 = arith.constant dense<0.000000e+00> : vector<1x32x32xf32>
    %85 = tpu.matmul %83, %84, %cst_28 {dimension_numbers = #tpu.dot_dimension_numbers<[2], [2], [1], [1], [0, 0, 0, 1, 1, 1], [0], [0]>} : vector<1x32x32xbf16>, vector<1x32x32xbf16>, vector<1x32x32xf32> -> vector<1x32x32xf32>
    "tpu.trace_stop"() : () -> ()
    %cst_29 = arith.constant dense<0xFF800000> : vector<1x32xf32>
    %86 = vector.multi_reduction <maximumf>, %85, %cst_29 [2] : vector<1x32x32xf32> to vector<1x32xf32>
    %87 = vector.shape_cast %86 : vector<1x32xf32> to vector<1x32x1xf32>
    %88 = vector.broadcast %87 : vector<1x32x1xf32> to vector<1x32x32xf32>
    %89 = arith.subf %85, %88 : vector<1x32x32xf32>
    %90 = math.exp %89 : vector<1x32x32xf32>
    %cst_30 = arith.constant dense<0.000000e+00> : vector<1x32xf32>
    %91 = vector.multi_reduction <add>, %90, %cst_30 [2] : vector<1x32x32xf32> to vector<1x32xf32>
    %92 = vector.shape_cast %91 : vector<1x32xf32> to vector<1x32x1xf32>
    %93 = arith.truncf %90 : vector<1x32x32xf32> to vector<1x32x32xbf16>
    %94 = vector.extract_strided_slice %28 {offsets = [0, 0, 96], sizes = [1, 32, 32], strides = [1, 1, 1]} : vector<1x32x128xbf16> to vector<1x32x32xbf16>
    "tpu.trace_start"() <{level = 10 : i32, message = "bqk,bkd->bqd"}> : () -> ()
    %cst_31 = arith.constant dense<0.000000e+00> : vector<1x32x32xf32>
    %95 = tpu.matmul %93, %94, %cst_31 {dimension_numbers = #tpu.dot_dimension_numbers<[2], [1], [1], [2], [0, 0, 0, 1, 1, 2], [0], [0]>} : vector<1x32x32xbf16>, vector<1x32x32xbf16>, vector<1x32x32xf32> -> vector<1x32x32xf32>
    "tpu.trace_stop"() : () -> ()
    %96 = tpu.reciprocal %92 {approx = true} : vector<1x32x1xf32> -> vector<1x32x1xf32>
    %97 = vector.broadcast %96 : vector<1x32x1xf32> to vector<1x32x32xf32>
    %98 = arith.mulf %95, %97 : vector<1x32x32xf32>
    %99 = vector.shape_cast %98 : vector<1x32x32xf32> to vector<32x32xf32>
    %c0_32 = arith.constant 0 : index
    %c96 = arith.constant 96 : index
    %100 = vector.load %arg11[%c0_32, %c96] : memref<32x128xf32, #tpu.memory_space<vmem>>, vector<32x32xf32>
    tpu.vector_store %arg11[%c0_32, %c96], %99 {strides = array<i32>} : memref<32x128xf32, #tpu.memory_space<vmem>>, vector<32x32xf32>,
    %c0_33 = arith.constant 0 : index
    %c0_34 = arith.constant 0 : index
    %101 = vector.load %arg11[%c0_33, %c0_34] : memref<32x128xf32, #tpu.memory_space<vmem>>, vector<32x128xf32>
    %102 = arith.truncf %101 : vector<32x128xf32> to vector<32x128xbf16>
    %c0_35 = arith.constant 0 : index
    %c0_36 = arith.constant 0 : index
    %c0_37 = arith.constant 0 : index
    %103 = vector.load %arg4[%c0_35, %c0_36, %c0_37] : memref<1x128x128xbf16, #tpu.memory_space<vmem>>, vector<1x128x128xbf16>
    %104 = vector.shape_cast %103 : vector<1x128x128xbf16> to vector<128x128xbf16>
    %cst_38 = arith.constant dense<0.000000e+00> : vector<32x128xf32>
    %105 = tpu.matmul %102, %104, %cst_38 {dimension_numbers = #tpu.dot_dimension_numbers<[1], [0], [0], [1], [0, 0, 1, 1], [], []>} : vector<32x128xbf16>, vector<128x128xbf16>, vector<32x128xf32> -> vector<32x128xf32>
    %c0_39 = arith.constant 0 : index
    %c3 = arith.constant 3 : index
    %c0_40 = arith.constant 0 : index
    %106 = vector.load %arg7[%c0_39, %c3, %c0_40] : memref<1x16x128xf32, #tpu.memory_space<vmem>>, vector<1x1x128xf32>
    %107 = vector.shape_cast %106 : vector<1x1x128xf32> to vector<1x128xf32>
    %108 = vector.broadcast %107 : vector<1x128xf32> to vector<32x128xf32>
    %109 = arith.addf %105, %108 : vector<32x128xf32>
    %110 = arith.addf %3, %109 : vector<32x128xf32>
    %c0_41 = arith.constant 0 : index
    %c5 = arith.constant 5 : index
    %c0_42 = arith.constant 0 : index
    %111 = vector.load %arg7[%c0_41, %c5, %c0_42] : memref<1x16x128xf32, #tpu.memory_space<vmem>>, vector<1x1x128xf32>
    %112 = vector.shape_cast %111 : vector<1x1x128xf32> to vector<1x128xf32>
    %c0_43 = arith.constant 0 : index
    %c6 = arith.constant 6 : index
    %c0_44 = arith.constant 0 : index
    %113 = vector.load %arg7[%c0_43, %c6, %c0_44] : memref<1x16x128xf32, #tpu.memory_space<vmem>>, vector<1x1x128xf32>
    %114 = vector.shape_cast %113 : vector<1x1x128xf32> to vector<1x128xf32>
    %cst_45 = arith.constant dense<0.000000e+00> : vector<32xf32>
    %115 = vector.multi_reduction <add>, %110, %cst_45 [1] : vector<32x128xf32> to vector<32xf32>
    %116 = vector.shape_cast %115 : vector<32xf32> to vector<32x1xf32>
    %cst_46 = arith.constant 1.280000e+02 : f32
    %117 = vector.broadcast %cst_46 : f32 to vector<32x1xf32>
    %118 = arith.divf %116, %117 : vector<32x1xf32>
    %119 = vector.broadcast %118 : vector<32x1xf32> to vector<32x128xf32>
    %120 = arith.subf %110, %119 : vector<32x128xf32>
    %121 = arith.mulf %120, %120 : vector<32x128xf32>
    %cst_47 = arith.constant dense<0.000000e+00> : vector<32xf32>
    %122 = vector.multi_reduction <add>, %121, %cst_47 [1] : vector<32x128xf32> to vector<32xf32>
    %123 = vector.shape_cast %122 : vector<32xf32> to vector<32x1xf32>
    %cst_48 = arith.constant 1.280000e+02 : f32
    %124 = vector.broadcast %cst_48 : f32 to vector<32x1xf32>
    %125 = arith.divf %123, %124 : vector<32x1xf32>
    %cst_49 = arith.constant 9.99999974E-6 : f32
    %126 = vector.broadcast %cst_49 : f32 to vector<32x1xf32>
    %127 = arith.addf %125, %126 : vector<32x1xf32>
    %128 = math.rsqrt %127 : vector<32x1xf32>
    %129 = vector.broadcast %128 : vector<32x1xf32> to vector<32x128xf32>
    %130 = arith.mulf %120, %129 : vector<32x128xf32>
    %131 = vector.broadcast %112 : vector<1x128xf32> to vector<32x128xf32>
    %132 = arith.mulf %130, %131 : vector<32x128xf32>
    %133 = vector.broadcast %114 : vector<1x128xf32> to vector<32x128xf32>
    %134 = arith.addf %132, %133 : vector<32x128xf32>
    %135 = arith.truncf %134 : vector<32x128xf32> to vector<32x128xbf16>
    %cst_50 = arith.constant 0.000000e+00 : f32
    %136 = vector.broadcast %cst_50 : f32 to vector<32x128xf32>
    %c0_51 = arith.constant 0 : index
    %c0_52 = arith.constant 0 : index
    %c0_53 = arith.constant 0 : index
    %137 = vector.load %arg5[%c0_51, %c0_52, %c0_53] : memref<1x128x2048xbf16, #tpu.memory_space<vmem>>, vector<1x128x512xbf16>
    %138 = vector.shape_cast %137 : vector<1x128x512xbf16> to vector<128x512xbf16>
    %cst_54 = arith.constant dense<0.000000e+00> : vector<32x512xf32>
    %139 = tpu.matmul %135, %138, %cst_54 {dimension_numbers = #tpu.dot_dimension_numbers<[1], [0], [0], [1], [0, 0, 1, 1], [], []>} : vector<32x128xbf16>, vector<128x512xbf16>, vector<32x512xf32> -> vector<32x512xf32>
    %c0_55 = arith.constant 0 : index
    %c0_56 = arith.constant 0 : index
    %c0_57 = arith.constant 0 : index
    %140 = vector.load %arg8[%c0_55, %c0_56, %c0_57] : memref<1x1x2048xf32, #tpu.memory_space<vmem>>, vector<1x1x512xf32>
    %141 = vector.shape_cast %140 : vector<1x1x512xf32> to vector<1x512xf32>
    %142 = vector.broadcast %141 : vector<1x512xf32> to vector<32x512xf32>
    %143 = arith.addf %139, %142 : vector<32x512xf32>
    %cst_58 = arith.constant 0.000000e+00 : f32
    %144 = vector.broadcast %cst_58 : f32 to vector<32x512xf32>
    %145 = arith.maximumf %143, %144 : vector<32x512xf32>
    %146 = arith.truncf %145 : vector<32x512xf32> to vector<32x512xbf16>
    %c0_59 = arith.constant 0 : index
    %c0_60 = arith.constant 0 : index
    %c0_61 = arith.constant 0 : index
    %147 = vector.load %arg6[%c0_59, %c0_60, %c0_61] : memref<1x2048x128xbf16, #tpu.memory_space<vmem>>, vector<1x512x128xbf16>
    %148 = vector.shape_cast %147 : vector<1x512x128xbf16> to vector<512x128xbf16>
    %cst_62 = arith.constant dense<0.000000e+00> : vector<32x128xf32>
    %149 = tpu.matmul %146, %148, %cst_62 {dimension_numbers = #tpu.dot_dimension_numbers<[1], [0], [0], [1], [0, 0, 1, 1], [], []>} : vector<32x512xbf16>, vector<512x128xbf16>, vector<32x128xf32> -> vector<32x128xf32>
    %150 = arith.addf %136, %149 : vector<32x128xf32>
    %c0_63 = arith.constant 0 : index
    %c0_64 = arith.constant 0 : index
    %c512 = arith.constant 512 : index
    %151 = vector.load %arg5[%c0_63, %c0_64, %c512] : memref<1x128x2048xbf16, #tpu.memory_space<vmem>>, vector<1x128x512xbf16>
    %152 = vector.shape_cast %151 : vector<1x128x512xbf16> to vector<128x512xbf16>
    %cst_65 = arith.constant dense<0.000000e+00> : vector<32x512xf32>
    %153 = tpu.matmul %135, %152, %cst_65 {dimension_numbers = #tpu.dot_dimension_numbers<[1], [0], [0], [1], [0, 0, 1, 1], [], []>} : vector<32x128xbf16>, vector<128x512xbf16>, vector<32x512xf32> -> vector<32x512xf32>
    %c0_66 = arith.constant 0 : index
    %c0_67 = arith.constant 0 : index
    %c512_68 = arith.constant 512 : index
    %154 = vector.load %arg8[%c0_66, %c0_67, %c512_68] : memref<1x1x2048xf32, #tpu.memory_space<vmem>>, vector<1x1x512xf32>
    %155 = vector.shape_cast %154 : vector<1x1x512xf32> to vector<1x512xf32>
    %156 = vector.broadcast %155 : vector<1x512xf32> to vector<32x512xf32>
    %157 = arith.addf %153, %156 : vector<32x512xf32>
    %cst_69 = arith.constant 0.000000e+00 : f32
    %158 = vector.broadcast %cst_69 : f32 to vector<32x512xf32>
    %159 = arith.maximumf %157, %158 : vector<32x512xf32>
    %160 = arith.truncf %159 : vector<32x512xf32> to vector<32x512xbf16>
    %c0_70 = arith.constant 0 : index
    %c512_71 = arith.constant 512 : index
    %c0_72 = arith.constant 0 : index
    %161 = vector.load %arg6[%c0_70, %c512_71, %c0_72] : memref<1x2048x128xbf16, #tpu.memory_space<vmem>>, vector<1x512x128xbf16>
    %162 = vector.shape_cast %161 : vector<1x512x128xbf16> to vector<512x128xbf16>
    %cst_73 = arith.constant dense<0.000000e+00> : vector<32x128xf32>
    %163 = tpu.matmul %160, %162, %cst_73 {dimension_numbers = #tpu.dot_dimension_numbers<[1], [0], [0], [1], [0, 0, 1, 1], [], []>} : vector<32x512xbf16>, vector<512x128xbf16>, vector<32x128xf32> -> vector<32x128xf32>
    %164 = arith.addf %150, %163 : vector<32x128xf32>
    %c0_74 = arith.constant 0 : index
    %c0_75 = arith.constant 0 : index
    %c1024 = arith.constant 1024 : index
    %165 = vector.load %arg5[%c0_74, %c0_75, %c1024] : memref<1x128x2048xbf16, #tpu.memory_space<vmem>>, vector<1x128x512xbf16>
    %166 = vector.shape_cast %165 : vector<1x128x512xbf16> to vector<128x512xbf16>
    %cst_76 = arith.constant dense<0.000000e+00> : vector<32x512xf32>
    %167 = tpu.matmul %135, %166, %cst_76 {dimension_numbers = #tpu.dot_dimension_numbers<[1], [0], [0], [1], [0, 0, 1, 1], [], []>} : vector<32x128xbf16>, vector<128x512xbf16>, vector<32x512xf32> -> vector<32x512xf32>
    %c0_77 = arith.constant 0 : index
    %c0_78 = arith.constant 0 : index
    %c1024_79 = arith.constant 1024 : index
    %168 = vector.load %arg8[%c0_77, %c0_78, %c1024_79] : memref<1x1x2048xf32, #tpu.memory_space<vmem>>, vector<1x1x512xf32>
    %169 = vector.shape_cast %168 : vector<1x1x512xf32> to vector<1x512xf32>
    %170 = vector.broadcast %169 : vector<1x512xf32> to vector<32x512xf32>
    %171 = arith.addf %167, %170 : vector<32x512xf32>
    %cst_80 = arith.constant 0.000000e+00 : f32
    %172 = vector.broadcast %cst_80 : f32 to vector<32x512xf32>
    %173 = arith.maximumf %171, %172 : vector<32x512xf32>
    %174 = arith.truncf %173 : vector<32x512xf32> to vector<32x512xbf16>
    %c0_81 = arith.constant 0 : index
    %c1024_82 = arith.constant 1024 : index
    %c0_83 = arith.constant 0 : index
    %175 = vector.load %arg6[%c0_81, %c1024_82, %c0_83] : memref<1x2048x128xbf16, #tpu.memory_space<vmem>>, vector<1x512x128xbf16>
    %176 = vector.shape_cast %175 : vector<1x512x128xbf16> to vector<512x128xbf16>
    %cst_84 = arith.constant dense<0.000000e+00> : vector<32x128xf32>
    %177 = tpu.matmul %174, %176, %cst_84 {dimension_numbers = #tpu.dot_dimension_numbers<[1], [0], [0], [1], [0, 0, 1, 1], [], []>} : vector<32x512xbf16>, vector<512x128xbf16>, vector<32x128xf32> -> vector<32x128xf32>
    %178 = arith.addf %164, %177 : vector<32x128xf32>
    %c0_85 = arith.constant 0 : index
    %c0_86 = arith.constant 0 : index
    %c1536 = arith.constant 1536 : index
    %179 = vector.load %arg5[%c0_85, %c0_86, %c1536] : memref<1x128x2048xbf16, #tpu.memory_space<vmem>>, vector<1x128x512xbf16>
    %180 = vector.shape_cast %179 : vector<1x128x512xbf16> to vector<128x512xbf16>
    %cst_87 = arith.constant dense<0.000000e+00> : vector<32x512xf32>
    %181 = tpu.matmul %135, %180, %cst_87 {dimension_numbers = #tpu.dot_dimension_numbers<[1], [0], [0], [1], [0, 0, 1, 1], [], []>} : vector<32x128xbf16>, vector<128x512xbf16>, vector<32x512xf32> -> vector<32x512xf32>
    %c0_88 = arith.constant 0 : index
    %c0_89 = arith.constant 0 : index
    %c1536_90 = arith.constant 1536 : index
    %182 = vector.load %arg8[%c0_88, %c0_89, %c1536_90] : memref<1x1x2048xf32, #tpu.memory_space<vmem>>, vector<1x1x512xf32>
    %183 = vector.shape_cast %182 : vector<1x1x512xf32> to vector<1x512xf32>
    %184 = vector.broadcast %183 : vector<1x512xf32> to vector<32x512xf32>
    %185 = arith.addf %181, %184 : vector<32x512xf32>
    %cst_91 = arith.constant 0.000000e+00 : f32
    %186 = vector.broadcast %cst_91 : f32 to vector<32x512xf32>
    %187 = arith.maximumf %185, %186 : vector<32x512xf32>
    %188 = arith.truncf %187 : vector<32x512xf32> to vector<32x512xbf16>
    %c0_92 = arith.constant 0 : index
    %c1536_93 = arith.constant 1536 : index
    %c0_94 = arith.constant 0 : index
    %189 = vector.load %arg6[%c0_92, %c1536_93, %c0_94] : memref<1x2048x128xbf16, #tpu.memory_space<vmem>>, vector<1x512x128xbf16>
    %190 = vector.shape_cast %189 : vector<1x512x128xbf16> to vector<512x128xbf16>
    %cst_95 = arith.constant dense<0.000000e+00> : vector<32x128xf32>
    %191 = tpu.matmul %188, %190, %cst_95 {dimension_numbers = #tpu.dot_dimension_numbers<[1], [0], [0], [1], [0, 0, 1, 1], [], []>} : vector<32x512xbf16>, vector<512x128xbf16>, vector<32x128xf32> -> vector<32x128xf32>
    %192 = arith.addf %178, %191 : vector<32x128xf32>
    %c0_96 = arith.constant 0 : index
    %c4 = arith.constant 4 : index
    %c0_97 = arith.constant 0 : index
    %193 = vector.load %arg7[%c0_96, %c4, %c0_97] : memref<1x16x128xf32, #tpu.memory_space<vmem>>, vector<1x1x128xf32>
    %194 = vector.shape_cast %193 : vector<1x1x128xf32> to vector<1x128xf32>
    %195 = vector.broadcast %194 : vector<1x128xf32> to vector<32x128xf32>
    %196 = arith.addf %192, %195 : vector<32x128xf32>
    %197 = arith.addf %134, %196 : vector<32x128xf32>
    %c0_98 = arith.constant 0 : index
    %c7 = arith.constant 7 : index
    %c0_99 = arith.constant 0 : index
    %198 = vector.load %arg7[%c0_98, %c7, %c0_99] : memref<1x16x128xf32, #tpu.memory_space<vmem>>, vector<1x1x128xf32>
    %199 = vector.shape_cast %198 : vector<1x1x128xf32> to vector<1x128xf32>
    %c0_100 = arith.constant 0 : index
    %c8 = arith.constant 8 : index
    %c0_101 = arith.constant 0 : index
    %200 = vector.load %arg7[%c0_100, %c8, %c0_101] : memref<1x16x128xf32, #tpu.memory_space<vmem>>, vector<1x1x128xf32>
    %201 = vector.shape_cast %200 : vector<1x1x128xf32> to vector<1x128xf32>
    %cst_102 = arith.constant dense<0.000000e+00> : vector<32xf32>
    %202 = vector.multi_reduction <add>, %197, %cst_102 [1] : vector<32x128xf32> to vector<32xf32>
    %203 = vector.shape_cast %202 : vector<32xf32> to vector<32x1xf32>
    %cst_103 = arith.constant 1.280000e+02 : f32
    %204 = vector.broadcast %cst_103 : f32 to vector<32x1xf32>
    %205 = arith.divf %203, %204 : vector<32x1xf32>
    %206 = vector.broadcast %205 : vector<32x1xf32> to vector<32x128xf32>
    %207 = arith.subf %197, %206 : vector<32x128xf32>
    %208 = arith.mulf %207, %207 : vector<32x128xf32>
    %cst_104 = arith.constant dense<0.000000e+00> : vector<32xf32>
    %209 = vector.multi_reduction <add>, %208, %cst_104 [1] : vector<32x128xf32> to vector<32xf32>
    %210 = vector.shape_cast %209 : vector<32xf32> to vector<32x1xf32>
    %cst_105 = arith.constant 1.280000e+02 : f32
    %211 = vector.broadcast %cst_105 : f32 to vector<32x1xf32>
    %212 = arith.divf %210, %211 : vector<32x1xf32>
    %cst_106 = arith.constant 9.99999974E-6 : f32
    %213 = vector.broadcast %cst_106 : f32 to vector<32x1xf32>
    %214 = arith.addf %212, %213 : vector<32x1xf32>
    %215 = math.rsqrt %214 : vector<32x1xf32>
    %216 = vector.broadcast %215 : vector<32x1xf32> to vector<32x128xf32>
    %217 = arith.mulf %207, %216 : vector<32x128xf32>
    %218 = vector.broadcast %199 : vector<1x128xf32> to vector<32x128xf32>
    %219 = arith.mulf %217, %218 : vector<32x128xf32>
    %220 = vector.broadcast %201 : vector<1x128xf32> to vector<32x128xf32>
    %221 = arith.addf %219, %220 : vector<32x128xf32>
    %c0_107 = arith.constant 0 : index
    %c0_108 = arith.constant 0 : index
    %222 = vector.load %arg10[%c0_107, %c0_108] : memref<32x128xf32, #tpu.memory_space<vmem>>, vector<32x128xf32>
    tpu.vector_store %arg10[%c0_107, %c0_108], %221 {strides = array<i32>} : memref<32x128xf32, #tpu.memory_space<vmem>>, vector<32x128xf32>,
    %c1_i32 = arith.constant 1 : i32
    %223 = arith.cmpi eq, %arg1, %c1_i32 : i32
    %224 = arith.extui %223 : i1 to i32
    %c0_i32_109 = arith.constant 0 : i32
    %225 = arith.cmpi ne, %224, %c0_i32_109 : i32
    scf.if %225 {
      %c0_110 = arith.constant 0 : index
      %c0_111 = arith.constant 0 : index
      %226 = vector.load %arg10[%c0_110, %c0_111] : memref<32x128xf32, #tpu.memory_space<vmem>>, vector<32x128xf32>
      %227 = vector.shape_cast %226 : vector<32x128xf32> to vector<1x32x128xf32>
      %c0_112 = arith.constant 0 : index
      %c0_113 = arith.constant 0 : index
      %c0_114 = arith.constant 0 : index
      %228 = vector.load %arg9[%c0_112, %c0_113, %c0_114] : memref<1x32x128xf32, #tpu.memory_space<vmem>>, vector<1x32x128xf32>
      tpu.vector_store %arg9[%c0_112, %c0_113, %c0_114], %227 {strides = array<i32>} : memref<1x32x128xf32, #tpu.memory_space<vmem>>, vector<1x32x128xf32>,
    } else {
    }
    return
  }
  func.func @transform_0(%arg0: i32, %arg1: i32) -> (i32, i32, i32) {
    %c0_i32 = arith.constant 0 : i32
    %c0_i32_0 = arith.constant 0 : i32
    %c0_i32_1 = arith.constant 0 : i32
    return %arg0, %c0_i32, %c0_i32_0 : i32, i32, i32
  }
  func.func @transform_1(%arg0: i32, %arg1: i32) -> (i32, i32, i32) {
    %c0_i32 = arith.constant 0 : i32
    %c0_i32_0 = arith.constant 0 : i32
    %c0_i32_1 = arith.constant 0 : i32
    return %arg1, %c0_i32, %c0_i32_0 : i32, i32, i32
  }
  func.func @transform_2(%arg0: i32, %arg1: i32) -> (i32, i32, i32) {
    %c0_i32 = arith.constant 0 : i32
    %c0_i32_0 = arith.constant 0 : i32
    %c0_i32_1 = arith.constant 0 : i32
    return %arg1, %c0_i32, %c0_i32_0 : i32, i32, i32
  }
  func.func @transform_3(%arg0: i32, %arg1: i32) -> (i32, i32, i32) {
    %c0_i32 = arith.constant 0 : i32
    %c0_i32_0 = arith.constant 0 : i32
    %c0_i32_1 = arith.constant 0 : i32
    return %arg1, %c0_i32, %c0_i32_0 : i32, i32, i32
  }
  func.func @transform_4(%arg0: i32, %arg1: i32) -> (i32, i32, i32) {
    %c0_i32 = arith.constant 0 : i32
    %c0_i32_0 = arith.constant 0 : i32
    %c0_i32_1 = arith.constant 0 : i32
    return %arg1, %c0_i32, %c0_i32_0 : i32, i32, i32
  }
  func.func @transform_5(%arg0: i32, %arg1: i32) -> (i32, i32, i32) {
    %c0_i32 = arith.constant 0 : i32
    %c0_i32_0 = arith.constant 0 : i32
    %c0_i32_1 = arith.constant 0 : i32
    return %arg1, %c0_i32, %c0_i32_0 : i32, i32, i32
  }
  func.func @transform_6(%arg0: i32, %arg1: i32) -> (i32, i32, i32) {
    %c0_i32 = arith.constant 0 : i32
    %c0_i32_0 = arith.constant 0 : i32
    %c0_i32_1 = arith.constant 0 : i32
    return %arg1, %c0_i32, %c0_i32_0 : i32, i32, i32
  }
  func.func @transform_7(%arg0: i32, %arg1: i32) -> (i32, i32, i32) {
    %c0_i32 = arith.constant 0 : i32
    %c0_i32_0 = arith.constant 0 : i32
    %c0_i32_1 = arith.constant 0 : i32
    return %arg0, %c0_i32, %c0_i32_0 : i32, i32, i32
  }
}

</mosaic_0001>

<llo_original>
// kernel: tpu_custom_call.1
$region0: #{tpu_custom_call.1}
  #allocation0 [shape = 'u32[]', space=smem, size = 0x4, offset = 0x4, fixed_abs, tag = 'smem constant byte address 0x4 - core index']
  #allocation1 [shape = 'u32[144,128]{1,0:T(1,128)}', space=vmem, size = 0x12000, scoped, tag = 'internal scratch']
  #allocation2 [shape = 'f32[32,128]{1,0:T(8,128)}', space=vmem, size = 0x4000, scoped, tag = 'scratch operand']
  #allocation3 [shape = 'f32[32,128]{1,0:T(8,128)}', space=vmem, size = 0x4000, scoped, tag = 'scratch operand']
  %s0 = inlined_call_operand.hbm [shape: f32[2,32,128], index: 0, kind: input, shape index: {}]
  %s1 = inlined_call_operand.hbm [shape: bf16[2,128,384], index: 1, kind: input, shape index: {}]
  %s2 = inlined_call_operand.hbm [shape: bf16[2,128,128], index: 2, kind: input, shape index: {}]
  %s3 = inlined_call_operand.hbm [shape: bf16[2,128,2048], index: 3, kind: input, shape index: {}]
  %s4 = inlined_call_operand.hbm [shape: bf16[2,2048,128], index: 4, kind: input, shape index: {}]
  %s5 = inlined_call_operand.hbm [shape: f32[2,16,128], index: 5, kind: input, shape index: {}]
  %s6 = inlined_call_operand.hbm [shape: f32[2,1,2048], index: 6, kind: input, shape index: {}]
  %s7 = inlined_call_operand.hbm [shape: f32[2,32,128], index: 7, kind: output, shape index: {}]
  %s8 = sld [smem:[#allocation0]]
  $region97: #{tpu_custom_call.1} parent=0
    _
  %s10 = ssub.s32 1, %s8
  %s11 = scalar_select 0, %s10, %s8
  $region1: #{tpu_custom_call.1} parent=0
    #allocation4 [shape = 'u8[32768]{0}', space=vmem, size = 0x8000, scoped, tag = 'input window, operand 0']
    #allocation5 [shape = 's32[2]{0}', space=sflag, size = 0x8, scoped, tag = 'scoped memory for tpu_custom_call.1']
    #allocation6 [shape = 's32[2]{0}', space=sflag, size = 0x8, scoped, tag = 'scoped memory for tpu_custom_call.1']
    #allocation7 [shape = 'u8[196608]{0}', space=vmem, size = 0x30000, scoped, tag = 'input window, operand 1']
    #allocation8 [shape = 's32[2]{0}', space=sflag, size = 0x8, scoped, tag = 'scoped memory for tpu_custom_call.1']
    #allocation9 [shape = 'u8[65536]{0}', space=vmem, size = 0x10000, scoped, tag = 'input window, operand 2']
    #allocation10 [shape = 'u8[1048576]{0}', space=vmem, size = 0x100000, scoped, tag = 'input window, operand 3']
    #allocation11 [shape = 's32[2]{0}', space=sflag, size = 0x8, scoped, tag = 'scoped memory for tpu_custom_call.1']
    #allocation12 [shape = 'u8[1048576]{0}', space=vmem, size = 0x100000, scoped, tag = 'input window, operand 4']
    #allocation13 [shape = 'u8[16384]{0}', space=vmem, size = 0x4000, scoped, tag = 'input window, operand 5']
    #allocation14 [shape = 's32[2]{0}', space=sflag, size = 0x8, scoped, tag = 'scoped memory for tpu_custom_call.1']
    #allocation15 [shape = 'u8[16384]{0}', space=vmem, size = 0x4000, scoped, tag = 'input window, operand 6']
    #allocation16 [shape = 'u8[32768]{0}', space=vmem, size = 0x8000, scoped, tag = 'output window, operand 0']
    %12 = vsyncpa [#allocation5], 0
    %s13 = scalar_lea.sflag [#allocation5], 1
    %14 = vsyncpa %s13, 0
    %15 = vsyncpa [#allocation8], 0
    %s16 = scalar_lea.sflag [#allocation8], 1
    %17 = vsyncpa %s16, 0
    %18 = vsyncpa [#allocation11], 0
    %s19 = scalar_lea.sflag [#allocation11], 1
    %20 = vsyncpa %s19, 0
    %21 = vsyncpa [#allocation14], 0
    %s22 = scalar_lea.sflag [#allocation14], 1
    %23 = vsyncpa %s22, 0
    %24 = vsyncpa [#allocation6], 0
    %s25 = scalar_lea.sflag [#allocation6], 1
    %26 = vsyncpa %s25, 0
    loop: start=0, step=1, limit=6
    $region2: #{tpu_custom_call.1} parent=1 // loop_pre_header
      _
    $region3: #{tpu_custom_call.1} parent=1 // loop_header
      %s28 = sphi 0, %s32
      %p29 = scmp.ge.s32.totalorder %s28, 6
      %s35 = sphi 0, %s47
      %s36 = sphi 0, %s43
      %s37 = sphi 0, %s35
      %s38 = sphi 0, %s36
      %s39 = sphi 0, %s37
      %s40 = sphi 0, %s38
      %s50 = sphi 0, %s52
      %s53 = sphi 0, %s50
      %s54 = sphi 0, %s53
      %s70 = sphi 0, %s54
      %s76 = sphi 0, %s78
      %s79 = sphi 0, %s76
      %s80 = sphi 0, %s79
      %s96 = sphi 0, %s80
      %s102 = sphi 0, %s104
      %s105 = sphi 0, %s102
      %s106 = sphi 0, %s105
      %s122 = sphi 0, %s106
      %s128 = sphi 0, %s130
      %s131 = sphi 0, %s128
      %s132 = sphi 0, %s131
      %s148 = sphi 0, %s132
      %s154 = sphi 0, %s156
      %s157 = sphi 0, %s154
      %s158 = sphi 0, %s157
      %s174 = sphi 0, %s158
      %s180 = sphi 0, %s182
      %s183 = sphi 0, %s180
      %s184 = sphi 0, %s183
      %s200 = sphi 0, %s184
      %s206 = sphi 0, %s208
      %s209 = sphi 0, %s206
      %s210 = sphi 0, %s209
      %s226 = sphi 0, %s210
      %s232 = sphi 0, %s234
      %s235 = sphi 0, %s232
      %s236 = sphi 0, %s235
      %s252 = sphi 0, %s236
    $region4: #{tpu_custom_call.1} parent=1 // loop_header_branch
      %31 = sbr.rel (%p29) target = $region8
    $region5: #{tpu_custom_call.1} parent=1 // loop_body
      %s33 = ssub.s32 %s28, 1
      %s34 = ssub.s32 %s28, 2
      %s41 = sadd.s32 1, %s36
      %p42 = scmp.ge.s32.totalorder %s41, 2
      %s43 = scalar_select %p42, 0, %s41
      %s44 = sadd.s32 1, %s35
      %s45 = scalar_select %p42, %s44, %s35
      %p46 = scmp.ge.s32.totalorder %s45, 2
      %s47 = scalar_select %p46, 0, %s45
      %s48 = ssub.s32 %s35, %s47
      %p49 = scmp.eq.s32.totalorder %s48, 0
      %s51 = sadd.s32 %s50, 1
      %s52 = scalar_select %p49, %s50, %s51
      %p55 = pneg %p49
      %p56 = scmp.eq.s32.totalorder %s28, 3
      %p57 = por %p55, %p56
      %p58 = scmp.ne.s32.totalorder %s50, %s53
      %p59 = scmp.eq.s32.totalorder %s28, 0
      %p60 = por %p58, %p59
      %p61 = scmp.ne.s32.totalorder %s50, %s53
      %p62 = scmp.eq.s32.totalorder %s33, 3
      %p63 = por %p61, %p62
      %p64 = scmp.ne.s32.totalorder %s53, %s54
      %p65 = scmp.eq.s32.totalorder %s33, 0
      %p66 = por %p64, %p65
      %p67 = scmp.ne.s32.totalorder %s53, %s54
      %p68 = scmp.eq.s32.totalorder %s34, 3
      %p69 = por %p67, %p68
      %p71 = scmp.ne.s32.totalorder %s54, %s70
      %p72 = scmp.eq.s32.totalorder %s34, 0
      %p73 = por %p71, %p72
      %s74 = ssub.s32 %s36, %s43
      %p75 = scmp.eq.s32.totalorder %s74, 0
      %s77 = sadd.s32 %s76, 1
      %s78 = scalar_select %p75, %s76, %s77
      %p81 = pneg %p75
      %p82 = scmp.eq.s32.totalorder %s28, 3
      %p83 = por %p81, %p82
      %p84 = scmp.ne.s32.totalorder %s76, %s79
      %p85 = scmp.eq.s32.totalorder %s28, 0
      %p86 = por %p84, %p85
      %p87 = scmp.ne.s32.totalorder %s76, %s79
      %p88 = scmp.eq.s32.totalorder %s33, 3
      %p89 = por %p87, %p88
      %p90 = scmp.ne.s32.totalorder %s79, %s80
      %p91 = scmp.eq.s32.totalorder %s33, 0
      %p92 = por %p90, %p91
      %p93 = scmp.ne.s32.totalorder %s79, %s80
      %p94 = scmp.eq.s32.totalorder %s34, 3
      %p95 = por %p93, %p94
      %p97 = scmp.ne.s32.totalorder %s80, %s96
      %p98 = scmp.eq.s32.totalorder %s34, 0
      %p99 = por %p97, %p98
      %s100 = ssub.s32 %s36, %s43
      %p101 = scmp.eq.s32.totalorder %s100, 0
      %s103 = sadd.s32 %s102, 1
      %s104 = scalar_select %p101, %s102, %s103
      %p107 = pneg %p101
      %p108 = scmp.eq.s32.totalorder %s28, 3
      %p109 = por %p107, %p108
      %p110 = scmp.ne.s32.totalorder %s102, %s105
      %p111 = scmp.eq.s32.totalorder %s28, 0
      %p112 = por %p110, %p111
      %p113 = scmp.ne.s32.totalorder %s102, %s105
      %p114 = scmp.eq.s32.totalorder %s33, 3
      %p115 = por %p113, %p114
      %p116 = scmp.ne.s32.totalorder %s105, %s106
      %p117 = scmp.eq.s32.totalorder %s33, 0
      %p118 = por %p116, %p117
      %p119 = scmp.ne.s32.totalorder %s105, %s106
      %p120 = scmp.eq.s32.totalorder %s34, 3
      %p121 = por %p119, %p120
      %p123 = scmp.ne.s32.totalorder %s106, %s122
      %p124 = scmp.eq.s32.totalorder %s34, 0
      %p125 = por %p123, %p124
      %s126 = ssub.s32 %s36, %s43
      %p127 = scmp.eq.s32.totalorder %s126, 0
      %s129 = sadd.s32 %s128, 1
      %s130 = scalar_select %p127, %s128, %s129
      %p133 = pneg %p127
      %p134 = scmp.eq.s32.totalorder %s28, 3
      %p135 = por %p133, %p134
      %p136 = scmp.ne.s32.totalorder %s128, %s131
      %p137 = scmp.eq.s32.totalorder %s28, 0
      %p138 = por %p136, %p137
      %p139 = scmp.ne.s32.totalorder %s128, %s131
      %p140 = scmp.eq.s32.totalorder %s33, 3
      %p141 = por %p139, %p140
      %p142 = scmp.ne.s32.totalorder %s131, %s132
      %p143 = scmp.eq.s32.totalorder %s33, 0
      %p144 = por %p142, %p143
      %p145 = scmp.ne.s32.totalorder %s131, %s132
      %p146 = scmp.eq.s32.totalorder %s34, 3
      %p147 = por %p145, %p146
      %p149 = scmp.ne.s32.totalorder %s132, %s148
      %p150 = scmp.eq.s32.totalorder %s34, 0
      %p151 = por %p149, %p150
      %s152 = ssub.s32 %s36, %s43
      %p153 = scmp.eq.s32.totalorder %s152, 0
      %s155 = sadd.s32 %s154, 1
      %s156 = scalar_select %p153, %s154, %s155
      %p159 = pneg %p153
      %p160 = scmp.eq.s32.totalorder %s28, 3
      %p161 = por %p159, %p160
      %p162 = scmp.ne.s32.totalorder %s154, %s157
      %p163 = scmp.eq.s32.totalorder %s28, 0
      %p164 = por %p162, %p163
      %p165 = scmp.ne.s32.totalorder %s154, %s157
      %p166 = scmp.eq.s32.totalorder %s33, 3
      %p167 = por %p165, %p166
      %p168 = scmp.ne.s32.totalorder %s157, %s158
      %p169 = scmp.eq.s32.totalorder %s33, 0
      %p170 = por %p168, %p169
      %p171 = scmp.ne.s32.totalorder %s157, %s158
      %p172 = scmp.eq.s32.totalorder %s34, 3
      %p173 = por %p171, %p172
      %p175 = scmp.ne.s32.totalorder %s158, %s174
      %p176 = scmp.eq.s32.totalorder %s34, 0
      %p177 = por %p175, %p176
      %s178 = ssub.s32 %s36, %s43
      %p179 = scmp.eq.s32.totalorder %s178, 0
      %s181 = sadd.s32 %s180, 1
      %s182 = scalar_select %p179, %s180, %s181
      %p185 = pneg %p179
      %p186 = scmp.eq.s32.totalorder %s28, 3
      %p187 = por %p185, %p186
      %p188 = scmp.ne.s32.totalorder %s180, %s183
      %p189 = scmp.eq.s32.totalorder %s28, 0
      %p190 = por %p188, %p189
      %p191 = scmp.ne.s32.totalorder %s180, %s183
      %p192 = scmp.eq.s32.totalorder %s33, 3
      %p193 = por %p191, %p192
      %p194 = scmp.ne.s32.totalorder %s183, %s184
      %p195 = scmp.eq.s32.totalorder %s33, 0
      %p196 = por %p194, %p195
      %p197 = scmp.ne.s32.totalorder %s183, %s184
      %p198 = scmp.eq.s32.totalorder %s34, 3
      %p199 = por %p197, %p198
      %p201 = scmp.ne.s32.totalorder %s184, %s200
      %p202 = scmp.eq.s32.totalorder %s34, 0
      %p203 = por %p201, %p202
      %s204 = ssub.s32 %s36, %s43
      %p205 = scmp.eq.s32.totalorder %s204, 0
      %s207 = sadd.s32 %s206, 1
      %s208 = scalar_select %p205, %s206, %s207
      %p211 = pneg %p205
      %p212 = scmp.eq.s32.totalorder %s28, 3
      %p213 = por %p211, %p212
      %p214 = scmp.ne.s32.totalorder %s206, %s209
      %p215 = scmp.eq.s32.totalorder %s28, 0
      %p216 = por %p214, %p215
      %p217 = scmp.ne.s32.totalorder %s206, %s209
      %p218 = scmp.eq.s32.totalorder %s33, 3
      %p219 = por %p217, %p218
      %p220 = scmp.ne.s32.totalorder %s209, %s210
      %p221 = scmp.eq.s32.totalorder %s33, 0
      %p222 = por %p220, %p221
      %p223 = scmp.ne.s32.totalorder %s209, %s210
      %p224 = scmp.eq.s32.totalorder %s34, 3
      %p225 = por %p223, %p224
      %p227 = scmp.ne.s32.totalorder %s210, %s226
      %p228 = scmp.eq.s32.totalorder %s34, 0
      %p229 = por %p227, %p228
      %s230 = ssub.s32 %s35, %s47
      %p231 = scmp.eq.s32.totalorder %s230, 0
      %s233 = sadd.s32 %s232, 1
      %s234 = scalar_select %p231, %s232, %s233
      %p237 = pneg %p231
      %p238 = scmp.eq.s32.totalorder %s28, 3
      %p239 = por %p237, %p238
      %p240 = scmp.ne.s32.totalorder %s232, %s235
      %p241 = scmp.eq.s32.totalorder %s28, 0
      %p242 = por %p240, %p241
      %p243 = scmp.ne.s32.totalorder %s232, %s235
      %p244 = scmp.eq.s32.totalorder %s33, 3
      %p245 = por %p243, %p244
      %p246 = scmp.ne.s32.totalorder %s235, %s236
      %p247 = scmp.eq.s32.totalorder %s33, 0
      %p248 = por %p246, %p247
      %p249 = scmp.ne.s32.totalorder %s235, %s236
      %p250 = scmp.eq.s32.totalorder %s34, 3
      %p251 = por %p249, %p250
      %p253 = scmp.ne.s32.totalorder %s236, %s252
      %p254 = scmp.eq.s32.totalorder %s34, 0
      %p255 = por %p253, %p254
      %p256 = scmp.le.s32.totalorder 1, %s28
      %p257 = scmp.lt.s32.totalorder %s28, 5
      %p258 = pnand %p256, %p257
      %p259 = pneg %p258
      // Predicated region
      $region9: #{tpu_custom_call.1} parent=5 // pred_check
        _
      $region10: #{tpu_custom_call.1} parent=5 // pred_check_branch
        %261 = sbr.rel (%p258) target = $region12
      $region11: #{tpu_custom_call.1} parent=5 // pred_region
        %s262 = ssub.s32 %s28, 1
      $region12: #{tpu_custom_call.1} parent=5 // pred_fallthru
        _
      %p263 = scmp.lt.s32.totalorder %s28, 4
      // Predicated region
      $region13: #{tpu_custom_call.1} parent=5 // pred_check
        %p264 = pneg %p263
      $region14: #{tpu_custom_call.1} parent=5 // pred_check_branch
        %266 = sbr.rel (%p264) target = $region16
      $region15: #{tpu_custom_call.1} parent=5 // pred_region
        // Predicated region
        $region17: #{tpu_custom_call.1} parent=15 // pred_check
          %p267 = pneg %p60
        $region18: #{tpu_custom_call.1} parent=15 // pred_check_branch
          %269 = sbr.rel (%p267) target = $region20
        $region19: #{tpu_custom_call.1} parent=15 // pred_region
          %s270 = sand.u32 %s50, 1
          %s271 = scalar_lea.sflag [#allocation5], %s270
          %s272 = sand.u32 %s50, 1
          %s273 = smul.addr %s272, 32
          %s274 = scalar_lea.vmem [#allocation4], %s273
          %s276 = ssub.s32 512, 512
          %277 = vsyncadd %s271, %s276
          %s278 = smul.addr %s35, 4
          %s279 = smul.addr %s278, 128
          %s280 = scalar_lea.hbm %s0, %s279
          %s281 = sshll.u32 %s274, 4
          %s282 = int_to_ptr.vmem [resolvable:$true] %s281
          %287 = dma.hbm_to_vmem [thread:$0]  %s280, 512, %s282, %s271, 128, 128, 8
        $region20: #{tpu_custom_call.1} parent=15 // pred_fallthru
          _
        // Predicated region
        $region21: #{tpu_custom_call.1} parent=15 // pred_check
          %p288 = pneg %p86
        $region22: #{tpu_custom_call.1} parent=15 // pred_check_branch
          %290 = sbr.rel (%p288) target = $region24
        $region23: #{tpu_custom_call.1} parent=15 // pred_region
          %s291 = sand.u32 %s28, 1
          %s292 = scalar_lea.sflag [#allocation8], %s291
          %s293 = sand.u32 %s76, 1
          %s294 = smul.addr %s293, 192
          %s295 = scalar_lea.vmem [#allocation7], %s294
          %s297 = ssub.s32 3072, 3072
          %298 = vsyncadd %s292, %s297
          %s299 = smul.addr %s36, 48
          %s300 = smul.addr %s299, 64
          %s301 = scalar_lea.hbm %s1, %s300
          %s302 = sshll.u32 %s295, 4
          %s303 = int_to_ptr.vmem [resolvable:$true] %s302
          %308 = dma.hbm_to_vmem [thread:$0]  %s301, 3072, %s303, %s292, 192, 192, 12
        $region24: #{tpu_custom_call.1} parent=15 // pred_fallthru
          _
        // Predicated region
        $region25: #{tpu_custom_call.1} parent=15 // pred_check
          %p309 = pneg %p112
        $region26: #{tpu_custom_call.1} parent=15 // pred_check_branch
          %311 = sbr.rel (%p309) target = $region28
        $region27: #{tpu_custom_call.1} parent=15 // pred_region
          %s312 = sand.u32 %s28, 1
          %s313 = scalar_lea.sflag [#allocation8], %s312
          %s314 = sand.u32 %s102, 1
          %s315 = smul.addr %s314, 64
          %s316 = scalar_lea.vmem [#allocation9], %s315
          %s318 = ssub.s32 1024, 1024
          %319 = vsyncadd %s313, %s318
          %s320 = smul.addr %s36, 16
          %s321 = smul.addr %s320, 64
          %s322 = scalar_lea.hbm %s2, %s321
          %s323 = sshll.u32 %s316, 4
          %s324 = int_to_ptr.vmem [resolvable:$true] %s323
          %329 = dma.hbm_to_vmem [thread:$0]  %s322, 1024, %s324, %s313, 64, 64, 4
        $region28: #{tpu_custom_call.1} parent=15 // pred_fallthru
          _
        // Predicated region
        $region29: #{tpu_custom_call.1} parent=15 // pred_check
          %p330 = pneg %p138
        $region30: #{tpu_custom_call.1} parent=15 // pred_check_branch
          %332 = sbr.rel (%p330) target = $region32
        $region31: #{tpu_custom_call.1} parent=15 // pred_region
          %s333 = sand.u32 %s28, 1
          %s334 = scalar_lea.sflag [#allocation11], %s333
          %s335 = sand.u32 %s128, 1
          %s336 = smul.addr %s335, 1024
          %s337 = scalar_lea.vmem [#allocation10], %s336
          %s339 = ssub.s32 16384, 16384
          %340 = vsyncadd %s334, %s339
          %s341 = smul.addr %s36, 256
          %s342 = smul.addr %s341, 64
          %s343 = scalar_lea.hbm %s3, %s342
          %s344 = sshll.u32 %s337, 4
          %s345 = int_to_ptr.vmem [resolvable:$true] %s344
          %350 = dma.hbm_to_vmem [thread:$0]  %s343, 16384, %s345, %s334, 1024, 1024, 64
        $region32: #{tpu_custom_call.1} parent=15 // pred_fallthru
          _
        // Predicated region
        $region33: #{tpu_custom_call.1} parent=15 // pred_check
          %p351 = pneg %p164
        $region34: #{tpu_custom_call.1} parent=15 // pred_check_branch
          %353 = sbr.rel (%p351) target = $region36
        $region35: #{tpu_custom_call.1} parent=15 // pred_region
          %s354 = sand.u32 %s28, 1
          %s355 = scalar_lea.sflag [#allocation11], %s354
          %s356 = sand.u32 %s154, 1
          %s357 = smul.addr %s356, 1024
          %s358 = scalar_lea.vmem [#allocation12], %s357
          %s360 = ssub.s32 16384, 16384
          %361 = vsyncadd %s355, %s360
          %s362 = smul.addr %s36, 256
          %s363 = smul.addr %s362, 64
          %s364 = scalar_lea.hbm %s4, %s363
          %s365 = sshll.u32 %s358, 4
          %s366 = int_to_ptr.vmem [resolvable:$true] %s365
          %371 = dma.hbm_to_vmem [thread:$0]  %s364, 16384, %s366, %s355, 64, 64, 4
        $region36: #{tpu_custom_call.1} parent=15 // pred_fallthru
          _
        // Predicated region
        $region37: #{tpu_custom_call.1} parent=15 // pred_check
          %p372 = pneg %p190
        $region38: #{tpu_custom_call.1} parent=15 // pred_check_branch
          %374 = sbr.rel (%p372) target = $region40
        $region39: #{tpu_custom_call.1} parent=15 // pred_region
          %s375 = sand.u32 %s28, 1
          %s376 = scalar_lea.sflag [#allocation14], %s375
          %s377 = sand.u32 %s180, 1
          %s378 = smul.addr %s377, 16
          %s379 = scalar_lea.vmem [#allocation13], %s378
          %s381 = ssub.s32 256, 256
          %382 = vsyncadd %s376, %s381
          %s383 = smul.addr %s36, 2
          %s384 = smul.addr %s383, 128
          %s385 = scalar_lea.hbm %s5, %s384
          %s386 = sshll.u32 %s379, 4
          %s387 = int_to_ptr.vmem [resolvable:$true] %s386
          %392 = dma.hbm_to_vmem [thread:$0]  %s385, 256, %s387, %s376, 128, 128, 8
        $region40: #{tpu_custom_call.1} parent=15 // pred_fallthru
          _
        // Predicated region
        $region41: #{tpu_custom_call.1} parent=15 // pred_check
          %p393 = pneg %p216
        $region42: #{tpu_custom_call.1} parent=15 // pred_check_branch
          %395 = sbr.rel (%p393) target = $region44
        $region43: #{tpu_custom_call.1} parent=15 // pred_region
          %s396 = sand.u32 %s28, 1
          %s397 = scalar_lea.sflag [#allocation14], %s396
          %s398 = sand.u32 %s206, 1
          %s399 = smul.addr %s398, 16
          %s400 = scalar_lea.vmem [#allocation15], %s399
          %s402 = ssub.s32 256, 256
          %403 = vsyncadd %s397, %s402
          %s404 = smul.addr %s36, 16
          %s405 = smul.addr %s404, 16
          %s406 = scalar_lea.hbm %s6, %s405
          %s408 = sshll.u32 %s400, 4
          %s409 = int_to_ptr.vmem [resolvable:$true] %s408
          %411 = dma.hbm_to_vmem [thread:$0]  %s406, 256, %s409, %s397
        $region44: #{tpu_custom_call.1} parent=15 // pred_fallthru
          _
      $region16: #{tpu_custom_call.1} parent=5 // pred_fallthru
        _
      %p412 = scmp.le.s32.totalorder 1, %s28
      %p413 = scmp.lt.s32.totalorder %s28, 5
      %p414 = pnand %p412, %p413
      %p415 = pneg %p414
      // Predicated region
      $region45: #{tpu_custom_call.1} parent=5 // pred_check
        _
      $region46: #{tpu_custom_call.1} parent=5 // pred_check_branch
        %417 = sbr.rel (%p414) target = $region48
      $region47: #{tpu_custom_call.1} parent=5 // pred_region
        %s418 = ssub.s32 %s28, 1
        %s419 = sand.u32 %s53, 1
        %s420 = scalar_lea.sflag [#allocation5], %s419
        %s421 = sand.u32 %s53, 1
        %s422 = smul.addr %s421, 32
        %s423 = scalar_lea.vmem [#allocation4], %s422
        // Predicated region
        $region49: #{tpu_custom_call.1} parent=47 // pred_check
          %p424 = pneg %p66
        $region50: #{tpu_custom_call.1} parent=47 // pred_check_branch
          %426 = sbr.rel (%p424) target = $region52
        $region51: #{tpu_custom_call.1} parent=47 // pred_region
          %427 = dma.done %s420, 512
        $region52: #{tpu_custom_call.1} parent=47 // pred_fallthru
          _
        %s428 = sand.u32 %s33, 1
        %s429 = scalar_lea.sflag [#allocation8], %s428
        %s430 = sand.u32 %s79, 1
        %s431 = smul.addr %s430, 192
        %s432 = scalar_lea.vmem [#allocation7], %s431
        // Predicated region
        $region53: #{tpu_custom_call.1} parent=47 // pred_check
          %p433 = pneg %p92
        $region54: #{tpu_custom_call.1} parent=47 // pred_check_branch
          %435 = sbr.rel (%p433) target = $region56
        $region55: #{tpu_custom_call.1} parent=47 // pred_region
          %436 = dma.done %s429, 3072
        $region56: #{tpu_custom_call.1} parent=47 // pred_fallthru
          _
        %s437 = sand.u32 %s33, 1
        %s438 = scalar_lea.sflag [#allocation8], %s437
        %s439 = sand.u32 %s105, 1
        %s440 = smul.addr %s439, 64
        %s441 = scalar_lea.vmem [#allocation9], %s440
        // Predicated region
        $region57: #{tpu_custom_call.1} parent=47 // pred_check
          %p442 = pneg %p118
        $region58: #{tpu_custom_call.1} parent=47 // pred_check_branch
          %444 = sbr.rel (%p442) target = $region60
        $region59: #{tpu_custom_call.1} parent=47 // pred_region
          %445 = dma.done %s438, 1024
        $region60: #{tpu_custom_call.1} parent=47 // pred_fallthru
          _
        %s446 = sand.u32 %s33, 1
        %s447 = scalar_lea.sflag [#allocation11], %s446
        %s448 = sand.u32 %s131, 1
        %s449 = smul.addr %s448, 1024
        %s450 = scalar_lea.vmem [#allocation10], %s449
        // Predicated region
        $region61: #{tpu_custom_call.1} parent=47 // pred_check
          %p451 = pneg %p144
        $region62: #{tpu_custom_call.1} parent=47 // pred_check_branch
          %453 = sbr.rel (%p451) target = $region64
        $region63: #{tpu_custom_call.1} parent=47 // pred_region
          %454 = dma.done %s447, 16384
        $region64: #{tpu_custom_call.1} parent=47 // pred_fallthru
          _
        %s455 = sand.u32 %s33, 1
        %s456 = scalar_lea.sflag [#allocation11], %s455
        %s457 = sand.u32 %s157, 1
        %s458 = smul.addr %s457, 1024
        %s459 = scalar_lea.vmem [#allocation12], %s458
        // Predicated region
        $region65: #{tpu_custom_call.1} parent=47 // pred_check
          %p460 = pneg %p170
        $region66: #{tpu_custom_call.1} parent=47 // pred_check_branch
          %462 = sbr.rel (%p460) target = $region68
        $region67: #{tpu_custom_call.1} parent=47 // pred_region
          %463 = dma.done %s456, 16384
        $region68: #{tpu_custom_call.1} parent=47 // pred_fallthru
          _
        %s464 = sand.u32 %s33, 1
        %s465 = scalar_lea.sflag [#allocation14], %s464
        %s466 = sand.u32 %s183, 1
        %s467 = smul.addr %s466, 16
        %s468 = scalar_lea.vmem [#allocation13], %s467
        // Predicated region
        $region69: #{tpu_custom_call.1} parent=47 // pred_check
          %p469 = pneg %p196
        $region70: #{tpu_custom_call.1} parent=47 // pred_check_branch
          %471 = sbr.rel (%p469) target = $region72
        $region71: #{tpu_custom_call.1} parent=47 // pred_region
          %472 = dma.done %s465, 256
        $region72: #{tpu_custom_call.1} parent=47 // pred_fallthru
          _
        %s473 = sand.u32 %s33, 1
        %s474 = scalar_lea.sflag [#allocation14], %s473
        %s475 = sand.u32 %s209, 1
        %s476 = smul.addr %s475, 16
        %s477 = scalar_lea.vmem [#allocation15], %s476
        // Predicated region
        $region73: #{tpu_custom_call.1} parent=47 // pred_check
          %p478 = pneg %p222
        $region74: #{tpu_custom_call.1} parent=47 // pred_check_branch
          %480 = sbr.rel (%p478) target = $region76
        $region75: #{tpu_custom_call.1} parent=47 // pred_region
          %481 = dma.done %s474, 256
        $region76: #{tpu_custom_call.1} parent=47 // pred_fallthru
          _
        %s482 = sand.u32 %s53, 1
        %s483 = scalar_lea.sflag [#allocation5], %s482
        %s484 = sand.u32 %s53, 1
        %s485 = smul.addr %s484, 32
        %s486 = scalar_lea.vmem [#allocation4], %s485
        %p487 = pneg %p66
        %p488 = pneg %p63
        %s489 = sand.u32 %s33, 1
        %s490 = scalar_lea.sflag [#allocation8], %s489
        %s491 = sand.u32 %s79, 1
        %s492 = smul.addr %s491, 192
        %s493 = scalar_lea.vmem [#allocation7], %s492
        %p494 = pneg %p92
        %p495 = pneg %p89
        %s496 = sand.u32 %s33, 1
        %s497 = scalar_lea.sflag [#allocation8], %s496
        %s498 = sand.u32 %s105, 1
        %s499 = smul.addr %s498, 64
        %s500 = scalar_lea.vmem [#allocation9], %s499
        %p501 = pneg %p118
        %p502 = pneg %p115
        %s503 = sand.u32 %s33, 1
        %s504 = scalar_lea.sflag [#allocation11], %s503
        %s505 = sand.u32 %s131, 1
        %s506 = smul.addr %s505, 1024
        %s507 = scalar_lea.vmem [#allocation10], %s506
        %p508 = pneg %p144
        %p509 = pneg %p141
        %s510 = sand.u32 %s33, 1
        %s511 = scalar_lea.sflag [#allocation11], %s510
        %s512 = sand.u32 %s157, 1
        %s513 = smul.addr %s512, 1024
        %s514 = scalar_lea.vmem [#allocation12], %s513
        %p515 = pneg %p170
        %p516 = pneg %p167
        %s517 = sand.u32 %s33, 1
        %s518 = scalar_lea.sflag [#allocation14], %s517
        %s519 = sand.u32 %s183, 1
        %s520 = smul.addr %s519, 16
        %s521 = scalar_lea.vmem [#allocation13], %s520
        %p522 = pneg %p196
        %p523 = pneg %p193
        %s524 = sand.u32 %s33, 1
        %s525 = scalar_lea.sflag [#allocation14], %s524
        %s526 = sand.u32 %s209, 1
        %s527 = smul.addr %s526, 16
        %s528 = scalar_lea.vmem [#allocation15], %s527
        %p529 = pneg %p222
        %p530 = pneg %p219
        %p531 = pneg %p248
        %p532 = pneg %p245
        %s533 = sand.u32 %s235, 1
        %s534 = scalar_lea.sflag [#allocation6], %s533
        %s535 = sand.u32 %s235, 1
        %s536 = smul.addr %s535, 32
        %s537 = scalar_lea.vmem [#allocation16], %s536
        %p539 = scmp.eq.s32.totalorder %s38, 0
        // Predicated region
        $region77: #{tpu_custom_call.1} parent=47 // pred_check
          %p540 = pneg %p539
        $region78: #{tpu_custom_call.1} parent=47 // pred_check_branch
          %542 = sbr.rel (%p540) target = $region80
        $region79: #{tpu_custom_call.1} parent=47 // pred_region
          %v543 = vld [vmem:[%s423] sm:$0xff]
          %v544 = vld [vmem:[%s423 + $0x8] sm:$0xff]
          %v545 = vld [vmem:[%s423 + $0x10] sm:$0xff]
          %v546 = vld [vmem:[%s423 + $0x18] sm:$0xff]
          %547 = vst [vmem:[#allocation2] sm:$0xff] %v543
          %548 = vst [vmem:[#allocation2 + $0x8] sm:$0xff] %v544
          %549 = vst [vmem:[#allocation2 + $0x10] sm:$0xff] %v545
          %550 = vst [vmem:[#allocation2 + $0x18] sm:$0xff] %v546
        $region80: #{tpu_custom_call.1} parent=47 // pred_fallthru
          _
        %v551 = vld [vmem:[#allocation2] sm:$0xff]
        %v552 = vld [vmem:[#allocation2 + $0x8] sm:$0xff]
        %v553 = vld [vmem:[#allocation2 + $0x10] sm:$0xff]
        %v554 = vld [vmem:[#allocation2 + $0x18] sm:$0xff]
        %v555 = vpack.c.bf16 %v552, %v551
        %v556 = vpack.c.bf16 %v554, %v553
        %v557 = vld [vmem:[%s432] sm:$0xff]
        %v558 = vld [vmem:[%s432 + $0x8] sm:$0xf]
        %v559 = vld [vmem:[%s432 + $0xc] sm:$0xff]
        %v560 = vld [vmem:[%s432 + $0x14] sm:$0xf]
        %v561 = vld [vmem:[%s432 + $0x18] sm:$0xff]
        %v562 = vld [vmem:[%s432 + $0x20] sm:$0xf]
        %v563 = vld [vmem:[%s432 + $0x24] sm:$0xff]
        %v564 = vld [vmem:[%s432 + $0x2c] sm:$0xf]
        %v565 = vld [vmem:[%s432 + $0x30] sm:$0xff]
        %v566 = vld [vmem:[%s432 + $0x38] sm:$0xf]
        %v567 = vld [vmem:[%s432 + $0x3c] sm:$0xff]
        %v568 = vld [vmem:[%s432 + $0x44] sm:$0xf]
        %v569 = vld [vmem:[%s432 + $0x48] sm:$0xff]
        %v570 = vld [vmem:[%s432 + $0x50] sm:$0xf]
        %v571 = vld [vmem:[%s432 + $0x54] sm:$0xff]
        %v572 = vld [vmem:[%s432 + $0x5c] sm:$0xf]
        %v573 = vld [vmem:[%s432 + $0x60] sm:$0xff]
        %v574 = vld [vmem:[%s432 + $0x68] sm:$0xf]
        %v575 = vld [vmem:[%s432 + $0x6c] sm:$0xff]
        %v576 = vld [vmem:[%s432 + $0x74] sm:$0xf]
        %v577 = vld [vmem:[%s432 + $0x78] sm:$0xff]
        %v578 = vld [vmem:[%s432 + $0x80] sm:$0xf]
        %v579 = vld [vmem:[%s432 + $0x84] sm:$0xff]
        %v580 = vld [vmem:[%s432 + $0x8c] sm:$0xf]
        %v581 = vld [vmem:[%s432 + $0x90] sm:$0xff]
        %v582 = vld [vmem:[%s432 + $0x98] sm:$0xf]
        %v583 = vld [vmem:[%s432 + $0x9c] sm:$0xff]
        %v584 = vld [vmem:[%s432 + $0xa4] sm:$0xf]
        %v585 = vld [vmem:[%s432 + $0xa8] sm:$0xff]
        %v586 = vld [vmem:[%s432 + $0xb0] sm:$0xf]
        %v587 = vld [vmem:[%s432 + $0xb4] sm:$0xff]
        %v588 = vld [vmem:[%s432 + $0xbc] sm:$0xf]
        %v621 = vunpack.c.l.b16 %v557
        %v622 = vunpack.c.h.b16 %v557
        %v623 = vunpack.c.l.b16 %v558
        %v624 = vunpack.c.l.b16 %v559
        %v625 = vunpack.c.h.b16 %v559
        %v626 = vunpack.c.l.b16 %v560
        %v627 = vunpack.c.l.b16 %v561
        %v628 = vunpack.c.h.b16 %v561
        %v629 = vunpack.c.l.b16 %v562
        %v630 = vunpack.c.l.b16 %v563
        %v631 = vunpack.c.h.b16 %v563
        %v632 = vunpack.c.l.b16 %v564
        %v633 = vunpack.c.l.b16 %v565
        %v634 = vunpack.c.h.b16 %v565
        %v635 = vunpack.c.l.b16 %v566
        %v636 = vunpack.c.l.b16 %v567
        %v637 = vunpack.c.h.b16 %v567
        %v638 = vunpack.c.l.b16 %v568
        %v639 = vunpack.c.l.b16 %v569
        %v640 = vunpack.c.h.b16 %v569
        %v641 = vunpack.c.l.b16 %v570
        %v642 = vunpack.c.l.b16 %v571
        %v643 = vunpack.c.h.b16 %v571
        %v644 = vunpack.c.l.b16 %v572
        %v645 = vunpack.c.l.b16 %v573
        %v646 = vunpack.c.h.b16 %v573
        %v647 = vunpack.c.l.b16 %v574
        %v648 = vunpack.c.l.b16 %v575
        %v649 = vunpack.c.h.b16 %v575
        %v650 = vunpack.c.l.b16 %v576
        %v651 = vunpack.c.l.b16 %v577
        %v652 = vunpack.c.h.b16 %v577
        %v653 = vunpack.c.l.b16 %v578
        %v654 = vunpack.c.l.b16 %v579
        %v655 = vunpack.c.h.b16 %v579
        %v656 = vunpack.c.l.b16 %v580
        %v657 = vunpack.c.l.b16 %v581
        %v658 = vunpack.c.h.b16 %v581
        %v659 = vunpack.c.l.b16 %v582
        %v660 = vunpack.c.l.b16 %v583
        %v661 = vunpack.c.h.b16 %v583
        %v662 = vunpack.c.l.b16 %v584
        %v663 = vunpack.c.l.b16 %v585
        %v664 = vunpack.c.h.b16 %v585
        %v665 = vunpack.c.l.b16 %v586
        %v666 = vunpack.c.l.b16 %v587
        %v667 = vunpack.c.h.b16 %v587
        %v668 = vunpack.c.l.b16 %v588
        %v669 = vpack.c.b16 %v624, %v621
        %v670 = vpack.c.b16 %v625, %v622
        %v671 = vpack.c.b16 %v626, %v623
        %v672 = vpack.c.b16 %v630, %v627
        %v673 = vpack.c.b16 %v631, %v628
        %v674 = vpack.c.b16 %v632, %v629
        %v675 = vpack.c.b16 %v636, %v633
        %v676 = vpack.c.b16 %v637, %v634
        %v677 = vpack.c.b16 %v638, %v635
        %v678 = vpack.c.b16 %v642, %v639
        %v679 = vpack.c.b16 %v643, %v640
        %v680 = vpack.c.b16 %v644, %v641
        %v681 = vpack.c.b16 %v648, %v645
        %v682 = vpack.c.b16 %v649, %v646
        %v683 = vpack.c.b16 %v650, %v647
        %v684 = vpack.c.b16 %v654, %v651
        %v685 = vpack.c.b16 %v655, %v652
        %v686 = vpack.c.b16 %v656, %v653
        %v687 = vpack.c.b16 %v660, %v657
        %v688 = vpack.c.b16 %v661, %v658
        %v689 = vpack.c.b16 %v662, %v659
        %v690 = vpack.c.b16 %v666, %v663
        %v691 = vpack.c.b16 %v667, %v664
        %v692 = vpack.c.b16 %v668, %v665
        %717 = vmatprep.subr.bf16.mxu0 %v670
        %718 = vmatpush1.bf16.msra.mxu0 %v669
        %719 = vmatprep.subr.bf16.mxu0 %v673
        %720 = vmatpush1.bf16.msra.mxu0 %v672
        %721 = vmatprep.subr.bf16.mxu0 %v676
        %722 = vmatpush1.bf16.msra.mxu0 %v675
        %723 = vmatprep.subr.bf16.mxu0 %v679
        %724 = vmatpush1.bf16.msra.mxu0 %v678
        %725 = vmatprep.subr.bf16.mxu0 %v682
        %726 = vmatpush1.bf16.msra.mxu0 %v681
        %727 = vmatprep.subr.bf16.mxu0 %v685
        %728 = vmatpush1.bf16.msra.mxu0 %v684
        %729 = vmatprep.subr.bf16.mxu0 %v688
        %730 = vmatpush1.bf16.msra.mxu0 %v687
        %731 = vmatprep.subr.bf16.mxu0 %v691
        %732 = vmatpush1.bf16.msra.mxu0 %v690
        %733 = vmatprep.subr.bf16.mxu0 0
        %734 = vmatpush1.bf16.msra.mxu0 0
        %735 = vmatprep.subr.bf16.mxu0 0
        %736 = vmatpush1.bf16.msra.mxu0 0
        %737 = vmatprep.subr.bf16.mxu0 0
        %738 = vmatpush1.bf16.msra.mxu0 0
        %739 = vmatprep.subr.bf16.mxu0 0
        %740 = vmatpush1.bf16.msra.mxu0 0
        %741 = vmatprep.subr.bf16.mxu0 0
        %742 = vmatpush1.bf16.msra.mxu0 0
        %743 = vmatprep.subr.bf16.mxu0 0
        %744 = vmatpush1.bf16.msra.mxu0 0
        %745 = vmatprep.subr.bf16.mxu0 0
        %746 = vmatpush1.bf16.msra.mxu0 0
        %747 = vmatprep.subr.bf16.mxu0 0
        %748 = vmatpush1.bf16.msra.mxu0 0
        %749 = vmatprep.mubr.bf16.mxu0 0
        %750 = vmatmul.mubr.bf16.gmra.mrb[0].mxu0 %v555
        %v751 = vpop.f32.mrb[0].mxu0
        %v752 = vadd.f32 0.0, %v751
        %v753 = vpop.f32.mrb[0].mxu0
        %v754 = vadd.f32 0.0, %v753
        %v755 = vpop.f32.mrb[0].mxu0
        %v756 = vadd.f32 0.0, %v755
        %v757 = vpop.f32.mrb[0].mxu0
        %v758 = vadd.f32 0.0, %v757
        %759 = vmatprep.mubr.bf16.mxu0 0
        %760 = vmatmul.mubr.bf16.gmra.mrb[0].mxu0 %v556
        %v761 = vpop.f32.mrb[0].mxu0
        %v762 = vadd.f32 0.0, %v761
        %v763 = vpop.f32.mrb[0].mxu0
        %v764 = vadd.f32 0.0, %v763
        %v765 = vpop.f32.mrb[0].mxu0
        %v766 = vadd.f32 0.0, %v765
        %v767 = vpop.f32.mrb[0].mxu0
        %v768 = vadd.f32 0.0, %v767
        %769 = vdwg.mxu0
        %770 = vmatprep.subr.bf16.mxu0 0
        %771 = vmatpush1.bf16.msra.mxu0 %v671
        %772 = vmatprep.subr.bf16.mxu0 0
        %773 = vmatpush1.bf16.msra.mxu0 %v674
        %774 = vmatprep.subr.bf16.mxu0 0
        %775 = vmatpush1.bf16.msra.mxu0 %v677
        %776 = vmatprep.subr.bf16.mxu0 0
        %777 = vmatpush1.bf16.msra.mxu0 %v680
        %778 = vmatprep.subr.bf16.mxu0 0
        %779 = vmatpush1.bf16.msra.mxu0 %v683
        %780 = vmatprep.subr.bf16.mxu0 0
        %781 = vmatpush1.bf16.msra.mxu0 %v686
        %782 = vmatprep.subr.bf16.mxu0 0
        %783 = vmatpush1.bf16.msra.mxu0 %v689
        %784 = vmatprep.subr.bf16.mxu0 0
        %785 = vmatpush1.bf16.msra.mxu0 %v692
        %786 = vmatprep.subr.bf16.mxu0 0
        %787 = vmatpush1.bf16.msra.mxu0 0
        %788 = vmatprep.subr.bf16.mxu0 0
        %789 = vmatpush1.bf16.msra.mxu0 0
        %790 = vmatprep.subr.bf16.mxu0 0
        %791 = vmatpush1.bf16.msra.mxu0 0
        %792 = vmatprep.subr.bf16.mxu0 0
        %793 = vmatpush1.bf16.msra.mxu0 0
        %794 = vmatprep.subr.bf16.mxu0 0
        %795 = vmatpush1.bf16.msra.mxu0 0
        %796 = vmatprep.subr.bf16.mxu0 0
        %797 = vmatpush1.bf16.msra.mxu0 0
        %798 = vmatprep.subr.bf16.mxu0 0
        %799 = vmatpush1.bf16.msra.mxu0 0
        %800 = vmatprep.subr.bf16.mxu0 0
        %801 = vmatpush1.bf16.msra.mxu0 0
        %802 = vmatprep.mubr.bf16.mxu0 0
        %803 = vmatmul.mubr.bf16.gmra.mrb[0].mxu0 %v555
        %v804 = vpop.f32.mrb[0].mxu0
        %v805 = vadd.f32 0.0, %v804
        %v806 = vpop.f32.mrb[0].mxu0
        %v807 = vpop.f32.mrb[0].mxu0
        %v808 = vadd.f32 0.0, %v807
        %v809 = vpop.f32.mrb[0].mxu0
        %810 = vmatprep.mubr.bf16.mxu0 0
        %811 = vmatmul.mubr.bf16.gmra.mrb[0].mxu0 %v556
        %v812 = vpop.f32.mrb[0].mxu0
        %v813 = vadd.f32 0.0, %v812
        %v814 = vpop.f32.mrb[0].mxu0
        %v815 = vpop.f32.mrb[0].mxu0
        %v816 = vadd.f32 0.0, %v815
        %v817 = vpop.f32.mrb[0].mxu0
        %818 = vdwg.mxu0
        %v819 = vld [vmem:[%s468] sm:$0x1]
        %v820 = vlaneseq
        %v821 = vshrl.u32 %v820, 7
        %v822 = vsub.s32 0, %v821
        %v823 = vrot.slane %v819, %v822
        %v824 = vadd.f32 %v752, %v823
        %v825 = vadd.f32 %v756, %v823
        %v826 = vadd.f32 %v762, %v823
        %v827 = vadd.f32 %v766, %v823
        %v828 = vpack.c.bf16 %v825, %v824
        %v829 = vpack.c.bf16 %v827, %v826
        %v830 = vld [vmem:[%s468 + $0x1] sm:$0x1]
        %v831 = vlaneseq
        %v832 = vshrl.u32 %v831, 7
        %v833 = vsub.s32 0, %v832
        %v834 = vrot.slane %v830, %v833
        %v835 = vadd.f32 %v754, %v834
        %v836 = vadd.f32 %v758, %v834
        %v837 = vadd.f32 %v764, %v834
        %v838 = vadd.f32 %v768, %v834
        %v839 = vpack.c.bf16 %v836, %v835
        %v840 = vpack.c.bf16 %v838, %v837
        %v841 = vld [vmem:[%s468 + $0x2] sm:$0x1]
        %v842 = vlaneseq
        %v843 = vshrl.u32 %v842, 7
        %v844 = vsub.s32 0, %v843
        %v845 = vrot.slane %v841, %v844
        %v846 = vadd.f32 %v805, %v845
        %v847 = vadd.f32 %v808, %v845
        %v848 = vadd.f32 %v813, %v845
        %v849 = vadd.f32 %v816, %v845
        %v850 = vpack.c.bf16 %v847, %v846
        %v851 = vpack.c.bf16 %v849, %v848
        %vm852 = vcmask 261120
        %v854 = vsel %vm852, %v828, 0
        %v857 = vsel %vm852, %v829, 0
        %v860 = vsel %vm852, %v839, 0
        %v863 = vsel %vm852, %v840, 0
        %865 = vmatprep.subr.bf16.mxu0 0
        %866 = vmatpush1.bf16.xpose.msra.mxu0 %v860
        %867 = vmatprep.subr.bf16.mxu0 0
        %868 = vmatpush1.bf16.xpose.msra.mxu0 %v863
        %869 = vmatprep.subr.bf16.mxu0 0
        %870 = vmatpush1.bf16.xpose.msra.mxu0 0
        %871 = vmatprep.subr.bf16.mxu0 0
        %872 = vmatpush1.bf16.xpose.msra.mxu0 0
        %873 = vmatprep.subr.bf16.mxu0 0
        %874 = vmatpush1.bf16.xpose.msra.mxu0 0
        %875 = vmatprep.subr.bf16.mxu0 0
        %876 = vmatpush1.bf16.xpose.msra.mxu0 0
        %877 = vmatprep.subr.bf16.mxu0 0
        %878 = vmatpush1.bf16.xpose.msra.mxu0 0
        %879 = vmatprep.subr.bf16.mxu0 0
        %880 = vmatpush1.bf16.xpose.msra.mxu0 0
        %881 = vmatprep.subr.bf16.mxu0 0
        %882 = vmatpush1.bf16.xpose.msra.mxu0 0
        %883 = vmatprep.subr.bf16.mxu0 0
        %884 = vmatpush1.bf16.xpose.msra.mxu0 0
        %885 = vmatprep.subr.bf16.mxu0 0
        %886 = vmatpush1.bf16.xpose.msra.mxu0 0
        %887 = vmatprep.subr.bf16.mxu0 0
        %888 = vmatpush1.bf16.xpose.msra.mxu0 0
        %889 = vmatprep.subr.bf16.mxu0 0
        %890 = vmatpush1.bf16.xpose.msra.mxu0 0
        %891 = vmatprep.subr.bf16.mxu0 0
        %892 = vmatpush1.bf16.xpose.msra.mxu0 0
        %893 = vmatprep.subr.bf16.mxu0 0
        %894 = vmatpush1.bf16.xpose.msra.mxu0 0
        %895 = vmatprep.subr.bf16.mxu0 0
        %896 = vmatpush1.bf16.xpose.msra.mxu0 0
        %897 = vmatprep.mubr.bf16.mxu0 0
        %898 = vmatmul.mubr.bf16.gmra.mrb[0].mxu0 %v854
        %v899 = vpop.f32.mrb[0].mxu0
        %v900 = vadd.f32 0.0, %v899
        %v901 = vpop.f32.mrb[0].mxu0
        %v902 = vpop.f32.mrb[0].mxu0
        %v903 = vadd.f32 0.0, %v902
        %v904 = vpop.f32.mrb[0].mxu0
        %905 = vmatprep.mubr.bf16.mxu0 0
        %906 = vmatmul.mubr.bf16.gmra.mrb[0].mxu0 %v857
        %v907 = vpop.f32.mrb[0].mxu0
        %v908 = vadd.f32 0.0, %v907
        %v909 = vpop.f32.mrb[0].mxu0
        %v910 = vpop.f32.mrb[0].mxu0
        %v911 = vadd.f32 0.0, %v910
        %v912 = vpop.f32.mrb[0].mxu0
        %913 = vdwg.mxu0
        %v914 = vsel %vm852, %v900, -inf
        %915 = vmax.xlane.f32.xlu0 %v914
        %v916 = vpop.xlane.xlu0 %915
        %v917 = vsel %vm852, %v903, -inf
        %918 = vmax.xlane.f32.xlu0 %v917
        %v919 = vpop.xlane.xlu0 %918
        %v920 = vsel %vm852, %v908, -inf
        %921 = vmax.xlane.f32.xlu0 %v920
        %v922 = vpop.xlane.xlu0 %921
        %v923 = vsel %vm852, %v911, -inf
        %924 = vmax.xlane.f32.xlu0 %v923
        %v925 = vpop.xlane.xlu0 %924
        %v926 = vsub.f32 %v900, %v916
        %v927 = vsub.f32 %v903, %v919
        %v928 = vsub.f32 %v908, %v922
        %v929 = vsub.f32 %v911, %v925
        %v930 = vmul.f32 %v926, 1.442695
        %v931 = vpow.pop %v930
        %v932 = vmul.f32 %v927, 1.442695
        %v933 = vpow.pop %v932
        %v934 = vmul.f32 %v928, 1.442695
        %v935 = vpow.pop %v934
        %v936 = vmul.f32 %v929, 1.442695
        %v937 = vpow.pop %v936
        %v938 = vsel %vm852, %v931, 0.0
        %939 = vadd.xlane.f32.xlu0 %v938
        %v940 = vpop.xlane.xlu0 %939
        %v941 = vsel %vm852, %v933, 0.0
        %942 = vadd.xlane.f32.xlu0 %v941
        %v943 = vpop.xlane.xlu0 %942
        %v944 = vsel %vm852, %v935, 0.0
        %945 = vadd.xlane.f32.xlu0 %v944
        %v946 = vpop.xlane.xlu0 %945
        %v947 = vsel %vm852, %v937, 0.0
        %948 = vadd.xlane.f32.xlu0 %v947
        %v949 = vpop.xlane.xlu0 %948
        %v950 = vpack.c.bf16 %v933, %v931
        %v951 = vpack.c.bf16 %v937, %v935
        %v953 = vsel %vm852, %v950, 0
        %v956 = vsel %vm852, %v951, 0
        %958 = vmatprep.subr.bf16.mxu0 0
        %959 = vmatpush1.bf16.msra.mxu0 %v850
        %960 = vmatprep.subr.bf16.mxu0 0
        %961 = vmatpush1.bf16.msra.mxu0 %v851
        %962 = vmatprep.subr.bf16.mxu0 0
        %963 = vmatpush1.bf16.msra.mxu0 0
        %964 = vmatprep.subr.bf16.mxu0 0
        %965 = vmatpush1.bf16.msra.mxu0 0
        %966 = vmatprep.subr.bf16.mxu0 0
        %967 = vmatpush1.bf16.msra.mxu0 0
        %968 = vmatprep.subr.bf16.mxu0 0
        %969 = vmatpush1.bf16.msra.mxu0 0
        %970 = vmatprep.subr.bf16.mxu0 0
        %971 = vmatpush1.bf16.msra.mxu0 0
        %972 = vmatprep.subr.bf16.mxu0 0
        %973 = vmatpush1.bf16.msra.mxu0 0
        %974 = vmatprep.subr.bf16.mxu0 0
        %975 = vmatpush1.bf16.msra.mxu0 0
        %976 = vmatprep.subr.bf16.mxu0 0
        %977 = vmatpush1.bf16.msra.mxu0 0
        %978 = vmatprep.subr.bf16.mxu0 0
        %979 = vmatpush1.bf16.msra.mxu0 0
        %980 = vmatprep.subr.bf16.mxu0 0
        %981 = vmatpush1.bf16.msra.mxu0 0
        %982 = vmatprep.subr.bf16.mxu0 0
        %983 = vmatpush1.bf16.msra.mxu0 0
        %984 = vmatprep.subr.bf16.mxu0 0
        %985 = vmatpush1.bf16.msra.mxu0 0
        %986 = vmatprep.subr.bf16.mxu0 0
        %987 = vmatpush1.bf16.msra.mxu0 0
        %988 = vmatprep.subr.bf16.mxu0 0
        %989 = vmatpush1.bf16.msra.mxu0 0
        %990 = vmatprep.mubr.bf16.mxu0 0
        %991 = vmatmul.mubr.bf16.gmra.mrb[0].mxu0 %v953
        %v992 = vpop.f32.mrb[0].mxu0
        %v993 = vadd.f32 0.0, %v992
        %v994 = vpop.f32.mrb[0].mxu0
        %v995 = vpop.f32.mrb[0].mxu0
        %v996 = vadd.f32 0.0, %v995
        %v997 = vpop.f32.mrb[0].mxu0
        %998 = vmatprep.mubr.bf16.mxu0 0
        %999 = vmatmul.mubr.bf16.gmra.mrb[0].mxu0 %v956
        %v1000 = vpop.f32.mrb[0].mxu0
        %v1001 = vadd.f32 0.0, %v1000
        %v1002 = vpop.f32.mrb[0].mxu0
        %v1003 = vpop.f32.mrb[0].mxu0
        %v1004 = vadd.f32 0.0, %v1003
        %v1005 = vpop.f32.mrb[0].mxu0
        %1006 = vdwg.mxu0
        %v1007 = vrcp.pop %v940
        %v1008 = vrcp.pop %v943
        %v1009 = vrcp.pop %v946
        %v1010 = vrcp.pop %v949
        %v1011 = vmul.f32 %v993, %v1007
        %v1012 = vmul.f32 %v996, %v1008
        %v1013 = vmul.f32 %v1001, %v1009
        %v1014 = vmul.f32 %v1004, %v1010
        %1015 = vst.msk [vmem:[#allocation3] sm:$0xff] %vm852, %v1011
        %1016 = vst.msk [vmem:[#allocation3 + $0x8] sm:$0xff] %vm852, %v1012
        %1017 = vst.msk [vmem:[#allocation3 + $0x10] sm:$0xff] %vm852, %v1013
        %1018 = vst.msk [vmem:[#allocation3 + $0x18] sm:$0xff] %vm852, %v1014
        %1021 = vrot.lane.b32.xlu0 %v828, 96
        %v1022 = vpop.permute.xlu0 %1021
        %1023 = vrot.lane.b32.xlu0 %v829, 96
        %v1024 = vpop.permute.xlu0 %1023
        %1027 = vrot.lane.b32.xlu0 %v839, 96
        %v1028 = vpop.permute.xlu0 %1027
        %1029 = vrot.lane.b32.xlu0 %v840, 96
        %v1030 = vpop.permute.xlu0 %1029
        %v1032 = vsel %vm852, %v1022, 0
        %v1035 = vsel %vm852, %v1024, 0
        %v1038 = vsel %vm852, %v1028, 0
        %v1041 = vsel %vm852, %v1030, 0
        %1043 = vmatprep.subr.bf16.mxu0 0
        %1044 = vmatpush1.bf16.xpose.msra.mxu0 %v1038
        %1045 = vmatprep.subr.bf16.mxu0 0
        %1046 = vmatpush1.bf16.xpose.msra.mxu0 %v1041
        %1047 = vmatprep.subr.bf16.mxu0 0
        %1048 = vmatpush1.bf16.xpose.msra.mxu0 0
        %1049 = vmatprep.subr.bf16.mxu0 0
        %1050 = vmatpush1.bf16.xpose.msra.mxu0 0
        %1051 = vmatprep.subr.bf16.mxu0 0
        %1052 = vmatpush1.bf16.xpose.msra.mxu0 0
        %1053 = vmatprep.subr.bf16.mxu0 0
        %1054 = vmatpush1.bf16.xpose.msra.mxu0 0
        %1055 = vmatprep.subr.bf16.mxu0 0
        %1056 = vmatpush1.bf16.xpose.msra.mxu0 0
        %1057 = vmatprep.subr.bf16.mxu0 0
        %1058 = vmatpush1.bf16.xpose.msra.mxu0 0
        %1059 = vmatprep.subr.bf16.mxu0 0
        %1060 = vmatpush1.bf16.xpose.msra.mxu0 0
        %1061 = vmatprep.subr.bf16.mxu0 0
        %1062 = vmatpush1.bf16.xpose.msra.mxu0 0
        %1063 = vmatprep.subr.bf16.mxu0 0
        %1064 = vmatpush1.bf16.xpose.msra.mxu0 0
        %1065 = vmatprep.subr.bf16.mxu0 0
        %1066 = vmatpush1.bf16.xpose.msra.mxu0 0
        %1067 = vmatprep.subr.bf16.mxu0 0
        %1068 = vmatpush1.bf16.xpose.msra.mxu0 0
        %1069 = vmatprep.subr.bf16.mxu0 0
        %1070 = vmatpush1.bf16.xpose.msra.mxu0 0
        %1071 = vmatprep.subr.bf16.mxu0 0
        %1072 = vmatpush1.bf16.xpose.msra.mxu0 0
        %1073 = vmatprep.subr.bf16.mxu0 0
        %1074 = vmatpush1.bf16.xpose.msra.mxu0 0
        %1075 = vmatprep.mubr.bf16.mxu0 0
        %1076 = vmatmul.mubr.bf16.gmra.mrb[0].mxu0 %v1032
        %v1077 = vpop.f32.mrb[0].mxu0
        %v1078 = vadd.f32 0.0, %v1077
        %v1079 = vpop.f32.mrb[0].mxu0
        %v1080 = vpop.f32.mrb[0].mxu0
        %v1081 = vadd.f32 0.0, %v1080
        %v1082 = vpop.f32.mrb[0].mxu0
        %1083 = vmatprep.mubr.bf16.mxu0 0
        %1084 = vmatmul.mubr.bf16.gmra.mrb[0].mxu0 %v1035
        %v1085 = vpop.f32.mrb[0].mxu0
        %v1086 = vadd.f32 0.0, %v1085
        %v1087 = vpop.f32.mrb[0].mxu0
        %v1088 = vpop.f32.mrb[0].mxu0
        %v1089 = vadd.f32 0.0, %v1088
        %v1090 = vpop.f32.mrb[0].mxu0
        %1091 = vdwg.mxu0
        %v1092 = vsel %vm852, %v1078, -inf
        %1093 = vmax.xlane.f32.xlu0 %v1092
        %v1094 = vpop.xlane.xlu0 %1093
        %v1095 = vsel %vm852, %v1081, -inf
        %1096 = vmax.xlane.f32.xlu0 %v1095
        %v1097 = vpop.xlane.xlu0 %1096
        %v1098 = vsel %vm852, %v1086, -inf
        %1099 = vmax.xlane.f32.xlu0 %v1098
        %v1100 = vpop.xlane.xlu0 %1099
        %v1101 = vsel %vm852, %v1089, -inf
        %1102 = vmax.xlane.f32.xlu0 %v1101
        %v1103 = vpop.xlane.xlu0 %1102
        %v1104 = vsub.f32 %v1078, %v1094
        %v1105 = vsub.f32 %v1081, %v1097
        %v1106 = vsub.f32 %v1086, %v1100
        %v1107 = vsub.f32 %v1089, %v1103
        %v1108 = vmul.f32 %v1104, 1.442695
        %v1109 = vpow.pop %v1108
        %v1110 = vmul.f32 %v1105, 1.442695
        %v1111 = vpow.pop %v1110
        %v1112 = vmul.f32 %v1106, 1.442695
        %v1113 = vpow.pop %v1112
        %v1114 = vmul.f32 %v1107, 1.442695
        %v1115 = vpow.pop %v1114
        %v1116 = vsel %vm852, %v1109, 0.0
        %1117 = vadd.xlane.f32.xlu0 %v1116
        %v1118 = vpop.xlane.xlu0 %1117
        %v1119 = vsel %vm852, %v1111, 0.0
        %1120 = vadd.xlane.f32.xlu0 %v1119
        %v1121 = vpop.xlane.xlu0 %1120
        %v1122 = vsel %vm852, %v1113, 0.0
        %1123 = vadd.xlane.f32.xlu0 %v1122
        %v1124 = vpop.xlane.xlu0 %1123
        %v1125 = vsel %vm852, %v1115, 0.0
        %1126 = vadd.xlane.f32.xlu0 %v1125
        %v1127 = vpop.xlane.xlu0 %1126
        %v1128 = vpack.c.bf16 %v1111, %v1109
        %v1129 = vpack.c.bf16 %v1115, %v1113
        %1132 = vrot.lane.b32.xlu0 %v850, 96
        %v1133 = vpop.permute.xlu0 %1132
        %1134 = vrot.lane.b32.xlu0 %v851, 96
        %v1135 = vpop.permute.xlu0 %1134
        %v1139 = vsel %vm852, %v1128, 0
        %v1142 = vsel %vm852, %v1129, 0
        %1144 = vmatprep.subr.bf16.mxu0 0
        %1145 = vmatpush1.bf16.msra.mxu0 %v1133
        %1146 = vmatprep.subr.bf16.mxu0 0
        %1147 = vmatpush1.bf16.msra.mxu0 %v1135
        %1148 = vmatprep.subr.bf16.mxu0 0
        %1149 = vmatpush1.bf16.msra.mxu0 0
        %1150 = vmatprep.subr.bf16.mxu0 0
        %1151 = vmatpush1.bf16.msra.mxu0 0
        %1152 = vmatprep.subr.bf16.mxu0 0
        %1153 = vmatpush1.bf16.msra.mxu0 0
        %1154 = vmatprep.subr.bf16.mxu0 0
        %1155 = vmatpush1.bf16.msra.mxu0 0
        %1156 = vmatprep.subr.bf16.mxu0 0
        %1157 = vmatpush1.bf16.msra.mxu0 0
        %1158 = vmatprep.subr.bf16.mxu0 0
        %1159 = vmatpush1.bf16.msra.mxu0 0
        %1160 = vmatprep.subr.bf16.mxu0 0
        %1161 = vmatpush1.bf16.msra.mxu0 0
        %1162 = vmatprep.subr.bf16.mxu0 0
        %1163 = vmatpush1.bf16.msra.mxu0 0
        %1164 = vmatprep.subr.bf16.mxu0 0
        %1165 = vmatpush1.bf16.msra.mxu0 0
        %1166 = vmatprep.subr.bf16.mxu0 0
        %1167 = vmatpush1.bf16.msra.mxu0 0
        %1168 = vmatprep.subr.bf16.mxu0 0
        %1169 = vmatpush1.bf16.msra.mxu0 0
        %1170 = vmatprep.subr.bf16.mxu0 0
        %1171 = vmatpush1.bf16.msra.mxu0 0
        %1172 = vmatprep.subr.bf16.mxu0 0
        %1173 = vmatpush1.bf16.msra.mxu0 0
        %1174 = vmatprep.subr.bf16.mxu0 0
        %1175 = vmatpush1.bf16.msra.mxu0 0
        %1176 = vmatprep.mubr.bf16.mxu0 0
        %1177 = vmatmul.mubr.bf16.gmra.mrb[0].mxu0 %v1139
        %v1178 = vpop.f32.mrb[0].mxu0
        %v1179 = vadd.f32 0.0, %v1178
        %v1180 = vpop.f32.mrb[0].mxu0
        %v1181 = vpop.f32.mrb[0].mxu0
        %v1182 = vadd.f32 0.0, %v1181
        %v1183 = vpop.f32.mrb[0].mxu0
        %1184 = vmatprep.mubr.bf16.mxu0 0
        %1185 = vmatmul.mubr.bf16.gmra.mrb[0].mxu0 %v1142
        %v1186 = vpop.f32.mrb[0].mxu0
        %v1187 = vadd.f32 0.0, %v1186
        %v1188 = vpop.f32.mrb[0].mxu0
        %v1189 = vpop.f32.mrb[0].mxu0
        %v1190 = vadd.f32 0.0, %v1189
        %v1191 = vpop.f32.mrb[0].mxu0
        %1192 = vdwg.mxu0
        %v1193 = vrcp.pop %v1118
        %v1194 = vrcp.pop %v1121
        %v1195 = vrcp.pop %v1124
        %v1196 = vrcp.pop %v1127
        %v1197 = vmul.f32 %v1179, %v1193
        %v1198 = vmul.f32 %v1182, %v1194
        %v1199 = vmul.f32 %v1187, %v1195
        %v1200 = vmul.f32 %v1190, %v1196
        %1205 = vrot.lane.b32.xlu0 %v1197, 32
        %v1206 = vpop.permute.xlu0 %1205
        %1207 = vrot.lane.b32.xlu0 %v1198, 32
        %v1208 = vpop.permute.xlu0 %1207
        %1209 = vrot.lane.b32.xlu0 %v1199, 32
        %v1210 = vpop.permute.xlu0 %1209
        %1211 = vrot.lane.b32.xlu0 %v1200, 32
        %v1212 = vpop.permute.xlu0 %1211
        %vm1217 = vcmask 523520
        %1218 = vst.msk [vmem:[#allocation3] sm:$0xff] %vm1217, %v1206
        %1219 = vst.msk [vmem:[#allocation3 + $0x8] sm:$0xff] %vm1217, %v1208
        %1220 = vst.msk [vmem:[#allocation3 + $0x10] sm:$0xff] %vm1217, %v1210
        %1221 = vst.msk [vmem:[#allocation3 + $0x18] sm:$0xff] %vm1217, %v1212
        %1222 = vrot.lane.b32.xlu0 %v828, 64
        %v1223 = vpop.permute.xlu0 %1222
        %1224 = vrot.lane.b32.xlu0 %v829, 64
        %v1225 = vpop.permute.xlu0 %1224
        %1226 = vrot.lane.b32.xlu0 %v839, 64
        %v1227 = vpop.permute.xlu0 %1226
        %1228 = vrot.lane.b32.xlu0 %v840, 64
        %v1229 = vpop.permute.xlu0 %1228
        %v1231 = vsel %vm852, %v1223, 0
        %v1234 = vsel %vm852, %v1225, 0
        %v1237 = vsel %vm852, %v1227, 0
        %v1240 = vsel %vm852, %v1229, 0
        %1242 = vmatprep.subr.bf16.mxu0 0
        %1243 = vmatpush1.bf16.xpose.msra.mxu0 %v1237
        %1244 = vmatprep.subr.bf16.mxu0 0
        %1245 = vmatpush1.bf16.xpose.msra.mxu0 %v1240
        %1246 = vmatprep.subr.bf16.mxu0 0
        %1247 = vmatpush1.bf16.xpose.msra.mxu0 0
        %1248 = vmatprep.subr.bf16.mxu0 0
        %1249 = vmatpush1.bf16.xpose.msra.mxu0 0
        %1250 = vmatprep.subr.bf16.mxu0 0
        %1251 = vmatpush1.bf16.xpose.msra.mxu0 0
        %1252 = vmatprep.subr.bf16.mxu0 0
        %1253 = vmatpush1.bf16.xpose.msra.mxu0 0
        %1254 = vmatprep.subr.bf16.mxu0 0
        %1255 = vmatpush1.bf16.xpose.msra.mxu0 0
        %1256 = vmatprep.subr.bf16.mxu0 0
        %1257 = vmatpush1.bf16.xpose.msra.mxu0 0
        %1258 = vmatprep.subr.bf16.mxu0 0
        %1259 = vmatpush1.bf16.xpose.msra.mxu0 0
        %1260 = vmatprep.subr.bf16.mxu0 0
        %1261 = vmatpush1.bf16.xpose.msra.mxu0 0
        %1262 = vmatprep.subr.bf16.mxu0 0
        %1263 = vmatpush1.bf16.xpose.msra.mxu0 0
        %1264 = vmatprep.subr.bf16.mxu0 0
        %1265 = vmatpush1.bf16.xpose.msra.mxu0 0
        %1266 = vmatprep.subr.bf16.mxu0 0
        %1267 = vmatpush1.bf16.xpose.msra.mxu0 0
        %1268 = vmatprep.subr.bf16.mxu0 0
        %1269 = vmatpush1.bf16.xpose.msra.mxu0 0
        %1270 = vmatprep.subr.bf16.mxu0 0
        %1271 = vmatpush1.bf16.xpose.msra.mxu0 0
        %1272 = vmatprep.subr.bf16.mxu0 0
        %1273 = vmatpush1.bf16.xpose.msra.mxu0 0
        %1274 = vmatprep.mubr.bf16.mxu0 0
        %1275 = vmatmul.mubr.bf16.gmra.mrb[0].mxu0 %v1231
        %v1276 = vpop.f32.mrb[0].mxu0
        %v1277 = vadd.f32 0.0, %v1276
        %v1278 = vpop.f32.mrb[0].mxu0
        %v1279 = vpop.f32.mrb[0].mxu0
        %v1280 = vadd.f32 0.0, %v1279
        %v1281 = vpop.f32.mrb[0].mxu0
        %1282 = vmatprep.mubr.bf16.mxu0 0
        %1283 = vmatmul.mubr.bf16.gmra.mrb[0].mxu0 %v1234
        %v1284 = vpop.f32.mrb[0].mxu0
        %v1285 = vadd.f32 0.0, %v1284
        %v1286 = vpop.f32.mrb[0].mxu0
        %v1287 = vpop.f32.mrb[0].mxu0
        %v1288 = vadd.f32 0.0, %v1287
        %v1289 = vpop.f32.mrb[0].mxu0
        %1290 = vdwg.mxu0
        %v1291 = vsel %vm852, %v1277, -inf
        %1292 = vmax.xlane.f32.xlu0 %v1291
        %v1293 = vpop.xlane.xlu0 %1292
        %v1294 = vsel %vm852, %v1280, -inf
        %1295 = vmax.xlane.f32.xlu0 %v1294
        %v1296 = vpop.xlane.xlu0 %1295
        %v1297 = vsel %vm852, %v1285, -inf
        %1298 = vmax.xlane.f32.xlu0 %v1297
        %v1299 = vpop.xlane.xlu0 %1298
        %v1300 = vsel %vm852, %v1288, -inf
        %1301 = vmax.xlane.f32.xlu0 %v1300
        %v1302 = vpop.xlane.xlu0 %1301
        %v1303 = vsub.f32 %v1277, %v1293
        %v1304 = vsub.f32 %v1280, %v1296
        %v1305 = vsub.f32 %v1285, %v1299
        %v1306 = vsub.f32 %v1288, %v1302
        %v1307 = vmul.f32 %v1303, 1.442695
        %v1308 = vpow.pop %v1307
        %v1309 = vmul.f32 %v1304, 1.442695
        %v1310 = vpow.pop %v1309
        %v1311 = vmul.f32 %v1305, 1.442695
        %v1312 = vpow.pop %v1311
        %v1313 = vmul.f32 %v1306, 1.442695
        %v1314 = vpow.pop %v1313
        %v1315 = vsel %vm852, %v1308, 0.0
        %1316 = vadd.xlane.f32.xlu0 %v1315
        %v1317 = vpop.xlane.xlu0 %1316
        %v1318 = vsel %vm852, %v1310, 0.0
        %1319 = vadd.xlane.f32.xlu0 %v1318
        %v1320 = vpop.xlane.xlu0 %1319
        %v1321 = vsel %vm852, %v1312, 0.0
        %1322 = vadd.xlane.f32.xlu0 %v1321
        %v1323 = vpop.xlane.xlu0 %1322
        %v1324 = vsel %vm852, %v1314, 0.0
        %1325 = vadd.xlane.f32.xlu0 %v1324
        %v1326 = vpop.xlane.xlu0 %1325
        %v1327 = vpack.c.bf16 %v1310, %v1308
        %v1328 = vpack.c.bf16 %v1314, %v1312
        %1329 = vrot.lane.b32.xlu0 %v850, 64
        %v1330 = vpop.permute.xlu0 %1329
        %1331 = vrot.lane.b32.xlu0 %v851, 64
        %v1332 = vpop.permute.xlu0 %1331
        %v1336 = vsel %vm852, %v1327, 0
        %v1339 = vsel %vm852, %v1328, 0
        %1341 = vmatprep.subr.bf16.mxu0 0
        %1342 = vmatpush1.bf16.msra.mxu0 %v1330
        %1343 = vmatprep.subr.bf16.mxu0 0
        %1344 = vmatpush1.bf16.msra.mxu0 %v1332
        %1345 = vmatprep.subr.bf16.mxu0 0
        %1346 = vmatpush1.bf16.msra.mxu0 0
        %1347 = vmatprep.subr.bf16.mxu0 0
        %1348 = vmatpush1.bf16.msra.mxu0 0
        %1349 = vmatprep.subr.bf16.mxu0 0
        %1350 = vmatpush1.bf16.msra.mxu0 0
        %1351 = vmatprep.subr.bf16.mxu0 0
        %1352 = vmatpush1.bf16.msra.mxu0 0
        %1353 = vmatprep.subr.bf16.mxu0 0
        %1354 = vmatpush1.bf16.msra.mxu0 0
        %1355 = vmatprep.subr.bf16.mxu0 0
        %1356 = vmatpush1.bf16.msra.mxu0 0
        %1357 = vmatprep.subr.bf16.mxu0 0
        %1358 = vmatpush1.bf16.msra.mxu0 0
        %1359 = vmatprep.subr.bf16.mxu0 0
        %1360 = vmatpush1.bf16.msra.mxu0 0
        %1361 = vmatprep.subr.bf16.mxu0 0
        %1362 = vmatpush1.bf16.msra.mxu0 0
        %1363 = vmatprep.subr.bf16.mxu0 0
        %1364 = vmatpush1.bf16.msra.mxu0 0
        %1365 = vmatprep.subr.bf16.mxu0 0
        %1366 = vmatpush1.bf16.msra.mxu0 0
        %1367 = vmatprep.subr.bf16.mxu0 0
        %1368 = vmatpush1.bf16.msra.mxu0 0
        %1369 = vmatprep.subr.bf16.mxu0 0
        %1370 = vmatpush1.bf16.msra.mxu0 0
        %1371 = vmatprep.subr.bf16.mxu0 0
        %1372 = vmatpush1.bf16.msra.mxu0 0
        %1373 = vmatprep.mubr.bf16.mxu0 0
        %1374 = vmatmul.mubr.bf16.gmra.mrb[0].mxu0 %v1336
        %v1375 = vpop.f32.mrb[0].mxu0
        %v1376 = vadd.f32 0.0, %v1375
        %v1377 = vpop.f32.mrb[0].mxu0
        %v1378 = vpop.f32.mrb[0].mxu0
        %v1379 = vadd.f32 0.0, %v1378
        %v1380 = vpop.f32.mrb[0].mxu0
        %1381 = vmatprep.mubr.bf16.mxu0 0
        %1382 = vmatmul.mubr.bf16.gmra.mrb[0].mxu0 %v1339
        %v1383 = vpop.f32.mrb[0].mxu0
        %v1384 = vadd.f32 0.0, %v1383
        %v1385 = vpop.f32.mrb[0].mxu0
        %v1386 = vpop.f32.mrb[0].mxu0
        %v1387 = vadd.f32 0.0, %v1386
        %v1388 = vpop.f32.mrb[0].mxu0
        %1389 = vdwg.mxu0
        %v1390 = vrcp.pop %v1317
        %v1391 = vrcp.pop %v1320
        %v1392 = vrcp.pop %v1323
        %v1393 = vrcp.pop %v1326
        %v1394 = vmul.f32 %v1376, %v1390
        %v1395 = vmul.f32 %v1379, %v1391
        %v1396 = vmul.f32 %v1384, %v1392
        %v1397 = vmul.f32 %v1387, %v1393
        %1402 = vrot.lane.b32.xlu0 %v1394, 64
        %v1403 = vpop.permute.xlu0 %1402
        %1404 = vrot.lane.b32.xlu0 %v1395, 64
        %v1405 = vpop.permute.xlu0 %1404
        %1406 = vrot.lane.b32.xlu0 %v1396, 64
        %v1407 = vpop.permute.xlu0 %1406
        %1408 = vrot.lane.b32.xlu0 %v1397, 64
        %v1409 = vpop.permute.xlu0 %1408
        %vm1414 = vcmask 785920
        %1415 = vst.msk [vmem:[#allocation3] sm:$0xff] %vm1414, %v1403
        %1416 = vst.msk [vmem:[#allocation3 + $0x8] sm:$0xff] %vm1414, %v1405
        %1417 = vst.msk [vmem:[#allocation3 + $0x10] sm:$0xff] %vm1414, %v1407
        %1418 = vst.msk [vmem:[#allocation3 + $0x18] sm:$0xff] %vm1414, %v1409
        %1419 = vrot.lane.b32.xlu0 %v828, 32
        %v1420 = vpop.permute.xlu0 %1419
        %1421 = vrot.lane.b32.xlu0 %v829, 32
        %v1422 = vpop.permute.xlu0 %1421
        %1423 = vrot.lane.b32.xlu0 %v839, 32
        %v1424 = vpop.permute.xlu0 %1423
        %1425 = vrot.lane.b32.xlu0 %v840, 32
        %v1426 = vpop.permute.xlu0 %1425
        %v1428 = vsel %vm852, %v1420, 0
        %v1431 = vsel %vm852, %v1422, 0
        %v1434 = vsel %vm852, %v1424, 0
        %v1437 = vsel %vm852, %v1426, 0
        %1439 = vmatprep.subr.bf16.mxu0 0
        %1440 = vmatpush1.bf16.xpose.msra.mxu0 %v1434
        %1441 = vmatprep.subr.bf16.mxu0 0
        %1442 = vmatpush1.bf16.xpose.msra.mxu0 %v1437
        %1443 = vmatprep.subr.bf16.mxu0 0
        %1444 = vmatpush1.bf16.xpose.msra.mxu0 0
        %1445 = vmatprep.subr.bf16.mxu0 0
        %1446 = vmatpush1.bf16.xpose.msra.mxu0 0
        %1447 = vmatprep.subr.bf16.mxu0 0
        %1448 = vmatpush1.bf16.xpose.msra.mxu0 0
        %1449 = vmatprep.subr.bf16.mxu0 0
        %1450 = vmatpush1.bf16.xpose.msra.mxu0 0
        %1451 = vmatprep.subr.bf16.mxu0 0
        %1452 = vmatpush1.bf16.xpose.msra.mxu0 0
        %1453 = vmatprep.subr.bf16.mxu0 0
        %1454 = vmatpush1.bf16.xpose.msra.mxu0 0
        %1455 = vmatprep.subr.bf16.mxu0 0
        %1456 = vmatpush1.bf16.xpose.msra.mxu0 0
        %1457 = vmatprep.subr.bf16.mxu0 0
        %1458 = vmatpush1.bf16.xpose.msra.mxu0 0
        %1459 = vmatprep.subr.bf16.mxu0 0
        %1460 = vmatpush1.bf16.xpose.msra.mxu0 0
        %1461 = vmatprep.subr.bf16.mxu0 0
        %1462 = vmatpush1.bf16.xpose.msra.mxu0 0
        %1463 = vmatprep.subr.bf16.mxu0 0
        %1464 = vmatpush1.bf16.xpose.msra.mxu0 0
        %1465 = vmatprep.subr.bf16.mxu0 0
        %1466 = vmatpush1.bf16.xpose.msra.mxu0 0
        %1467 = vmatprep.subr.bf16.mxu0 0
        %1468 = vmatpush1.bf16.xpose.msra.mxu0 0
        %1469 = vmatprep.subr.bf16.mxu0 0
        %1470 = vmatpush1.bf16.xpose.msra.mxu0 0
        %1471 = vmatprep.mubr.bf16.mxu0 0
        %1472 = vmatmul.mubr.bf16.gmra.mrb[0].mxu0 %v1428
        %v1473 = vpop.f32.mrb[0].mxu0
        %v1474 = vadd.f32 0.0, %v1473
        %v1475 = vpop.f32.mrb[0].mxu0
        %v1476 = vpop.f32.mrb[0].mxu0
        %v1477 = vadd.f32 0.0, %v1476
        %v1478 = vpop.f32.mrb[0].mxu0
        %1479 = vmatprep.mubr.bf16.mxu0 0
        %1480 = vmatmul.mubr.bf16.gmra.mrb[0].mxu0 %v1431
        %v1481 = vpop.f32.mrb[0].mxu0
        %v1482 = vadd.f32 0.0, %v1481
        %v1483 = vpop.f32.mrb[0].mxu0
        %v1484 = vpop.f32.mrb[0].mxu0
        %v1485 = vadd.f32 0.0, %v1484
        %v1486 = vpop.f32.mrb[0].mxu0
        %1487 = vdwg.mxu0
        %v1488 = vsel %vm852, %v1474, -inf
        %1489 = vmax.xlane.f32.xlu0 %v1488
        %v1490 = vpop.xlane.xlu0 %1489
        %v1491 = vsel %vm852, %v1477, -inf
        %1492 = vmax.xlane.f32.xlu0 %v1491
        %v1493 = vpop.xlane.xlu0 %1492
        %v1494 = vsel %vm852, %v1482, -inf
        %1495 = vmax.xlane.f32.xlu0 %v1494
        %v1496 = vpop.xlane.xlu0 %1495
        %v1497 = vsel %vm852, %v1485, -inf
        %1498 = vmax.xlane.f32.xlu0 %v1497
        %v1499 = vpop.xlane.xlu0 %1498
        %v1500 = vsub.f32 %v1474, %v1490
        %v1501 = vsub.f32 %v1477, %v1493
        %v1502 = vsub.f32 %v1482, %v1496
        %v1503 = vsub.f32 %v1485, %v1499
        %v1504 = vmul.f32 %v1500, 1.442695
        %v1505 = vpow.pop %v1504
        %v1506 = vmul.f32 %v1501, 1.442695
        %v1507 = vpow.pop %v1506
        %v1508 = vmul.f32 %v1502, 1.442695
        %v1509 = vpow.pop %v1508
        %v1510 = vmul.f32 %v1503, 1.442695
        %v1511 = vpow.pop %v1510
        %v1512 = vsel %vm852, %v1505, 0.0
        %1513 = vadd.xlane.f32.xlu0 %v1512
        %v1514 = vpop.xlane.xlu0 %1513
        %v1515 = vsel %vm852, %v1507, 0.0
        %1516 = vadd.xlane.f32.xlu0 %v1515
        %v1517 = vpop.xlane.xlu0 %1516
        %v1518 = vsel %vm852, %v1509, 0.0
        %1519 = vadd.xlane.f32.xlu0 %v1518
        %v1520 = vpop.xlane.xlu0 %1519
        %v1521 = vsel %vm852, %v1511, 0.0
        %1522 = vadd.xlane.f32.xlu0 %v1521
        %v1523 = vpop.xlane.xlu0 %1522
        %v1524 = vpack.c.bf16 %v1507, %v1505
        %v1525 = vpack.c.bf16 %v1511, %v1509
        %1526 = vrot.lane.b32.xlu0 %v850, 32
        %v1527 = vpop.permute.xlu0 %1526
        %1528 = vrot.lane.b32.xlu0 %v851, 32
        %v1529 = vpop.permute.xlu0 %1528
        %v1533 = vsel %vm852, %v1524, 0
        %v1536 = vsel %vm852, %v1525, 0
        %1538 = vmatprep.subr.bf16.mxu0 0
        %1539 = vmatpush1.bf16.msra.mxu0 %v1527
        %1540 = vmatprep.subr.bf16.mxu0 0
        %1541 = vmatpush1.bf16.msra.mxu0 %v1529
        %1542 = vmatprep.subr.bf16.mxu0 0
        %1543 = vmatpush1.bf16.msra.mxu0 0
        %1544 = vmatprep.subr.bf16.mxu0 0
        %1545 = vmatpush1.bf16.msra.mxu0 0
        %1546 = vmatprep.subr.bf16.mxu0 0
        %1547 = vmatpush1.bf16.msra.mxu0 0
        %1548 = vmatprep.subr.bf16.mxu0 0
        %1549 = vmatpush1.bf16.msra.mxu0 0
        %1550 = vmatprep.subr.bf16.mxu0 0
        %1551 = vmatpush1.bf16.msra.mxu0 0
        %1552 = vmatprep.subr.bf16.mxu0 0
        %1553 = vmatpush1.bf16.msra.mxu0 0
        %1554 = vmatprep.subr.bf16.mxu0 0
        %1555 = vmatpush1.bf16.msra.mxu0 0
        %1556 = vmatprep.subr.bf16.mxu0 0
        %1557 = vmatpush1.bf16.msra.mxu0 0
        %1558 = vmatprep.subr.bf16.mxu0 0
        %1559 = vmatpush1.bf16.msra.mxu0 0
        %1560 = vmatprep.subr.bf16.mxu0 0
        %1561 = vmatpush1.bf16.msra.mxu0 0
        %1562 = vmatprep.subr.bf16.mxu0 0
        %1563 = vmatpush1.bf16.msra.mxu0 0
        %1564 = vmatprep.subr.bf16.mxu0 0
        %1565 = vmatpush1.bf16.msra.mxu0 0
        %1566 = vmatprep.subr.bf16.mxu0 0
        %1567 = vmatpush1.bf16.msra.mxu0 0
        %1568 = vmatprep.subr.bf16.mxu0 0
        %1569 = vmatpush1.bf16.msra.mxu0 0
        %1570 = vmatprep.mubr.bf16.mxu0 0
        %1571 = vmatmul.mubr.bf16.gmra.mrb[0].mxu0 %v1533
        %v1572 = vpop.f32.mrb[0].mxu0
        %v1573 = vadd.f32 0.0, %v1572
        %v1574 = vpop.f32.mrb[0].mxu0
        %v1575 = vpop.f32.mrb[0].mxu0
        %v1576 = vadd.f32 0.0, %v1575
        %v1577 = vpop.f32.mrb[0].mxu0
        %1578 = vmatprep.mubr.bf16.mxu0 0
        %1579 = vmatmul.mubr.bf16.gmra.mrb[0].mxu0 %v1536
        %v1580 = vpop.f32.mrb[0].mxu0
        %v1581 = vadd.f32 0.0, %v1580
        %v1582 = vpop.f32.mrb[0].mxu0
        %v1583 = vpop.f32.mrb[0].mxu0
        %v1584 = vadd.f32 0.0, %v1583
        %v1585 = vpop.f32.mrb[0].mxu0
        %1586 = vdwg.mxu0
        %v1587 = vrcp.pop %v1514
        %v1588 = vrcp.pop %v1517
        %v1589 = vrcp.pop %v1520
        %v1590 = vrcp.pop %v1523
        %v1591 = vmul.f32 %v1573, %v1587
        %v1592 = vmul.f32 %v1576, %v1588
        %v1593 = vmul.f32 %v1581, %v1589
        %v1594 = vmul.f32 %v1584, %v1590
        %1599 = vrot.lane.b32.xlu0 %v1591, 96
        %v1600 = vpop.permute.xlu0 %1599
        %1601 = vrot.lane.b32.xlu0 %v1592, 96
        %v1602 = vpop.permute.xlu0 %1601
        %1603 = vrot.lane.b32.xlu0 %v1593, 96
        %v1604 = vpop.permute.xlu0 %1603
        %1605 = vrot.lane.b32.xlu0 %v1594, 96
        %v1606 = vpop.permute.xlu0 %1605
        %vm1611 = vcmask 1048320
        %1612 = vst.msk [vmem:[#allocation3] sm:$0xff] %vm1611, %v1600
        %1613 = vst.msk [vmem:[#allocation3 + $0x8] sm:$0xff] %vm1611, %v1602
        %1614 = vst.msk [vmem:[#allocation3 + $0x10] sm:$0xff] %vm1611, %v1604
        %1615 = vst.msk [vmem:[#allocation3 + $0x18] sm:$0xff] %vm1611, %v1606
        %v1616 = vld [vmem:[#allocation3] sm:$0xff]
        %v1617 = vld [vmem:[#allocation3 + $0x8] sm:$0xff]
        %v1618 = vld [vmem:[#allocation3 + $0x10] sm:$0xff]
        %v1619 = vld [vmem:[#allocation3 + $0x18] sm:$0xff]
        %v1620 = vpack.c.bf16 %v1617, %v1616
        %v1621 = vpack.c.bf16 %v1619, %v1618
        %v1622 = vld [vmem:[%s441] sm:$0xf]
        %v1623 = vld [vmem:[%s441 + $0x4] sm:$0xf]
        %v1624 = vld [vmem:[%s441 + $0x8] sm:$0xf]
        %v1625 = vld [vmem:[%s441 + $0xc] sm:$0xf]
        %v1626 = vld [vmem:[%s441 + $0x10] sm:$0xf]
        %v1627 = vld [vmem:[%s441 + $0x14] sm:$0xf]
        %v1628 = vld [vmem:[%s441 + $0x18] sm:$0xf]
        %v1629 = vld [vmem:[%s441 + $0x1c] sm:$0xf]
        %v1630 = vld [vmem:[%s441 + $0x20] sm:$0xf]
        %v1631 = vld [vmem:[%s441 + $0x24] sm:$0xf]
        %v1632 = vld [vmem:[%s441 + $0x28] sm:$0xf]
        %v1633 = vld [vmem:[%s441 + $0x2c] sm:$0xf]
        %v1634 = vld [vmem:[%s441 + $0x30] sm:$0xf]
        %v1635 = vld [vmem:[%s441 + $0x34] sm:$0xf]
        %v1636 = vld [vmem:[%s441 + $0x38] sm:$0xf]
        %v1637 = vld [vmem:[%s441 + $0x3c] sm:$0xf]
        %v1638 = vld [vmem:[%s468 + $0x3] sm:$0x1]
        %v1639 = vlaneseq
        %v1640 = vshrl.u32 %v1639, 7
        %v1641 = vsub.s32 0, %v1640
        %v1642 = vrot.slane %v1638, %v1641
        %v1659 = vunpack.c.l.b16 %v1622
        %v1660 = vunpack.c.l.b16 %v1623
        %v1661 = vunpack.c.l.b16 %v1624
        %v1662 = vunpack.c.l.b16 %v1625
        %v1663 = vunpack.c.l.b16 %v1626
        %v1664 = vunpack.c.l.b16 %v1627
        %v1665 = vunpack.c.l.b16 %v1628
        %v1666 = vunpack.c.l.b16 %v1629
        %v1667 = vunpack.c.l.b16 %v1630
        %v1668 = vunpack.c.l.b16 %v1631
        %v1669 = vunpack.c.l.b16 %v1632
        %v1670 = vunpack.c.l.b16 %v1633
        %v1671 = vunpack.c.l.b16 %v1634
        %v1672 = vunpack.c.l.b16 %v1635
        %v1673 = vunpack.c.l.b16 %v1636
        %v1674 = vunpack.c.l.b16 %v1637
        %v1675 = vpack.c.b16 %v1660, %v1659
        %v1676 = vpack.c.b16 %v1662, %v1661
        %v1677 = vpack.c.b16 %v1664, %v1663
        %v1678 = vpack.c.b16 %v1666, %v1665
        %v1679 = vpack.c.b16 %v1668, %v1667
        %v1680 = vpack.c.b16 %v1670, %v1669
        %v1681 = vpack.c.b16 %v1672, %v1671
        %v1682 = vpack.c.b16 %v1674, %v1673
        %1691 = vmatprep.subr.bf16.mxu0 0
        %1692 = vmatpush1.bf16.msra.mxu0 %v1675
        %1693 = vmatprep.subr.bf16.mxu0 0
        %1694 = vmatpush1.bf16.msra.mxu0 %v1676
        %1695 = vmatprep.subr.bf16.mxu0 0
        %1696 = vmatpush1.bf16.msra.mxu0 %v1677
        %1697 = vmatprep.subr.bf16.mxu0 0
        %1698 = vmatpush1.bf16.msra.mxu0 %v1678
        %1699 = vmatprep.subr.bf16.mxu0 0
        %1700 = vmatpush1.bf16.msra.mxu0 %v1679
        %1701 = vmatprep.subr.bf16.mxu0 0
        %1702 = vmatpush1.bf16.msra.mxu0 %v1680
        %1703 = vmatprep.subr.bf16.mxu0 0
        %1704 = vmatpush1.bf16.msra.mxu0 %v1681
        %1705 = vmatprep.subr.bf16.mxu0 0
        %1706 = vmatpush1.bf16.msra.mxu0 %v1682
        %1707 = vmatprep.subr.bf16.mxu0 0
        %1708 = vmatpush1.bf16.msra.mxu0 0
        %1709 = vmatprep.subr.bf16.mxu0 0
        %1710 = vmatpush1.bf16.msra.mxu0 0
        %1711 = vmatprep.subr.bf16.mxu0 0
        %1712 = vmatpush1.bf16.msra.mxu0 0
        %1713 = vmatprep.subr.bf16.mxu0 0
        %1714 = vmatpush1.bf16.msra.mxu0 0
        %1715 = vmatprep.subr.bf16.mxu0 0
        %1716 = vmatpush1.bf16.msra.mxu0 0
        %1717 = vmatprep.subr.bf16.mxu0 0
        %1718 = vmatpush1.bf16.msra.mxu0 0
        %1719 = vmatprep.subr.bf16.mxu0 0
        %1720 = vmatpush1.bf16.msra.mxu0 0
        %1721 = vmatprep.subr.bf16.mxu0 0
        %1722 = vmatpush1.bf16.msra.mxu0 0
        %1723 = vmatprep.mubr.bf16.mxu0 0
        %1724 = vmatmul.mubr.bf16.gmra.mrb[0].mxu0 %v1620
        %v1725 = vpop.f32.mrb[0].mxu0
        %v1726 = vadd.f32 %v1642, %v1725
        %v1727 = vpop.f32.mrb[0].mxu0
        %v1728 = vpop.f32.mrb[0].mxu0
        %v1729 = vadd.f32 %v1642, %v1728
        %v1730 = vpop.f32.mrb[0].mxu0
        %1731 = vmatprep.mubr.bf16.mxu0 0
        %1732 = vmatmul.mubr.bf16.gmra.mrb[0].mxu0 %v1621
        %v1733 = vpop.f32.mrb[0].mxu0
        %v1734 = vadd.f32 %v1642, %v1733
        %v1735 = vpop.f32.mrb[0].mxu0
        %v1736 = vpop.f32.mrb[0].mxu0
        %v1737 = vadd.f32 %v1642, %v1736
        %v1738 = vpop.f32.mrb[0].mxu0
        %1739 = vdwg.mxu0
        %v1740 = vadd.f32 %v551, %v1726
        %v1741 = vadd.f32 %v552, %v1729
        %v1742 = vadd.f32 %v553, %v1734
        %v1743 = vadd.f32 %v554, %v1737
        %v1744 = vld [vmem:[%s468 + $0x5] sm:$0x1]
        %v1745 = vld [vmem:[%s468 + $0x6] sm:$0x1]
        %1746 = vadd.xlane.f32.xlu0 %v1740
        %v1747 = vpop.xlane.xlu0 %1746
        %1748 = vadd.xlane.f32.xlu0 %v1741
        %v1749 = vpop.xlane.xlu0 %1748
        %1750 = vadd.xlane.f32.xlu0 %v1742
        %v1751 = vpop.xlane.xlu0 %1750
        %1752 = vadd.xlane.f32.xlu0 %v1743
        %v1753 = vpop.xlane.xlu0 %1752
        %v1754 = vrcp.pop 128.0
        %v1755 = vmul.f32 %v1747, %v1754
        %v1756 = vmul.f32 %v1749, %v1754
        %v1757 = vmul.f32 %v1751, %v1754
        %v1758 = vmul.f32 %v1753, %v1754
        %v1759 = vsub.f32 %v1740, %v1755
        %v1760 = vsub.f32 %v1741, %v1756
        %v1761 = vsub.f32 %v1742, %v1757
        %v1762 = vsub.f32 %v1743, %v1758
        %v1763 = vmul.f32 %v1759, %v1759
        %v1764 = vmul.f32 %v1760, %v1760
        %v1765 = vmul.f32 %v1761, %v1761
        %v1766 = vmul.f32 %v1762, %v1762
        %1767 = vadd.xlane.f32.xlu0 %v1763
        %v1768 = vpop.xlane.xlu0 %1767
        %1769 = vadd.xlane.f32.xlu0 %v1764
        %v1770 = vpop.xlane.xlu0 %1769
        %1771 = vadd.xlane.f32.xlu0 %v1765
        %v1772 = vpop.xlane.xlu0 %1771
        %1773 = vadd.xlane.f32.xlu0 %v1766
        %v1774 = vpop.xlane.xlu0 %1773
        %v1775 = vmul.f32 %v1768, %v1754
        %v1776 = vmul.f32 %v1770, %v1754
        %v1777 = vmul.f32 %v1772, %v1754
        %v1778 = vmul.f32 %v1774, %v1754
        %v1779 = vadd.f32 %v1775, 1e-05
        %v1780 = vadd.f32 %v1776, 1e-05
        %v1781 = vadd.f32 %v1777, 1e-05
        %v1782 = vadd.f32 %v1778, 1e-05
        %v1783 = vrsqrt.pop %v1779
        %v1784 = vrsqrt.pop %v1780
        %v1785 = vrsqrt.pop %v1781
        %v1786 = vrsqrt.pop %v1782
        %v1787 = vmul.f32 %v1759, %v1783
        %v1788 = vmul.f32 %v1760, %v1784
        %v1789 = vmul.f32 %v1761, %v1785
        %v1790 = vmul.f32 %v1762, %v1786
        %v1791 = vlaneseq
        %v1792 = vshrl.u32 %v1791, 7
        %v1793 = vsub.s32 0, %v1792
        %v1794 = vrot.slane %v1744, %v1793
        %v1795 = vmul.f32 %v1787, %v1794
        %v1796 = vmul.f32 %v1788, %v1794
        %v1797 = vmul.f32 %v1789, %v1794
        %v1798 = vmul.f32 %v1790, %v1794
        %v1799 = vlaneseq
        %v1800 = vshrl.u32 %v1799, 7
        %v1801 = vsub.s32 0, %v1800
        %v1802 = vrot.slane %v1745, %v1801
        %v1803 = vadd.f32 %v1795, %v1802
        %v1804 = vadd.f32 %v1796, %v1802
        %v1805 = vadd.f32 %v1797, %v1802
        %v1806 = vadd.f32 %v1798, %v1802
        %v1807 = vpack.c.bf16 %v1804, %v1803
        %v1808 = vpack.c.bf16 %v1806, %v1805
        %v1809 = vld [vmem:[%s450] sm:$0xff]
        %v1810 = vld [vmem:[%s450 + $0x8] sm:$0xff]
        %v1811 = vld [vmem:[%s450 + $0x40] sm:$0xff]
        %v1812 = vld [vmem:[%s450 + $0x48] sm:$0xff]
        %v1813 = vld [vmem:[%s450 + $0x80] sm:$0xff]
        %v1814 = vld [vmem:[%s450 + $0x88] sm:$0xff]
        %v1815 = vld [vmem:[%s450 + $0xc0] sm:$0xff]
        %v1816 = vld [vmem:[%s450 + $0xc8] sm:$0xff]
        %v1817 = vld [vmem:[%s450 + $0x100] sm:$0xff]
        %v1818 = vld [vmem:[%s450 + $0x108] sm:$0xff]
        %v1819 = vld [vmem:[%s450 + $0x140] sm:$0xff]
        %v1820 = vld [vmem:[%s450 + $0x148] sm:$0xff]
        %v1821 = vld [vmem:[%s450 + $0x180] sm:$0xff]
        %v1822 = vld [vmem:[%s450 + $0x188] sm:$0xff]
        %v1823 = vld [vmem:[%s450 + $0x1c0] sm:$0xff]
        %v1824 = vld [vmem:[%s450 + $0x1c8] sm:$0xff]
        %v1825 = vld [vmem:[%s450 + $0x200] sm:$0xff]
        %v1826 = vld [vmem:[%s450 + $0x208] sm:$0xff]
        %v1827 = vld [vmem:[%s450 + $0x240] sm:$0xff]
        %v1828 = vld [vmem:[%s450 + $0x248] sm:$0xff]
        %v1829 = vld [vmem:[%s450 + $0x280] sm:$0xff]
        %v1830 = vld [vmem:[%s450 + $0x288] sm:$0xff]
        %v1831 = vld [vmem:[%s450 + $0x2c0] sm:$0xff]
        %v1832 = vld [vmem:[%s450 + $0x2c8] sm:$0xff]
        %v1833 = vld [vmem:[%s450 + $0x300] sm:$0xff]
        %v1834 = vld [vmem:[%s450 + $0x308] sm:$0xff]
        %v1835 = vld [vmem:[%s450 + $0x340] sm:$0xff]
        %v1836 = vld [vmem:[%s450 + $0x348] sm:$0xff]
        %v1837 = vld [vmem:[%s450 + $0x380] sm:$0xff]
        %v1838 = vld [vmem:[%s450 + $0x388] sm:$0xff]
        %v1839 = vld [vmem:[%s450 + $0x3c0] sm:$0xff]
        %v1840 = vld [vmem:[%s450 + $0x3c8] sm:$0xff]
        %v1841 = vld [vmem:[%s477] sm:$0xf]
        %v1843 = vlaneseq
        %v1844 = vshrl.u32 %v1843, 7
        %v1845 = vsub.s32 0, %v1844
        %v1846 = vrot.slane %v1841, %v1845
        %v1847 = vlaneseq
        %v1848 = vshrl.u32 %v1847, 7
        %v1849 = vsub.s32 1, %v1848
        %v1850 = vrot.slane %v1841, %v1849
        %v1851 = vlaneseq
        %v1852 = vshrl.u32 %v1851, 7
        %v1853 = vsub.s32 2, %v1852
        %v1854 = vrot.slane %v1841, %v1853
        %v1855 = vlaneseq
        %v1856 = vshrl.u32 %v1855, 7
        %v1857 = vsub.s32 3, %v1856
        %v1858 = vrot.slane %v1841, %v1857
        %v1895 = vunpack.c.l.b16 %v1809
        %v1896 = vunpack.c.h.b16 %v1809
        %v1897 = vunpack.c.l.b16 %v1810
        %v1898 = vunpack.c.h.b16 %v1810
        %v1899 = vunpack.c.l.b16 %v1811
        %v1900 = vunpack.c.h.b16 %v1811
        %v1901 = vunpack.c.l.b16 %v1812
        %v1902 = vunpack.c.h.b16 %v1812
        %v1903 = vunpack.c.l.b16 %v1813
        %v1904 = vunpack.c.h.b16 %v1813
        %v1905 = vunpack.c.l.b16 %v1814
        %v1906 = vunpack.c.h.b16 %v1814
        %v1907 = vunpack.c.l.b16 %v1815
        %v1908 = vunpack.c.h.b16 %v1815
        %v1909 = vunpack.c.l.b16 %v1816
        %v1910 = vunpack.c.h.b16 %v1816
        %v1911 = vunpack.c.l.b16 %v1817
        %v1912 = vunpack.c.h.b16 %v1817
        %v1913 = vunpack.c.l.b16 %v1818
        %v1914 = vunpack.c.h.b16 %v1818
        %v1915 = vunpack.c.l.b16 %v1819
        %v1916 = vunpack.c.h.b16 %v1819
        %v1917 = vunpack.c.l.b16 %v1820
        %v1918 = vunpack.c.h.b16 %v1820
        %v1919 = vunpack.c.l.b16 %v1821
        %v1920 = vunpack.c.h.b16 %v1821
        %v1921 = vunpack.c.l.b16 %v1822
        %v1922 = vunpack.c.h.b16 %v1822
        %v1923 = vunpack.c.l.b16 %v1823
        %v1924 = vunpack.c.h.b16 %v1823
        %v1925 = vunpack.c.l.b16 %v1824
        %v1926 = vunpack.c.h.b16 %v1824
        %v1927 = vunpack.c.l.b16 %v1825
        %v1928 = vunpack.c.h.b16 %v1825
        %v1929 = vunpack.c.l.b16 %v1826
        %v1930 = vunpack.c.h.b16 %v1826
        %v1931 = vunpack.c.l.b16 %v1827
        %v1932 = vunpack.c.h.b16 %v1827
        %v1933 = vunpack.c.l.b16 %v1828
        %v1934 = vunpack.c.h.b16 %v1828
        %v1935 = vunpack.c.l.b16 %v1829
        %v1936 = vunpack.c.h.b16 %v1829
        %v1937 = vunpack.c.l.b16 %v1830
        %v1938 = vunpack.c.h.b16 %v1830
        %v1939 = vunpack.c.l.b16 %v1831
        %v1940 = vunpack.c.h.b16 %v1831
        %v1941 = vunpack.c.l.b16 %v1832
        %v1942 = vunpack.c.h.b16 %v1832
        %v1943 = vunpack.c.l.b16 %v1833
        %v1944 = vunpack.c.h.b16 %v1833
        %v1945 = vunpack.c.l.b16 %v1834
        %v1946 = vunpack.c.h.b16 %v1834
        %v1947 = vunpack.c.l.b16 %v1835
        %v1948 = vunpack.c.h.b16 %v1835
        %v1949 = vunpack.c.l.b16 %v1836
        %v1950 = vunpack.c.h.b16 %v1836
        %v1951 = vunpack.c.l.b16 %v1837
        %v1952 = vunpack.c.h.b16 %v1837
        %v1953 = vunpack.c.l.b16 %v1838
        %v1954 = vunpack.c.h.b16 %v1838
        %v1955 = vunpack.c.l.b16 %v1839
        %v1956 = vunpack.c.h.b16 %v1839
        %v1957 = vunpack.c.l.b16 %v1840
        %v1958 = vunpack.c.h.b16 %v1840
        %v1959 = vpack.c.b16 %v1899, %v1895
        %v1960 = vpack.c.b16 %v1900, %v1896
        %v1961 = vpack.c.b16 %v1901, %v1897
        %v1962 = vpack.c.b16 %v1902, %v1898
        %v1963 = vpack.c.b16 %v1907, %v1903
        %v1964 = vpack.c.b16 %v1908, %v1904
        %v1965 = vpack.c.b16 %v1909, %v1905
        %v1966 = vpack.c.b16 %v1910, %v1906
        %v1967 = vpack.c.b16 %v1915, %v1911
        %v1968 = vpack.c.b16 %v1916, %v1912
        %v1969 = vpack.c.b16 %v1917, %v1913
        %v1970 = vpack.c.b16 %v1918, %v1914
        %v1971 = vpack.c.b16 %v1923, %v1919
        %v1972 = vpack.c.b16 %v1924, %v1920
        %v1973 = vpack.c.b16 %v1925, %v1921
        %v1974 = vpack.c.b16 %v1926, %v1922
        %v1975 = vpack.c.b16 %v1931, %v1927
        %v1976 = vpack.c.b16 %v1932, %v1928
        %v1977 = vpack.c.b16 %v1933, %v1929
        %v1978 = vpack.c.b16 %v1934, %v1930
        %v1979 = vpack.c.b16 %v1939, %v1935
        %v1980 = vpack.c.b16 %v1940, %v1936
        %v1981 = vpack.c.b16 %v1941, %v1937
        %v1982 = vpack.c.b16 %v1942, %v1938
        %v1983 = vpack.c.b16 %v1947, %v1943
        %v1984 = vpack.c.b16 %v1948, %v1944
        %v1985 = vpack.c.b16 %v1949, %v1945
        %v1986 = vpack.c.b16 %v1950, %v1946
        %v1987 = vpack.c.b16 %v1955, %v1951
        %v1988 = vpack.c.b16 %v1956, %v1952
        %v1989 = vpack.c.b16 %v1957, %v1953
        %v1990 = vpack.c.b16 %v1958, %v1954
        %2023 = vmatprep.subr.bf16.mxu0 %v1960
        %2024 = vmatpush1.bf16.msra.mxu0 %v1959
        %2025 = vmatprep.subr.bf16.mxu0 %v1964
        %2026 = vmatpush1.bf16.msra.mxu0 %v1963
        %2027 = vmatprep.subr.bf16.mxu0 %v1968
        %2028 = vmatpush1.bf16.msra.mxu0 %v1967
        %2029 = vmatprep.subr.bf16.mxu0 %v1972
        %2030 = vmatpush1.bf16.msra.mxu0 %v1971
        %2031 = vmatprep.subr.bf16.mxu0 %v1976
        %2032 = vmatpush1.bf16.msra.mxu0 %v1975
        %2033 = vmatprep.subr.bf16.mxu0 %v1980
        %2034 = vmatpush1.bf16.msra.mxu0 %v1979
        %2035 = vmatprep.subr.bf16.mxu0 %v1984
        %2036 = vmatpush1.bf16.msra.mxu0 %v1983
        %2037 = vmatprep.subr.bf16.mxu0 %v1988
        %2038 = vmatpush1.bf16.msra.mxu0 %v1987
        %2039 = vmatprep.subr.bf16.mxu0 0
        %2040 = vmatpush1.bf16.msra.mxu0 0
        %2041 = vmatprep.subr.bf16.mxu0 0
        %2042 = vmatpush1.bf16.msra.mxu0 0
        %2043 = vmatprep.subr.bf16.mxu0 0
        %2044 = vmatpush1.bf16.msra.mxu0 0
        %2045 = vmatprep.subr.bf16.mxu0 0
        %2046 = vmatpush1.bf16.msra.mxu0 0
        %2047 = vmatprep.subr.bf16.mxu0 0
        %2048 = vmatpush1.bf16.msra.mxu0 0
        %2049 = vmatprep.subr.bf16.mxu0 0
        %2050 = vmatpush1.bf16.msra.mxu0 0
        %2051 = vmatprep.subr.bf16.mxu0 0
        %2052 = vmatpush1.bf16.msra.mxu0 0
        %2053 = vmatprep.subr.bf16.mxu0 0
        %2054 = vmatpush1.bf16.msra.mxu0 0
        %2055 = vmatprep.mubr.bf16.mxu0 0
        %2056 = vmatmul.mubr.bf16.gmra.mrb[0].mxu0 %v1807
        %v2057 = vpop.f32.mrb[0].mxu0
        %v2058 = vadd.f32 %v1846, %v2057
        %v2059 = vpop.f32.mrb[0].mxu0
        %v2060 = vadd.f32 %v1850, %v2059
        %v2061 = vpop.f32.mrb[0].mxu0
        %v2062 = vadd.f32 %v1846, %v2061
        %v2063 = vpop.f32.mrb[0].mxu0
        %v2064 = vadd.f32 %v1850, %v2063
        %2065 = vmatprep.mubr.bf16.mxu0 0
        %2066 = vmatmul.mubr.bf16.gmra.mrb[0].mxu0 %v1808
        %v2067 = vpop.f32.mrb[0].mxu0
        %v2068 = vadd.f32 %v1846, %v2067
        %v2069 = vpop.f32.mrb[0].mxu0
        %v2070 = vadd.f32 %v1850, %v2069
        %v2071 = vpop.f32.mrb[0].mxu0
        %v2072 = vadd.f32 %v1846, %v2071
        %v2073 = vpop.f32.mrb[0].mxu0
        %v2074 = vadd.f32 %v1850, %v2073
        %2075 = vdwg.mxu0
        %2076 = vmatprep.subr.bf16.mxu0 %v1962
        %2077 = vmatpush1.bf16.msra.mxu0 %v1961
        %2078 = vmatprep.subr.bf16.mxu0 %v1966
        %2079 = vmatpush1.bf16.msra.mxu0 %v1965
        %2080 = vmatprep.subr.bf16.mxu0 %v1970
        %2081 = vmatpush1.bf16.msra.mxu0 %v1969
        %2082 = vmatprep.subr.bf16.mxu0 %v1974
        %2083 = vmatpush1.bf16.msra.mxu0 %v1973
        %2084 = vmatprep.subr.bf16.mxu0 %v1978
        %2085 = vmatpush1.bf16.msra.mxu0 %v1977
        %2086 = vmatprep.subr.bf16.mxu0 %v1982
        %2087 = vmatpush1.bf16.msra.mxu0 %v1981
        %2088 = vmatprep.subr.bf16.mxu0 %v1986
        %2089 = vmatpush1.bf16.msra.mxu0 %v1985
        %2090 = vmatprep.subr.bf16.mxu0 %v1990
        %2091 = vmatpush1.bf16.msra.mxu0 %v1989
        %2092 = vmatprep.subr.bf16.mxu0 0
        %2093 = vmatpush1.bf16.msra.mxu0 0
        %2094 = vmatprep.subr.bf16.mxu0 0
        %2095 = vmatpush1.bf16.msra.mxu0 0
        %2096 = vmatprep.subr.bf16.mxu0 0
        %2097 = vmatpush1.bf16.msra.mxu0 0
        %2098 = vmatprep.subr.bf16.mxu0 0
        %2099 = vmatpush1.bf16.msra.mxu0 0
        %2100 = vmatprep.subr.bf16.mxu0 0
        %2101 = vmatpush1.bf16.msra.mxu0 0
        %2102 = vmatprep.subr.bf16.mxu0 0
        %2103 = vmatpush1.bf16.msra.mxu0 0
        %2104 = vmatprep.subr.bf16.mxu0 0
        %2105 = vmatpush1.bf16.msra.mxu0 0
        %2106 = vmatprep.subr.bf16.mxu0 0
        %2107 = vmatpush1.bf16.msra.mxu0 0
        %2108 = vmatprep.mubr.bf16.mxu0 0
        %2109 = vmatmul.mubr.bf16.gmra.mrb[0].mxu0 %v1807
        %v2110 = vpop.f32.mrb[0].mxu0
        %v2111 = vadd.f32 %v1854, %v2110
        %v2112 = vpop.f32.mrb[0].mxu0
        %v2113 = vadd.f32 %v1858, %v2112
        %v2114 = vpop.f32.mrb[0].mxu0
        %v2115 = vadd.f32 %v1854, %v2114
        %v2116 = vpop.f32.mrb[0].mxu0
        %v2117 = vadd.f32 %v1858, %v2116
        %2118 = vmatprep.mubr.bf16.mxu0 0
        %2119 = vmatmul.mubr.bf16.gmra.mrb[0].mxu0 %v1808
        %v2120 = vpop.f32.mrb[0].mxu0
        %v2121 = vadd.f32 %v1854, %v2120
        %v2122 = vpop.f32.mrb[0].mxu0
        %v2123 = vadd.f32 %v1858, %v2122
        %v2124 = vpop.f32.mrb[0].mxu0
        %v2125 = vadd.f32 %v1854, %v2124
        %v2126 = vpop.f32.mrb[0].mxu0
        %v2127 = vadd.f32 %v1858, %v2126
        %2128 = vdwg.mxu0
        %v2129 = vmax.f32 %v2058, 0.0
        %v2130 = vmax.f32 %v2060, 0.0
        %v2131 = vmax.f32 %v2111, 0.0
        %v2132 = vmax.f32 %v2113, 0.0
        %v2133 = vmax.f32 %v2062, 0.0
        %v2134 = vmax.f32 %v2064, 0.0
        %v2135 = vmax.f32 %v2115, 0.0
        %v2136 = vmax.f32 %v2117, 0.0
        %v2137 = vmax.f32 %v2068, 0.0
        %v2138 = vmax.f32 %v2070, 0.0
        %v2139 = vmax.f32 %v2121, 0.0
        %v2140 = vmax.f32 %v2123, 0.0
        %v2141 = vmax.f32 %v2072, 0.0
        %v2142 = vmax.f32 %v2074, 0.0
        %v2143 = vmax.f32 %v2125, 0.0
        %v2144 = vmax.f32 %v2127, 0.0
        %v2145 = vpack.c.bf16 %v2133, %v2129
        %v2146 = vpack.c.bf16 %v2134, %v2130
        %v2147 = vpack.c.bf16 %v2135, %v2131
        %v2148 = vpack.c.bf16 %v2136, %v2132
        %v2149 = vpack.c.bf16 %v2141, %v2137
        %v2150 = vpack.c.bf16 %v2142, %v2138
        %v2151 = vpack.c.bf16 %v2143, %v2139
        %v2152 = vpack.c.bf16 %v2144, %v2140
        %v2153 = vld [vmem:[%s459] sm:$0xf]
        %v2154 = vld [vmem:[%s459 + $0x4] sm:$0xf]
        %v2155 = vld [vmem:[%s459 + $0x8] sm:$0xf]
        %v2156 = vld [vmem:[%s459 + $0xc] sm:$0xf]
        %v2157 = vld [vmem:[%s459 + $0x10] sm:$0xf]
        %v2158 = vld [vmem:[%s459 + $0x14] sm:$0xf]
        %v2159 = vld [vmem:[%s459 + $0x18] sm:$0xf]
        %v2160 = vld [vmem:[%s459 + $0x1c] sm:$0xf]
        %v2161 = vld [vmem:[%s459 + $0x20] sm:$0xf]
        %v2162 = vld [vmem:[%s459 + $0x24] sm:$0xf]
        %v2163 = vld [vmem:[%s459 + $0x28] sm:$0xf]
        %v2164 = vld [vmem:[%s459 + $0x2c] sm:$0xf]
        %v2165 = vld [vmem:[%s459 + $0x30] sm:$0xf]
        %v2166 = vld [vmem:[%s459 + $0x34] sm:$0xf]
        %v2167 = vld [vmem:[%s459 + $0x38] sm:$0xf]
        %v2168 = vld [vmem:[%s459 + $0x3c] sm:$0xf]
        %v2169 = vld [vmem:[%s459 + $0x40] sm:$0xf]
        %v2170 = vld [vmem:[%s459 + $0x44] sm:$0xf]
        %v2171 = vld [vmem:[%s459 + $0x48] sm:$0xf]
        %v2172 = vld [vmem:[%s459 + $0x4c] sm:$0xf]
        %v2173 = vld [vmem:[%s459 + $0x50] sm:$0xf]
        %v2174 = vld [vmem:[%s459 + $0x54] sm:$0xf]
        %v2175 = vld [vmem:[%s459 + $0x58] sm:$0xf]
        %v2176 = vld [vmem:[%s459 + $0x5c] sm:$0xf]
        %v2177 = vld [vmem:[%s459 + $0x60] sm:$0xf]
        %v2178 = vld [vmem:[%s459 + $0x64] sm:$0xf]
        %v2179 = vld [vmem:[%s459 + $0x68] sm:$0xf]
        %v2180 = vld [vmem:[%s459 + $0x6c] sm:$0xf]
        %v2181 = vld [vmem:[%s459 + $0x70] sm:$0xf]
        %v2182 = vld [vmem:[%s459 + $0x74] sm:$0xf]
        %v2183 = vld [vmem:[%s459 + $0x78] sm:$0xf]
        %v2184 = vld [vmem:[%s459 + $0x7c] sm:$0xf]
        %v2185 = vld [vmem:[%s459 + $0x80] sm:$0xf]
        %v2186 = vld [vmem:[%s459 + $0x84] sm:$0xf]
        %v2187 = vld [vmem:[%s459 + $0x88] sm:$0xf]
        %v2188 = vld [vmem:[%s459 + $0x8c] sm:$0xf]
        %v2189 = vld [vmem:[%s459 + $0x90] sm:$0xf]
        %v2190 = vld [vmem:[%s459 + $0x94] sm:$0xf]
        %v2191 = vld [vmem:[%s459 + $0x98] sm:$0xf]
        %v2192 = vld [vmem:[%s459 + $0x9c] sm:$0xf]
        %v2193 = vld [vmem:[%s459 + $0xa0] sm:$0xf]
        %v2194 = vld [vmem:[%s459 + $0xa4] sm:$0xf]
        %v2195 = vld [vmem:[%s459 + $0xa8] sm:$0xf]
        %v2196 = vld [vmem:[%s459 + $0xac] sm:$0xf]
        %v2197 = vld [vmem:[%s459 + $0xb0] sm:$0xf]
        %v2198 = vld [vmem:[%s459 + $0xb4] sm:$0xf]
        %v2199 = vld [vmem:[%s459 + $0xb8] sm:$0xf]
        %v2200 = vld [vmem:[%s459 + $0xbc] sm:$0xf]
        %v2201 = vld [vmem:[%s459 + $0xc0] sm:$0xf]
        %v2202 = vld [vmem:[%s459 + $0xc4] sm:$0xf]
        %v2203 = vld [vmem:[%s459 + $0xc8] sm:$0xf]
        %v2204 = vld [vmem:[%s459 + $0xcc] sm:$0xf]
        %v2205 = vld [vmem:[%s459 + $0xd0] sm:$0xf]
        %v2206 = vld [vmem:[%s459 + $0xd4] sm:$0xf]
        %v2207 = vld [vmem:[%s459 + $0xd8] sm:$0xf]
        %v2208 = vld [vmem:[%s459 + $0xdc] sm:$0xf]
        %v2209 = vld [vmem:[%s459 + $0xe0] sm:$0xf]
        %v2210 = vld [vmem:[%s459 + $0xe4] sm:$0xf]
        %v2211 = vld [vmem:[%s459 + $0xe8] sm:$0xf]
        %v2212 = vld [vmem:[%s459 + $0xec] sm:$0xf]
        %v2213 = vld [vmem:[%s459 + $0xf0] sm:$0xf]
        %v2214 = vld [vmem:[%s459 + $0xf4] sm:$0xf]
        %v2215 = vld [vmem:[%s459 + $0xf8] sm:$0xf]
        %v2216 = vld [vmem:[%s459 + $0xfc] sm:$0xf]
        %v2217 = vld [vmem:[%s450 + $0x10] sm:$0xff]
        %v2218 = vld [vmem:[%s450 + $0x18] sm:$0xff]
        %v2219 = vld [vmem:[%s450 + $0x50] sm:$0xff]
        %v2220 = vld [vmem:[%s450 + $0x58] sm:$0xff]
        %v2221 = vld [vmem:[%s450 + $0x90] sm:$0xff]
        %v2222 = vld [vmem:[%s450 + $0x98] sm:$0xff]
        %v2223 = vld [vmem:[%s450 + $0xd0] sm:$0xff]
        %v2224 = vld [vmem:[%s450 + $0xd8] sm:$0xff]
        %v2225 = vld [vmem:[%s450 + $0x110] sm:$0xff]
        %v2226 = vld [vmem:[%s450 + $0x118] sm:$0xff]
        %v2227 = vld [vmem:[%s450 + $0x150] sm:$0xff]
        %v2228 = vld [vmem:[%s450 + $0x158] sm:$0xff]
        %v2229 = vld [vmem:[%s450 + $0x190] sm:$0xff]
        %v2230 = vld [vmem:[%s450 + $0x198] sm:$0xff]
        %v2231 = vld [vmem:[%s450 + $0x1d0] sm:$0xff]
        %v2232 = vld [vmem:[%s450 + $0x1d8] sm:$0xff]
        %v2233 = vld [vmem:[%s450 + $0x210] sm:$0xff]
        %v2234 = vld [vmem:[%s450 + $0x218] sm:$0xff]
        %v2235 = vld [vmem:[%s450 + $0x250] sm:$0xff]
        %v2236 = vld [vmem:[%s450 + $0x258] sm:$0xff]
        %v2237 = vld [vmem:[%s450 + $0x290] sm:$0xff]
        %v2238 = vld [vmem:[%s450 + $0x298] sm:$0xff]
        %v2239 = vld [vmem:[%s450 + $0x2d0] sm:$0xff]
        %v2240 = vld [vmem:[%s450 + $0x2d8] sm:$0xff]
        %v2241 = vld [vmem:[%s450 + $0x310] sm:$0xff]
        %v2242 = vld [vmem:[%s450 + $0x318] sm:$0xff]
        %v2243 = vld [vmem:[%s450 + $0x350] sm:$0xff]
        %v2244 = vld [vmem:[%s450 + $0x358] sm:$0xff]
        %v2245 = vld [vmem:[%s450 + $0x390] sm:$0xff]
        %v2246 = vld [vmem:[%s450 + $0x398] sm:$0xff]
        %v2247 = vld [vmem:[%s450 + $0x3d0] sm:$0xff]
        %v2248 = vld [vmem:[%s450 + $0x3d8] sm:$0xff]
        %v2249 = vld [vmem:[%s477 + $0x4] sm:$0xf]
        %v2251 = vlaneseq
        %v2252 = vshrl.u32 %v2251, 7
        %v2253 = vsub.s32 0, %v2252
        %v2254 = vrot.slane %v2249, %v2253
        %v2255 = vlaneseq
        %v2256 = vshrl.u32 %v2255, 7
        %v2257 = vsub.s32 1, %v2256
        %v2258 = vrot.slane %v2249, %v2257
        %v2259 = vlaneseq
        %v2260 = vshrl.u32 %v2259, 7
        %v2261 = vsub.s32 2, %v2260
        %v2262 = vrot.slane %v2249, %v2261
        %v2263 = vlaneseq
        %v2264 = vshrl.u32 %v2263, 7
        %v2265 = vsub.s32 3, %v2264
        %v2266 = vrot.slane %v2249, %v2265
        %v2303 = vunpack.c.l.b16 %v2217
        %v2304 = vunpack.c.h.b16 %v2217
        %v2305 = vunpack.c.l.b16 %v2218
        %v2306 = vunpack.c.h.b16 %v2218
        %v2307 = vunpack.c.l.b16 %v2219
        %v2308 = vunpack.c.h.b16 %v2219
        %v2309 = vunpack.c.l.b16 %v2220
        %v2310 = vunpack.c.h.b16 %v2220
        %v2311 = vunpack.c.l.b16 %v2221
        %v2312 = vunpack.c.h.b16 %v2221
        %v2313 = vunpack.c.l.b16 %v2222
        %v2314 = vunpack.c.h.b16 %v2222
        %v2315 = vunpack.c.l.b16 %v2223
        %v2316 = vunpack.c.h.b16 %v2223
        %v2317 = vunpack.c.l.b16 %v2224
        %v2318 = vunpack.c.h.b16 %v2224
        %v2319 = vunpack.c.l.b16 %v2225
        %v2320 = vunpack.c.h.b16 %v2225
        %v2321 = vunpack.c.l.b16 %v2226
        %v2322 = vunpack.c.h.b16 %v2226
        %v2323 = vunpack.c.l.b16 %v2227
        %v2324 = vunpack.c.h.b16 %v2227
        %v2325 = vunpack.c.l.b16 %v2228
        %v2326 = vunpack.c.h.b16 %v2228
        %v2327 = vunpack.c.l.b16 %v2229
        %v2328 = vunpack.c.h.b16 %v2229
        %v2329 = vunpack.c.l.b16 %v2230
        %v2330 = vunpack.c.h.b16 %v2230
        %v2331 = vunpack.c.l.b16 %v2231
        %v2332 = vunpack.c.h.b16 %v2231
        %v2333 = vunpack.c.l.b16 %v2232
        %v2334 = vunpack.c.h.b16 %v2232
        %v2335 = vunpack.c.l.b16 %v2233
        %v2336 = vunpack.c.h.b16 %v2233
        %v2337 = vunpack.c.l.b16 %v2234
        %v2338 = vunpack.c.h.b16 %v2234
        %v2339 = vunpack.c.l.b16 %v2235
        %v2340 = vunpack.c.h.b16 %v2235
        %v2341 = vunpack.c.l.b16 %v2236
        %v2342 = vunpack.c.h.b16 %v2236
        %v2343 = vunpack.c.l.b16 %v2237
        %v2344 = vunpack.c.h.b16 %v2237
        %v2345 = vunpack.c.l.b16 %v2238
        %v2346 = vunpack.c.h.b16 %v2238
        %v2347 = vunpack.c.l.b16 %v2239
        %v2348 = vunpack.c.h.b16 %v2239
        %v2349 = vunpack.c.l.b16 %v2240
        %v2350 = vunpack.c.h.b16 %v2240
        %v2351 = vunpack.c.l.b16 %v2241
        %v2352 = vunpack.c.h.b16 %v2241
        %v2353 = vunpack.c.l.b16 %v2242
        %v2354 = vunpack.c.h.b16 %v2242
        %v2355 = vunpack.c.l.b16 %v2243
        %v2356 = vunpack.c.h.b16 %v2243
        %v2357 = vunpack.c.l.b16 %v2244
        %v2358 = vunpack.c.h.b16 %v2244
        %v2359 = vunpack.c.l.b16 %v2245
        %v2360 = vunpack.c.h.b16 %v2245
        %v2361 = vunpack.c.l.b16 %v2246
        %v2362 = vunpack.c.h.b16 %v2246
        %v2363 = vunpack.c.l.b16 %v2247
        %v2364 = vunpack.c.h.b16 %v2247
        %v2365 = vunpack.c.l.b16 %v2248
        %v2366 = vunpack.c.h.b16 %v2248
        %v2367 = vpack.c.b16 %v2307, %v2303
        %v2368 = vpack.c.b16 %v2308, %v2304
        %v2369 = vpack.c.b16 %v2309, %v2305
        %v2370 = vpack.c.b16 %v2310, %v2306
        %v2371 = vpack.c.b16 %v2315, %v2311
        %v2372 = vpack.c.b16 %v2316, %v2312
        %v2373 = vpack.c.b16 %v2317, %v2313
        %v2374 = vpack.c.b16 %v2318, %v2314
        %v2375 = vpack.c.b16 %v2323, %v2319
        %v2376 = vpack.c.b16 %v2324, %v2320
        %v2377 = vpack.c.b16 %v2325, %v2321
        %v2378 = vpack.c.b16 %v2326, %v2322
        %v2379 = vpack.c.b16 %v2331, %v2327
        %v2380 = vpack.c.b16 %v2332, %v2328
        %v2381 = vpack.c.b16 %v2333, %v2329
        %v2382 = vpack.c.b16 %v2334, %v2330
        %v2383 = vpack.c.b16 %v2339, %v2335
        %v2384 = vpack.c.b16 %v2340, %v2336
        %v2385 = vpack.c.b16 %v2341, %v2337
        %v2386 = vpack.c.b16 %v2342, %v2338
        %v2387 = vpack.c.b16 %v2347, %v2343
        %v2388 = vpack.c.b16 %v2348, %v2344
        %v2389 = vpack.c.b16 %v2349, %v2345
        %v2390 = vpack.c.b16 %v2350, %v2346
        %v2391 = vpack.c.b16 %v2355, %v2351
        %v2392 = vpack.c.b16 %v2356, %v2352
        %v2393 = vpack.c.b16 %v2357, %v2353
        %v2394 = vpack.c.b16 %v2358, %v2354
        %v2395 = vpack.c.b16 %v2363, %v2359
        %v2396 = vpack.c.b16 %v2364, %v2360
        %v2397 = vpack.c.b16 %v2365, %v2361
        %v2398 = vpack.c.b16 %v2366, %v2362
        %2431 = vmatprep.subr.bf16.mxu0 %v2368
        %2432 = vmatpush1.bf16.msra.mxu0 %v2367
        %2433 = vmatprep.subr.bf16.mxu0 %v2372
        %2434 = vmatpush1.bf16.msra.mxu0 %v2371
        %2435 = vmatprep.subr.bf16.mxu0 %v2376
        %2436 = vmatpush1.bf16.msra.mxu0 %v2375
        %2437 = vmatprep.subr.bf16.mxu0 %v2380
        %2438 = vmatpush1.bf16.msra.mxu0 %v2379
        %2439 = vmatprep.subr.bf16.mxu0 %v2384
        %2440 = vmatpush1.bf16.msra.mxu0 %v2383
        %2441 = vmatprep.subr.bf16.mxu0 %v2388
        %2442 = vmatpush1.bf16.msra.mxu0 %v2387
        %2443 = vmatprep.subr.bf16.mxu0 %v2392
        %2444 = vmatpush1.bf16.msra.mxu0 %v2391
        %2445 = vmatprep.subr.bf16.mxu0 %v2396
        %2446 = vmatpush1.bf16.msra.mxu0 %v2395
        %2447 = vmatprep.subr.bf16.mxu0 0
        %2448 = vmatpush1.bf16.msra.mxu0 0
        %2449 = vmatprep.subr.bf16.mxu0 0
        %2450 = vmatpush1.bf16.msra.mxu0 0
        %2451 = vmatprep.subr.bf16.mxu0 0
        %2452 = vmatpush1.bf16.msra.mxu0 0
        %2453 = vmatprep.subr.bf16.mxu0 0
        %2454 = vmatpush1.bf16.msra.mxu0 0
        %2455 = vmatprep.subr.bf16.mxu0 0
        %2456 = vmatpush1.bf16.msra.mxu0 0
        %2457 = vmatprep.subr.bf16.mxu0 0
        %2458 = vmatpush1.bf16.msra.mxu0 0
        %2459 = vmatprep.subr.bf16.mxu0 0
        %2460 = vmatpush1.bf16.msra.mxu0 0
        %2461 = vmatprep.subr.bf16.mxu0 0
        %2462 = vmatpush1.bf16.msra.mxu0 0
        %2463 = vmatprep.mubr.bf16.mxu0 0
        %2464 = vmatmul.mubr.bf16.gmra.mrb[0].mxu0 %v1807
        %v2465 = vpop.f32.mrb[0].mxu0
        %v2466 = vadd.f32 %v2254, %v2465
        %v2467 = vpop.f32.mrb[0].mxu0
        %v2468 = vadd.f32 %v2258, %v2467
        %v2469 = vpop.f32.mrb[0].mxu0
        %v2470 = vadd.f32 %v2254, %v2469
        %v2471 = vpop.f32.mrb[0].mxu0
        %v2472 = vadd.f32 %v2258, %v2471
        %2473 = vmatprep.mubr.bf16.mxu0 0
        %2474 = vmatmul.mubr.bf16.gmra.mrb[0].mxu0 %v1808
        %v2475 = vpop.f32.mrb[0].mxu0
        %v2476 = vadd.f32 %v2254, %v2475
        %v2477 = vpop.f32.mrb[0].mxu0
        %v2478 = vadd.f32 %v2258, %v2477
        %v2479 = vpop.f32.mrb[0].mxu0
        %v2480 = vadd.f32 %v2254, %v2479
        %v2481 = vpop.f32.mrb[0].mxu0
        %v2482 = vadd.f32 %v2258, %v2481
        %2483 = vdwg.mxu0
        %2484 = vmatprep.subr.bf16.mxu0 %v2370
        %2485 = vmatpush1.bf16.msra.mxu0 %v2369
        %2486 = vmatprep.subr.bf16.mxu0 %v2374
        %2487 = vmatpush1.bf16.msra.mxu0 %v2373
        %2488 = vmatprep.subr.bf16.mxu0 %v2378
        %2489 = vmatpush1.bf16.msra.mxu0 %v2377
        %2490 = vmatprep.subr.bf16.mxu0 %v2382
        %2491 = vmatpush1.bf16.msra.mxu0 %v2381
        %2492 = vmatprep.subr.bf16.mxu0 %v2386
        %2493 = vmatpush1.bf16.msra.mxu0 %v2385
        %2494 = vmatprep.subr.bf16.mxu0 %v2390
        %2495 = vmatpush1.bf16.msra.mxu0 %v2389
        %2496 = vmatprep.subr.bf16.mxu0 %v2394
        %2497 = vmatpush1.bf16.msra.mxu0 %v2393
        %2498 = vmatprep.subr.bf16.mxu0 %v2398
        %2499 = vmatpush1.bf16.msra.mxu0 %v2397
        %2500 = vmatprep.subr.bf16.mxu0 0
        %2501 = vmatpush1.bf16.msra.mxu0 0
        %2502 = vmatprep.subr.bf16.mxu0 0
        %2503 = vmatpush1.bf16.msra.mxu0 0
        %2504 = vmatprep.subr.bf16.mxu0 0
        %2505 = vmatpush1.bf16.msra.mxu0 0
        %2506 = vmatprep.subr.bf16.mxu0 0
        %2507 = vmatpush1.bf16.msra.mxu0 0
        %2508 = vmatprep.subr.bf16.mxu0 0
        %2509 = vmatpush1.bf16.msra.mxu0 0
        %2510 = vmatprep.subr.bf16.mxu0 0
        %2511 = vmatpush1.bf16.msra.mxu0 0
        %2512 = vmatprep.subr.bf16.mxu0 0
        %2513 = vmatpush1.bf16.msra.mxu0 0
        %2514 = vmatprep.subr.bf16.mxu0 0
        %2515 = vmatpush1.bf16.msra.mxu0 0
        %2516 = vmatprep.mubr.bf16.mxu0 0
        %2517 = vmatmul.mubr.bf16.gmra.mrb[0].mxu0 %v1807
        %v2518 = vpop.f32.mrb[0].mxu0
        %v2519 = vadd.f32 %v2262, %v2518
        %v2520 = vpop.f32.mrb[0].mxu0
        %v2521 = vadd.f32 %v2266, %v2520
        %v2522 = vpop.f32.mrb[0].mxu0
        %v2523 = vadd.f32 %v2262, %v2522
        %v2524 = vpop.f32.mrb[0].mxu0
        %v2525 = vadd.f32 %v2266, %v2524
        %2526 = vmatprep.mubr.bf16.mxu0 0
        %2527 = vmatmul.mubr.bf16.gmra.mrb[0].mxu0 %v1808
        %v2528 = vpop.f32.mrb[0].mxu0
        %v2529 = vadd.f32 %v2262, %v2528
        %v2530 = vpop.f32.mrb[0].mxu0
        %v2531 = vadd.f32 %v2266, %v2530
        %v2532 = vpop.f32.mrb[0].mxu0
        %v2533 = vadd.f32 %v2262, %v2532
        %v2534 = vpop.f32.mrb[0].mxu0
        %v2535 = vadd.f32 %v2266, %v2534
        %2536 = vdwg.mxu0
        %v2537 = vmax.f32 %v2466, 0.0
        %v2538 = vmax.f32 %v2468, 0.0
        %v2539 = vmax.f32 %v2519, 0.0
        %v2540 = vmax.f32 %v2521, 0.0
        %v2541 = vmax.f32 %v2470, 0.0
        %v2542 = vmax.f32 %v2472, 0.0
        %v2543 = vmax.f32 %v2523, 0.0
        %v2544 = vmax.f32 %v2525, 0.0
        %v2545 = vmax.f32 %v2476, 0.0
        %v2546 = vmax.f32 %v2478, 0.0
        %v2547 = vmax.f32 %v2529, 0.0
        %v2548 = vmax.f32 %v2531, 0.0
        %v2549 = vmax.f32 %v2480, 0.0
        %v2550 = vmax.f32 %v2482, 0.0
        %v2551 = vmax.f32 %v2533, 0.0
        %v2552 = vmax.f32 %v2535, 0.0
        %v2553 = vpack.c.bf16 %v2541, %v2537
        %v2554 = vpack.c.bf16 %v2542, %v2538
        %v2555 = vpack.c.bf16 %v2543, %v2539
        %v2556 = vpack.c.bf16 %v2544, %v2540
        %v2557 = vpack.c.bf16 %v2549, %v2545
        %v2558 = vpack.c.bf16 %v2550, %v2546
        %v2559 = vpack.c.bf16 %v2551, %v2547
        %v2560 = vpack.c.bf16 %v2552, %v2548
        %v2561 = vld [vmem:[%s459 + $0x100] sm:$0xf]
        %v2562 = vld [vmem:[%s459 + $0x104] sm:$0xf]
        %v2563 = vld [vmem:[%s459 + $0x108] sm:$0xf]
        %v2564 = vld [vmem:[%s459 + $0x10c] sm:$0xf]
        %v2565 = vld [vmem:[%s459 + $0x110] sm:$0xf]
        %v2566 = vld [vmem:[%s459 + $0x114] sm:$0xf]
        %v2567 = vld [vmem:[%s459 + $0x118] sm:$0xf]
        %v2568 = vld [vmem:[%s459 + $0x11c] sm:$0xf]
        %v2569 = vld [vmem:[%s459 + $0x120] sm:$0xf]
        %v2570 = vld [vmem:[%s459 + $0x124] sm:$0xf]
        %v2571 = vld [vmem:[%s459 + $0x128] sm:$0xf]
        %v2572 = vld [vmem:[%s459 + $0x12c] sm:$0xf]
        %v2573 = vld [vmem:[%s459 + $0x130] sm:$0xf]
        %v2574 = vld [vmem:[%s459 + $0x134] sm:$0xf]
        %v2575 = vld [vmem:[%s459 + $0x138] sm:$0xf]
        %v2576 = vld [vmem:[%s459 + $0x13c] sm:$0xf]
        %v2577 = vld [vmem:[%s459 + $0x140] sm:$0xf]
        %v2578 = vld [vmem:[%s459 + $0x144] sm:$0xf]
        %v2579 = vld [vmem:[%s459 + $0x148] sm:$0xf]
        %v2580 = vld [vmem:[%s459 + $0x14c] sm:$0xf]
        %v2581 = vld [vmem:[%s459 + $0x150] sm:$0xf]
        %v2582 = vld [vmem:[%s459 + $0x154] sm:$0xf]
        %v2583 = vld [vmem:[%s459 + $0x158] sm:$0xf]
        %v2584 = vld [vmem:[%s459 + $0x15c] sm:$0xf]
        %v2585 = vld [vmem:[%s459 + $0x160] sm:$0xf]
        %v2586 = vld [vmem:[%s459 + $0x164] sm:$0xf]
        %v2587 = vld [vmem:[%s459 + $0x168] sm:$0xf]
        %v2588 = vld [vmem:[%s459 + $0x16c] sm:$0xf]
        %v2589 = vld [vmem:[%s459 + $0x170] sm:$0xf]
        %v2590 = vld [vmem:[%s459 + $0x174] sm:$0xf]
        %v2591 = vld [vmem:[%s459 + $0x178] sm:$0xf]
        %v2592 = vld [vmem:[%s459 + $0x17c] sm:$0xf]
        %v2593 = vld [vmem:[%s459 + $0x180] sm:$0xf]
        %v2594 = vld [vmem:[%s459 + $0x184] sm:$0xf]
        %v2595 = vld [vmem:[%s459 + $0x188] sm:$0xf]
        %v2596 = vld [vmem:[%s459 + $0x18c] sm:$0xf]
        %v2597 = vld [vmem:[%s459 + $0x190] sm:$0xf]
        %v2598 = vld [vmem:[%s459 + $0x194] sm:$0xf]
        %v2599 = vld [vmem:[%s459 + $0x198] sm:$0xf]
        %v2600 = vld [vmem:[%s459 + $0x19c] sm:$0xf]
        %v2601 = vld [vmem:[%s459 + $0x1a0] sm:$0xf]
        %v2602 = vld [vmem:[%s459 + $0x1a4] sm:$0xf]
        %v2603 = vld [vmem:[%s459 + $0x1a8] sm:$0xf]
        %v2604 = vld [vmem:[%s459 + $0x1ac] sm:$0xf]
        %v2605 = vld [vmem:[%s459 + $0x1b0] sm:$0xf]
        %v2606 = vld [vmem:[%s459 + $0x1b4] sm:$0xf]
        %v2607 = vld [vmem:[%s459 + $0x1b8] sm:$0xf]
        %v2608 = vld [vmem:[%s459 + $0x1bc] sm:$0xf]
        %v2609 = vld [vmem:[%s459 + $0x1c0] sm:$0xf]
        %v2610 = vld [vmem:[%s459 + $0x1c4] sm:$0xf]
        %v2611 = vld [vmem:[%s459 + $0x1c8] sm:$0xf]
        %v2612 = vld [vmem:[%s459 + $0x1cc] sm:$0xf]
        %v2613 = vld [vmem:[%s459 + $0x1d0] sm:$0xf]
        %v2614 = vld [vmem:[%s459 + $0x1d4] sm:$0xf]
        %v2615 = vld [vmem:[%s459 + $0x1d8] sm:$0xf]
        %v2616 = vld [vmem:[%s459 + $0x1dc] sm:$0xf]
        %v2617 = vld [vmem:[%s459 + $0x1e0] sm:$0xf]
        %v2618 = vld [vmem:[%s459 + $0x1e4] sm:$0xf]
        %v2619 = vld [vmem:[%s459 + $0x1e8] sm:$0xf]
        %v2620 = vld [vmem:[%s459 + $0x1ec] sm:$0xf]
        %v2621 = vld [vmem:[%s459 + $0x1f0] sm:$0xf]
        %v2622 = vld [vmem:[%s459 + $0x1f4] sm:$0xf]
        %v2623 = vld [vmem:[%s459 + $0x1f8] sm:$0xf]
        %v2624 = vld [vmem:[%s459 + $0x1fc] sm:$0xf]
        %v2689 = vunpack.c.l.b16 %v2561
        %v2690 = vunpack.c.l.b16 %v2562
        %v2691 = vunpack.c.l.b16 %v2563
        %v2692 = vunpack.c.l.b16 %v2564
        %v2693 = vunpack.c.l.b16 %v2565
        %v2694 = vunpack.c.l.b16 %v2566
        %v2695 = vunpack.c.l.b16 %v2567
        %v2696 = vunpack.c.l.b16 %v2568
        %v2697 = vunpack.c.l.b16 %v2569
        %v2698 = vunpack.c.l.b16 %v2570
        %v2699 = vunpack.c.l.b16 %v2571
        %v2700 = vunpack.c.l.b16 %v2572
        %v2701 = vunpack.c.l.b16 %v2573
        %v2702 = vunpack.c.l.b16 %v2574
        %v2703 = vunpack.c.l.b16 %v2575
        %v2704 = vunpack.c.l.b16 %v2576
        %v2705 = vunpack.c.l.b16 %v2577
        %v2706 = vunpack.c.l.b16 %v2578
        %v2707 = vunpack.c.l.b16 %v2579
        %v2708 = vunpack.c.l.b16 %v2580
        %v2709 = vunpack.c.l.b16 %v2581
        %v2710 = vunpack.c.l.b16 %v2582
        %v2711 = vunpack.c.l.b16 %v2583
        %v2712 = vunpack.c.l.b16 %v2584
        %v2713 = vunpack.c.l.b16 %v2585
        %v2714 = vunpack.c.l.b16 %v2586
        %v2715 = vunpack.c.l.b16 %v2587
        %v2716 = vunpack.c.l.b16 %v2588
        %v2717 = vunpack.c.l.b16 %v2589
        %v2718 = vunpack.c.l.b16 %v2590
        %v2719 = vunpack.c.l.b16 %v2591
        %v2720 = vunpack.c.l.b16 %v2592
        %v2721 = vunpack.c.l.b16 %v2593
        %v2722 = vunpack.c.l.b16 %v2594
        %v2723 = vunpack.c.l.b16 %v2595
        %v2724 = vunpack.c.l.b16 %v2596
        %v2725 = vunpack.c.l.b16 %v2597
        %v2726 = vunpack.c.l.b16 %v2598
        %v2727 = vunpack.c.l.b16 %v2599
        %v2728 = vunpack.c.l.b16 %v2600
        %v2729 = vunpack.c.l.b16 %v2601
        %v2730 = vunpack.c.l.b16 %v2602
        %v2731 = vunpack.c.l.b16 %v2603
        %v2732 = vunpack.c.l.b16 %v2604
        %v2733 = vunpack.c.l.b16 %v2605
        %v2734 = vunpack.c.l.b16 %v2606
        %v2735 = vunpack.c.l.b16 %v2607
        %v2736 = vunpack.c.l.b16 %v2608
        %v2737 = vunpack.c.l.b16 %v2609
        %v2738 = vunpack.c.l.b16 %v2610
        %v2739 = vunpack.c.l.b16 %v2611
        %v2740 = vunpack.c.l.b16 %v2612
        %v2741 = vunpack.c.l.b16 %v2613
        %v2742 = vunpack.c.l.b16 %v2614
        %v2743 = vunpack.c.l.b16 %v2615
        %v2744 = vunpack.c.l.b16 %v2616
        %v2745 = vunpack.c.l.b16 %v2617
        %v2746 = vunpack.c.l.b16 %v2618
        %v2747 = vunpack.c.l.b16 %v2619
        %v2748 = vunpack.c.l.b16 %v2620
        %v2749 = vunpack.c.l.b16 %v2621
        %v2750 = vunpack.c.l.b16 %v2622
        %v2751 = vunpack.c.l.b16 %v2623
        %v2752 = vunpack.c.l.b16 %v2624
        %v2753 = vpack.c.b16 %v2690, %v2689
        %v2754 = vpack.c.b16 %v2692, %v2691
        %v2755 = vpack.c.b16 %v2694, %v2693
        %v2756 = vpack.c.b16 %v2696, %v2695
        %v2757 = vpack.c.b16 %v2698, %v2697
        %v2758 = vpack.c.b16 %v2700, %v2699
        %v2759 = vpack.c.b16 %v2702, %v2701
        %v2760 = vpack.c.b16 %v2704, %v2703
        %v2761 = vpack.c.b16 %v2706, %v2705
        %v2762 = vpack.c.b16 %v2708, %v2707
        %v2763 = vpack.c.b16 %v2710, %v2709
        %v2764 = vpack.c.b16 %v2712, %v2711
        %v2765 = vpack.c.b16 %v2714, %v2713
        %v2766 = vpack.c.b16 %v2716, %v2715
        %v2767 = vpack.c.b16 %v2718, %v2717
        %v2768 = vpack.c.b16 %v2720, %v2719
        %v2769 = vpack.c.b16 %v2722, %v2721
        %v2770 = vpack.c.b16 %v2724, %v2723
        %v2771 = vpack.c.b16 %v2726, %v2725
        %v2772 = vpack.c.b16 %v2728, %v2727
        %v2773 = vpack.c.b16 %v2730, %v2729
        %v2774 = vpack.c.b16 %v2732, %v2731
        %v2775 = vpack.c.b16 %v2734, %v2733
        %v2776 = vpack.c.b16 %v2736, %v2735
        %v2777 = vpack.c.b16 %v2738, %v2737
        %v2778 = vpack.c.b16 %v2740, %v2739
        %v2779 = vpack.c.b16 %v2742, %v2741
        %v2780 = vpack.c.b16 %v2744, %v2743
        %v2781 = vpack.c.b16 %v2746, %v2745
        %v2782 = vpack.c.b16 %v2748, %v2747
        %v2783 = vpack.c.b16 %v2750, %v2749
        %v2784 = vpack.c.b16 %v2752, %v2751
        %2817 = vmatprep.subr.bf16.mxu0 0
        %2818 = vmatpush1.bf16.msra.mxu0 %v2753
        %2819 = vmatprep.subr.bf16.mxu0 0
        %2820 = vmatpush1.bf16.msra.mxu0 %v2754
        %2821 = vmatprep.subr.bf16.mxu0 0
        %2822 = vmatpush1.bf16.msra.mxu0 %v2755
        %2823 = vmatprep.subr.bf16.mxu0 0
        %2824 = vmatpush1.bf16.msra.mxu0 %v2756
        %2825 = vmatprep.subr.bf16.mxu0 0
        %2826 = vmatpush1.bf16.msra.mxu0 %v2757
        %2827 = vmatprep.subr.bf16.mxu0 0
        %2828 = vmatpush1.bf16.msra.mxu0 %v2758
        %2829 = vmatprep.subr.bf16.mxu0 0
        %2830 = vmatpush1.bf16.msra.mxu0 %v2759
        %2831 = vmatprep.subr.bf16.mxu0 0
        %2832 = vmatpush1.bf16.msra.mxu0 %v2760
        %2833 = vmatprep.subr.bf16.mxu0 0
        %2834 = vmatpush1.bf16.msra.mxu0 %v2761
        %2835 = vmatprep.subr.bf16.mxu0 0
        %2836 = vmatpush1.bf16.msra.mxu0 %v2762
        %2837 = vmatprep.subr.bf16.mxu0 0
        %2838 = vmatpush1.bf16.msra.mxu0 %v2763
        %2839 = vmatprep.subr.bf16.mxu0 0
        %2840 = vmatpush1.bf16.msra.mxu0 %v2764
        %2841 = vmatprep.subr.bf16.mxu0 0
        %2842 = vmatpush1.bf16.msra.mxu0 %v2765
        %2843 = vmatprep.subr.bf16.mxu0 0
        %2844 = vmatpush1.bf16.msra.mxu0 %v2766
        %2845 = vmatprep.subr.bf16.mxu0 0
        %2846 = vmatpush1.bf16.msra.mxu0 %v2767
        %2847 = vmatprep.subr.bf16.mxu0 0
        %2848 = vmatpush1.bf16.msra.mxu0 %v2768
        %2849 = vmatprep.mubr.bf16.mxu0 %v2554
        %2850 = vmatmul.mubr.bf16.gmra.mrb[0].mxu0 %v2553
        %v2851 = vpop.f32.mrb[0].mxu0
        %v2852 = vadd.f32 0.0, %v2851
        %v2853 = vpop.f32.mrb[0].mxu0
        %v2854 = vpop.f32.mrb[0].mxu0
        %v2855 = vadd.f32 0.0, %v2854
        %v2856 = vpop.f32.mrb[0].mxu0
        %2857 = vmatprep.mubr.bf16.mxu0 %v2558
        %2858 = vmatmul.mubr.bf16.gmra.mrb[0].mxu0 %v2557
        %v2859 = vpop.f32.mrb[0].mxu0
        %v2860 = vadd.f32 0.0, %v2859
        %v2861 = vpop.f32.mrb[0].mxu0
        %v2862 = vpop.f32.mrb[0].mxu0
        %v2863 = vadd.f32 0.0, %v2862
        %v2864 = vpop.f32.mrb[0].mxu0
        %2865 = vdwg.mxu0
        %2866 = vmatprep.subr.bf16.mxu0 0
        %2867 = vmatpush1.bf16.msra.mxu0 %v2769
        %2868 = vmatprep.subr.bf16.mxu0 0
        %2869 = vmatpush1.bf16.msra.mxu0 %v2770
        %2870 = vmatprep.subr.bf16.mxu0 0
        %2871 = vmatpush1.bf16.msra.mxu0 %v2771
        %2872 = vmatprep.subr.bf16.mxu0 0
        %2873 = vmatpush1.bf16.msra.mxu0 %v2772
        %2874 = vmatprep.subr.bf16.mxu0 0
        %2875 = vmatpush1.bf16.msra.mxu0 %v2773
        %2876 = vmatprep.subr.bf16.mxu0 0
        %2877 = vmatpush1.bf16.msra.mxu0 %v2774
        %2878 = vmatprep.subr.bf16.mxu0 0
        %2879 = vmatpush1.bf16.msra.mxu0 %v2775
        %2880 = vmatprep.subr.bf16.mxu0 0
        %2881 = vmatpush1.bf16.msra.mxu0 %v2776
        %2882 = vmatprep.subr.bf16.mxu0 0
        %2883 = vmatpush1.bf16.msra.mxu0 %v2777
        %2884 = vmatprep.subr.bf16.mxu0 0
        %2885 = vmatpush1.bf16.msra.mxu0 %v2778
        %2886 = vmatprep.subr.bf16.mxu0 0
        %2887 = vmatpush1.bf16.msra.mxu0 %v2779
        %2888 = vmatprep.subr.bf16.mxu0 0
        %2889 = vmatpush1.bf16.msra.mxu0 %v2780
        %2890 = vmatprep.subr.bf16.mxu0 0
        %2891 = vmatpush1.bf16.msra.mxu0 %v2781
        %2892 = vmatprep.subr.bf16.mxu0 0
        %2893 = vmatpush1.bf16.msra.mxu0 %v2782
        %2894 = vmatprep.subr.bf16.mxu0 0
        %2895 = vmatpush1.bf16.msra.mxu0 %v2783
        %2896 = vmatprep.subr.bf16.mxu0 0
        %2897 = vmatpush1.bf16.msra.mxu0 %v2784
        %2898 = vmatprep.mubr.bf16.mxu0 %v2556
        %2899 = vmatmul.mubr.bf16.gmra.mrb[0].mxu0 %v2555
        %v2900 = vpop.f32.mrb[0].mxu0
        %v2901 = vadd.f32 %v2852, %v2900
        %v2902 = vpop.f32.mrb[0].mxu0
        %v2903 = vpop.f32.mrb[0].mxu0
        %v2904 = vadd.f32 %v2855, %v2903
        %v2905 = vpop.f32.mrb[0].mxu0
        %2906 = vmatprep.mubr.bf16.mxu0 %v2560
        %2907 = vmatmul.mubr.bf16.gmra.mrb[0].mxu0 %v2559
        %v2908 = vpop.f32.mrb[0].mxu0
        %v2909 = vadd.f32 %v2860, %v2908
        %v2910 = vpop.f32.mrb[0].mxu0
        %v2911 = vpop.f32.mrb[0].mxu0
        %v2912 = vadd.f32 %v2863, %v2911
        %v2913 = vpop.f32.mrb[0].mxu0
        %2914 = vdwg.mxu0
        %v2979 = vunpack.c.l.b16 %v2153
        %v2980 = vunpack.c.l.b16 %v2154
        %v2981 = vunpack.c.l.b16 %v2155
        %v2982 = vunpack.c.l.b16 %v2156
        %v2983 = vunpack.c.l.b16 %v2157
        %v2984 = vunpack.c.l.b16 %v2158
        %v2985 = vunpack.c.l.b16 %v2159
        %v2986 = vunpack.c.l.b16 %v2160
        %v2987 = vunpack.c.l.b16 %v2161
        %v2988 = vunpack.c.l.b16 %v2162
        %v2989 = vunpack.c.l.b16 %v2163
        %v2990 = vunpack.c.l.b16 %v2164
        %v2991 = vunpack.c.l.b16 %v2165
        %v2992 = vunpack.c.l.b16 %v2166
        %v2993 = vunpack.c.l.b16 %v2167
        %v2994 = vunpack.c.l.b16 %v2168
        %v2995 = vunpack.c.l.b16 %v2169
        %v2996 = vunpack.c.l.b16 %v2170
        %v2997 = vunpack.c.l.b16 %v2171
        %v2998 = vunpack.c.l.b16 %v2172
        %v2999 = vunpack.c.l.b16 %v2173
        %v3000 = vunpack.c.l.b16 %v2174
        %v3001 = vunpack.c.l.b16 %v2175
        %v3002 = vunpack.c.l.b16 %v2176
        %v3003 = vunpack.c.l.b16 %v2177
        %v3004 = vunpack.c.l.b16 %v2178
        %v3005 = vunpack.c.l.b16 %v2179
        %v3006 = vunpack.c.l.b16 %v2180
        %v3007 = vunpack.c.l.b16 %v2181
        %v3008 = vunpack.c.l.b16 %v2182
        %v3009 = vunpack.c.l.b16 %v2183
        %v3010 = vunpack.c.l.b16 %v2184
        %v3011 = vunpack.c.l.b16 %v2185
        %v3012 = vunpack.c.l.b16 %v2186
        %v3013 = vunpack.c.l.b16 %v2187
        %v3014 = vunpack.c.l.b16 %v2188
        %v3015 = vunpack.c.l.b16 %v2189
        %v3016 = vunpack.c.l.b16 %v2190
        %v3017 = vunpack.c.l.b16 %v2191
        %v3018 = vunpack.c.l.b16 %v2192
        %v3019 = vunpack.c.l.b16 %v2193
        %v3020 = vunpack.c.l.b16 %v2194
        %v3021 = vunpack.c.l.b16 %v2195
        %v3022 = vunpack.c.l.b16 %v2196
        %v3023 = vunpack.c.l.b16 %v2197
        %v3024 = vunpack.c.l.b16 %v2198
        %v3025 = vunpack.c.l.b16 %v2199
        %v3026 = vunpack.c.l.b16 %v2200
        %v3027 = vunpack.c.l.b16 %v2201
        %v3028 = vunpack.c.l.b16 %v2202
        %v3029 = vunpack.c.l.b16 %v2203
        %v3030 = vunpack.c.l.b16 %v2204
        %v3031 = vunpack.c.l.b16 %v2205
        %v3032 = vunpack.c.l.b16 %v2206
        %v3033 = vunpack.c.l.b16 %v2207
        %v3034 = vunpack.c.l.b16 %v2208
        %v3035 = vunpack.c.l.b16 %v2209
        %v3036 = vunpack.c.l.b16 %v2210
        %v3037 = vunpack.c.l.b16 %v2211
        %v3038 = vunpack.c.l.b16 %v2212
        %v3039 = vunpack.c.l.b16 %v2213
        %v3040 = vunpack.c.l.b16 %v2214
        %v3041 = vunpack.c.l.b16 %v2215
        %v3042 = vunpack.c.l.b16 %v2216
        %v3043 = vpack.c.b16 %v2980, %v2979
        %v3044 = vpack.c.b16 %v2982, %v2981
        %v3045 = vpack.c.b16 %v2984, %v2983
        %v3046 = vpack.c.b16 %v2986, %v2985
        %v3047 = vpack.c.b16 %v2988, %v2987
        %v3048 = vpack.c.b16 %v2990, %v2989
        %v3049 = vpack.c.b16 %v2992, %v2991
        %v3050 = vpack.c.b16 %v2994, %v2993
        %v3051 = vpack.c.b16 %v2996, %v2995
        %v3052 = vpack.c.b16 %v2998, %v2997
        %v3053 = vpack.c.b16 %v3000, %v2999
        %v3054 = vpack.c.b16 %v3002, %v3001
        %v3055 = vpack.c.b16 %v3004, %v3003
        %v3056 = vpack.c.b16 %v3006, %v3005
        %v3057 = vpack.c.b16 %v3008, %v3007
        %v3058 = vpack.c.b16 %v3010, %v3009
        %v3059 = vpack.c.b16 %v3012, %v3011
        %v3060 = vpack.c.b16 %v3014, %v3013
        %v3061 = vpack.c.b16 %v3016, %v3015
        %v3062 = vpack.c.b16 %v3018, %v3017
        %v3063 = vpack.c.b16 %v3020, %v3019
        %v3064 = vpack.c.b16 %v3022, %v3021
        %v3065 = vpack.c.b16 %v3024, %v3023
        %v3066 = vpack.c.b16 %v3026, %v3025
        %v3067 = vpack.c.b16 %v3028, %v3027
        %v3068 = vpack.c.b16 %v3030, %v3029
        %v3069 = vpack.c.b16 %v3032, %v3031
        %v3070 = vpack.c.b16 %v3034, %v3033
        %v3071 = vpack.c.b16 %v3036, %v3035
        %v3072 = vpack.c.b16 %v3038, %v3037
        %v3073 = vpack.c.b16 %v3040, %v3039
        %v3074 = vpack.c.b16 %v3042, %v3041
        %3107 = vmatprep.subr.bf16.mxu0 0
        %3108 = vmatpush1.bf16.msra.mxu0 %v3043
        %3109 = vmatprep.subr.bf16.mxu0 0
        %3110 = vmatpush1.bf16.msra.mxu0 %v3044
        %3111 = vmatprep.subr.bf16.mxu0 0
        %3112 = vmatpush1.bf16.msra.mxu0 %v3045
        %3113 = vmatprep.subr.bf16.mxu0 0
        %3114 = vmatpush1.bf16.msra.mxu0 %v3046
        %3115 = vmatprep.subr.bf16.mxu0 0
        %3116 = vmatpush1.bf16.msra.mxu0 %v3047
        %3117 = vmatprep.subr.bf16.mxu0 0
        %3118 = vmatpush1.bf16.msra.mxu0 %v3048
        %3119 = vmatprep.subr.bf16.mxu0 0
        %3120 = vmatpush1.bf16.msra.mxu0 %v3049
        %3121 = vmatprep.subr.bf16.mxu0 0
        %3122 = vmatpush1.bf16.msra.mxu0 %v3050
        %3123 = vmatprep.subr.bf16.mxu0 0
        %3124 = vmatpush1.bf16.msra.mxu0 %v3051
        %3125 = vmatprep.subr.bf16.mxu0 0
        %3126 = vmatpush1.bf16.msra.mxu0 %v3052
        %3127 = vmatprep.subr.bf16.mxu0 0
        %3128 = vmatpush1.bf16.msra.mxu0 %v3053
        %3129 = vmatprep.subr.bf16.mxu0 0
        %3130 = vmatpush1.bf16.msra.mxu0 %v3054
        %3131 = vmatprep.subr.bf16.mxu0 0
        %3132 = vmatpush1.bf16.msra.mxu0 %v3055
        %3133 = vmatprep.subr.bf16.mxu0 0
        %3134 = vmatpush1.bf16.msra.mxu0 %v3056
        %3135 = vmatprep.subr.bf16.mxu0 0
        %3136 = vmatpush1.bf16.msra.mxu0 %v3057
        %3137 = vmatprep.subr.bf16.mxu0 0
        %3138 = vmatpush1.bf16.msra.mxu0 %v3058
        %3139 = vmatprep.mubr.bf16.mxu0 %v2146
        %3140 = vmatmul.mubr.bf16.gmra.mrb[0].mxu0 %v2145
        %v3141 = vpop.f32.mrb[0].mxu0
        %v3142 = vadd.f32 %v2901, %v3141
        %v3143 = vpop.f32.mrb[0].mxu0
        %v3144 = vpop.f32.mrb[0].mxu0
        %v3145 = vadd.f32 %v2904, %v3144
        %v3146 = vpop.f32.mrb[0].mxu0
        %3147 = vmatprep.mubr.bf16.mxu0 %v2150
        %3148 = vmatmul.mubr.bf16.gmra.mrb[0].mxu0 %v2149
        %v3149 = vpop.f32.mrb[0].mxu0
        %v3150 = vadd.f32 %v2909, %v3149
        %v3151 = vpop.f32.mrb[0].mxu0
        %v3152 = vpop.f32.mrb[0].mxu0
        %v3153 = vadd.f32 %v2912, %v3152
        %v3154 = vpop.f32.mrb[0].mxu0
        %3155 = vdwg.mxu0
        %3156 = vmatprep.subr.bf16.mxu0 0
        %3157 = vmatpush1.bf16.msra.mxu0 %v3059
        %3158 = vmatprep.subr.bf16.mxu0 0
        %3159 = vmatpush1.bf16.msra.mxu0 %v3060
        %3160 = vmatprep.subr.bf16.mxu0 0
        %3161 = vmatpush1.bf16.msra.mxu0 %v3061
        %3162 = vmatprep.subr.bf16.mxu0 0
        %3163 = vmatpush1.bf16.msra.mxu0 %v3062
        %3164 = vmatprep.subr.bf16.mxu0 0
        %3165 = vmatpush1.bf16.msra.mxu0 %v3063
        %3166 = vmatprep.subr.bf16.mxu0 0
        %3167 = vmatpush1.bf16.msra.mxu0 %v3064
        %3168 = vmatprep.subr.bf16.mxu0 0
        %3169 = vmatpush1.bf16.msra.mxu0 %v3065
        %3170 = vmatprep.subr.bf16.mxu0 0
        %3171 = vmatpush1.bf16.msra.mxu0 %v3066
        %3172 = vmatprep.subr.bf16.mxu0 0
        %3173 = vmatpush1.bf16.msra.mxu0 %v3067
        %3174 = vmatprep.subr.bf16.mxu0 0
        %3175 = vmatpush1.bf16.msra.mxu0 %v3068
        %3176 = vmatprep.subr.bf16.mxu0 0
        %3177 = vmatpush1.bf16.msra.mxu0 %v3069
        %3178 = vmatprep.subr.bf16.mxu0 0
        %3179 = vmatpush1.bf16.msra.mxu0 %v3070
        %3180 = vmatprep.subr.bf16.mxu0 0
        %3181 = vmatpush1.bf16.msra.mxu0 %v3071
        %3182 = vmatprep.subr.bf16.mxu0 0
        %3183 = vmatpush1.bf16.msra.mxu0 %v3072
        %3184 = vmatprep.subr.bf16.mxu0 0
        %3185 = vmatpush1.bf16.msra.mxu0 %v3073
        %3186 = vmatprep.subr.bf16.mxu0 0
        %3187 = vmatpush1.bf16.msra.mxu0 %v3074
        %3188 = vmatprep.mubr.bf16.mxu0 %v2148
        %3189 = vmatmul.mubr.bf16.gmra.mrb[0].mxu0 %v2147
        %v3190 = vpop.f32.mrb[0].mxu0
        %v3191 = vadd.f32 %v3142, %v3190
        %v3192 = vpop.f32.mrb[0].mxu0
        %v3193 = vpop.f32.mrb[0].mxu0
        %v3194 = vadd.f32 %v3145, %v3193
        %v3195 = vpop.f32.mrb[0].mxu0
        %3196 = vmatprep.mubr.bf16.mxu0 %v2152
        %3197 = vmatmul.mubr.bf16.gmra.mrb[0].mxu0 %v2151
        %v3198 = vpop.f32.mrb[0].mxu0
        %v3199 = vadd.f32 %v3150, %v3198
        %v3200 = vpop.f32.mrb[0].mxu0
        %v3201 = vpop.f32.mrb[0].mxu0
        %v3202 = vadd.f32 %v3153, %v3201
        %v3203 = vpop.f32.mrb[0].mxu0
        %3204 = vdwg.mxu0
        %v3205 = vld [vmem:[%s450 + $0x20] sm:$0xff]
        %v3206 = vld [vmem:[%s450 + $0x28] sm:$0xff]
        %v3207 = vld [vmem:[%s450 + $0x60] sm:$0xff]
        %v3208 = vld [vmem:[%s450 + $0x68] sm:$0xff]
        %v3209 = vld [vmem:[%s450 + $0xa0] sm:$0xff]
        %v3210 = vld [vmem:[%s450 + $0xa8] sm:$0xff]
        %v3211 = vld [vmem:[%s450 + $0xe0] sm:$0xff]
        %v3212 = vld [vmem:[%s450 + $0xe8] sm:$0xff]
        %v3213 = vld [vmem:[%s450 + $0x120] sm:$0xff]
        %v3214 = vld [vmem:[%s450 + $0x128] sm:$0xff]
        %v3215 = vld [vmem:[%s450 + $0x160] sm:$0xff]
        %v3216 = vld [vmem:[%s450 + $0x168] sm:$0xff]
        %v3217 = vld [vmem:[%s450 + $0x1a0] sm:$0xff]
        %v3218 = vld [vmem:[%s450 + $0x1a8] sm:$0xff]
        %v3219 = vld [vmem:[%s450 + $0x1e0] sm:$0xff]
        %v3220 = vld [vmem:[%s450 + $0x1e8] sm:$0xff]
        %v3221 = vld [vmem:[%s450 + $0x220] sm:$0xff]
        %v3222 = vld [vmem:[%s450 + $0x228] sm:$0xff]
        %v3223 = vld [vmem:[%s450 + $0x260] sm:$0xff]
        %v3224 = vld [vmem:[%s450 + $0x268] sm:$0xff]
        %v3225 = vld [vmem:[%s450 + $0x2a0] sm:$0xff]
        %v3226 = vld [vmem:[%s450 + $0x2a8] sm:$0xff]
        %v3227 = vld [vmem:[%s450 + $0x2e0] sm:$0xff]
        %v3228 = vld [vmem:[%s450 + $0x2e8] sm:$0xff]
        %v3229 = vld [vmem:[%s450 + $0x320] sm:$0xff]
        %v3230 = vld [vmem:[%s450 + $0x328] sm:$0xff]
        %v3231 = vld [vmem:[%s450 + $0x360] sm:$0xff]
        %v3232 = vld [vmem:[%s450 + $0x368] sm:$0xff]
        %v3233 = vld [vmem:[%s450 + $0x3a0] sm:$0xff]
        %v3234 = vld [vmem:[%s450 + $0x3a8] sm:$0xff]
        %v3235 = vld [vmem:[%s450 + $0x3e0] sm:$0xff]
        %v3236 = vld [vmem:[%s450 + $0x3e8] sm:$0xff]
        %v3237 = vld [vmem:[%s477 + $0x8] sm:$0xf]
        %v3239 = vlaneseq
        %v3240 = vshrl.u32 %v3239, 7
        %v3241 = vsub.s32 0, %v3240
        %v3242 = vrot.slane %v3237, %v3241
        %v3243 = vlaneseq
        %v3244 = vshrl.u32 %v3243, 7
        %v3245 = vsub.s32 1, %v3244
        %v3246 = vrot.slane %v3237, %v3245
        %v3247 = vlaneseq
        %v3248 = vshrl.u32 %v3247, 7
        %v3249 = vsub.s32 2, %v3248
        %v3250 = vrot.slane %v3237, %v3249
        %v3251 = vlaneseq
        %v3252 = vshrl.u32 %v3251, 7
        %v3253 = vsub.s32 3, %v3252
        %v3254 = vrot.slane %v3237, %v3253
        %v3291 = vunpack.c.l.b16 %v3205
        %v3292 = vunpack.c.h.b16 %v3205
        %v3293 = vunpack.c.l.b16 %v3206
        %v3294 = vunpack.c.h.b16 %v3206
        %v3295 = vunpack.c.l.b16 %v3207
        %v3296 = vunpack.c.h.b16 %v3207
        %v3297 = vunpack.c.l.b16 %v3208
        %v3298 = vunpack.c.h.b16 %v3208
        %v3299 = vunpack.c.l.b16 %v3209
        %v3300 = vunpack.c.h.b16 %v3209
        %v3301 = vunpack.c.l.b16 %v3210
        %v3302 = vunpack.c.h.b16 %v3210
        %v3303 = vunpack.c.l.b16 %v3211
        %v3304 = vunpack.c.h.b16 %v3211
        %v3305 = vunpack.c.l.b16 %v3212
        %v3306 = vunpack.c.h.b16 %v3212
        %v3307 = vunpack.c.l.b16 %v3213
        %v3308 = vunpack.c.h.b16 %v3213
        %v3309 = vunpack.c.l.b16 %v3214
        %v3310 = vunpack.c.h.b16 %v3214
        %v3311 = vunpack.c.l.b16 %v3215
        %v3312 = vunpack.c.h.b16 %v3215
        %v3313 = vunpack.c.l.b16 %v3216
        %v3314 = vunpack.c.h.b16 %v3216
        %v3315 = vunpack.c.l.b16 %v3217
        %v3316 = vunpack.c.h.b16 %v3217
        %v3317 = vunpack.c.l.b16 %v3218
        %v3318 = vunpack.c.h.b16 %v3218
        %v3319 = vunpack.c.l.b16 %v3219
        %v3320 = vunpack.c.h.b16 %v3219
        %v3321 = vunpack.c.l.b16 %v3220
        %v3322 = vunpack.c.h.b16 %v3220
        %v3323 = vunpack.c.l.b16 %v3221
        %v3324 = vunpack.c.h.b16 %v3221
        %v3325 = vunpack.c.l.b16 %v3222
        %v3326 = vunpack.c.h.b16 %v3222
        %v3327 = vunpack.c.l.b16 %v3223
        %v3328 = vunpack.c.h.b16 %v3223
        %v3329 = vunpack.c.l.b16 %v3224
        %v3330 = vunpack.c.h.b16 %v3224
        %v3331 = vunpack.c.l.b16 %v3225
        %v3332 = vunpack.c.h.b16 %v3225
        %v3333 = vunpack.c.l.b16 %v3226
        %v3334 = vunpack.c.h.b16 %v3226
        %v3335 = vunpack.c.l.b16 %v3227
        %v3336 = vunpack.c.h.b16 %v3227
        %v3337 = vunpack.c.l.b16 %v3228
        %v3338 = vunpack.c.h.b16 %v3228
        %v3339 = vunpack.c.l.b16 %v3229
        %v3340 = vunpack.c.h.b16 %v3229
        %v3341 = vunpack.c.l.b16 %v3230
        %v3342 = vunpack.c.h.b16 %v3230
        %v3343 = vunpack.c.l.b16 %v3231
        %v3344 = vunpack.c.h.b16 %v3231
        %v3345 = vunpack.c.l.b16 %v3232
        %v3346 = vunpack.c.h.b16 %v3232
        %v3347 = vunpack.c.l.b16 %v3233
        %v3348 = vunpack.c.h.b16 %v3233
        %v3349 = vunpack.c.l.b16 %v3234
        %v3350 = vunpack.c.h.b16 %v3234
        %v3351 = vunpack.c.l.b16 %v3235
        %v3352 = vunpack.c.h.b16 %v3235
        %v3353 = vunpack.c.l.b16 %v3236
        %v3354 = vunpack.c.h.b16 %v3236
        %v3355 = vpack.c.b16 %v3295, %v3291
        %v3356 = vpack.c.b16 %v3296, %v3292
        %v3357 = vpack.c.b16 %v3297, %v3293
        %v3358 = vpack.c.b16 %v3298, %v3294
        %v3359 = vpack.c.b16 %v3303, %v3299
        %v3360 = vpack.c.b16 %v3304, %v3300
        %v3361 = vpack.c.b16 %v3305, %v3301
        %v3362 = vpack.c.b16 %v3306, %v3302
        %v3363 = vpack.c.b16 %v3311, %v3307
        %v3364 = vpack.c.b16 %v3312, %v3308
        %v3365 = vpack.c.b16 %v3313, %v3309
        %v3366 = vpack.c.b16 %v3314, %v3310
        %v3367 = vpack.c.b16 %v3319, %v3315
        %v3368 = vpack.c.b16 %v3320, %v3316
        %v3369 = vpack.c.b16 %v3321, %v3317
        %v3370 = vpack.c.b16 %v3322, %v3318
        %v3371 = vpack.c.b16 %v3327, %v3323
        %v3372 = vpack.c.b16 %v3328, %v3324
        %v3373 = vpack.c.b16 %v3329, %v3325
        %v3374 = vpack.c.b16 %v3330, %v3326
        %v3375 = vpack.c.b16 %v3335, %v3331
        %v3376 = vpack.c.b16 %v3336, %v3332
        %v3377 = vpack.c.b16 %v3337, %v3333
        %v3378 = vpack.c.b16 %v3338, %v3334
        %v3379 = vpack.c.b16 %v3343, %v3339
        %v3380 = vpack.c.b16 %v3344, %v3340
        %v3381 = vpack.c.b16 %v3345, %v3341
        %v3382 = vpack.c.b16 %v3346, %v3342
        %v3383 = vpack.c.b16 %v3351, %v3347
        %v3384 = vpack.c.b16 %v3352, %v3348
        %v3385 = vpack.c.b16 %v3353, %v3349
        %v3386 = vpack.c.b16 %v3354, %v3350
        %3419 = vmatprep.subr.bf16.mxu0 %v3356
        %3420 = vmatpush1.bf16.msra.mxu0 %v3355
        %3421 = vmatprep.subr.bf16.mxu0 %v3360
        %3422 = vmatpush1.bf16.msra.mxu0 %v3359
        %3423 = vmatprep.subr.bf16.mxu0 %v3364
        %3424 = vmatpush1.bf16.msra.mxu0 %v3363
        %3425 = vmatprep.subr.bf16.mxu0 %v3368
        %3426 = vmatpush1.bf16.msra.mxu0 %v3367
        %3427 = vmatprep.subr.bf16.mxu0 %v3372
        %3428 = vmatpush1.bf16.msra.mxu0 %v3371
        %3429 = vmatprep.subr.bf16.mxu0 %v3376
        %3430 = vmatpush1.bf16.msra.mxu0 %v3375
        %3431 = vmatprep.subr.bf16.mxu0 %v3380
        %3432 = vmatpush1.bf16.msra.mxu0 %v3379
        %3433 = vmatprep.subr.bf16.mxu0 %v3384
        %3434 = vmatpush1.bf16.msra.mxu0 %v3383
        %3435 = vmatprep.subr.bf16.mxu0 0
        %3436 = vmatpush1.bf16.msra.mxu0 0
        %3437 = vmatprep.subr.bf16.mxu0 0
        %3438 = vmatpush1.bf16.msra.mxu0 0
        %3439 = vmatprep.subr.bf16.mxu0 0
        %3440 = vmatpush1.bf16.msra.mxu0 0
        %3441 = vmatprep.subr.bf16.mxu0 0
        %3442 = vmatpush1.bf16.msra.mxu0 0
        %3443 = vmatprep.subr.bf16.mxu0 0
        %3444 = vmatpush1.bf16.msra.mxu0 0
        %3445 = vmatprep.subr.bf16.mxu0 0
        %3446 = vmatpush1.bf16.msra.mxu0 0
        %3447 = vmatprep.subr.bf16.mxu0 0
        %3448 = vmatpush1.bf16.msra.mxu0 0
        %3449 = vmatprep.subr.bf16.mxu0 0
        %3450 = vmatpush1.bf16.msra.mxu0 0
        %3451 = vmatprep.mubr.bf16.mxu0 0
        %3452 = vmatmul.mubr.bf16.gmra.mrb[0].mxu0 %v1807
        %v3453 = vpop.f32.mrb[0].mxu0
        %v3454 = vadd.f32 %v3242, %v3453
        %v3455 = vpop.f32.mrb[0].mxu0
        %v3456 = vadd.f32 %v3246, %v3455
        %v3457 = vpop.f32.mrb[0].mxu0
        %v3458 = vadd.f32 %v3242, %v3457
        %v3459 = vpop.f32.mrb[0].mxu0
        %v3460 = vadd.f32 %v3246, %v3459
        %3461 = vmatprep.mubr.bf16.mxu0 0
        %3462 = vmatmul.mubr.bf16.gmra.mrb[0].mxu0 %v1808
        %v3463 = vpop.f32.mrb[0].mxu0
        %v3464 = vadd.f32 %v3242, %v3463
        %v3465 = vpop.f32.mrb[0].mxu0
        %v3466 = vadd.f32 %v3246, %v3465
        %v3467 = vpop.f32.mrb[0].mxu0
        %v3468 = vadd.f32 %v3242, %v3467
        %v3469 = vpop.f32.mrb[0].mxu0
        %v3470 = vadd.f32 %v3246, %v3469
        %3471 = vdwg.mxu0
        %3472 = vmatprep.subr.bf16.mxu0 %v3358
        %3473 = vmatpush1.bf16.msra.mxu0 %v3357
        %3474 = vmatprep.subr.bf16.mxu0 %v3362
        %3475 = vmatpush1.bf16.msra.mxu0 %v3361
        %3476 = vmatprep.subr.bf16.mxu0 %v3366
        %3477 = vmatpush1.bf16.msra.mxu0 %v3365
        %3478 = vmatprep.subr.bf16.mxu0 %v3370
        %3479 = vmatpush1.bf16.msra.mxu0 %v3369
        %3480 = vmatprep.subr.bf16.mxu0 %v3374
        %3481 = vmatpush1.bf16.msra.mxu0 %v3373
        %3482 = vmatprep.subr.bf16.mxu0 %v3378
        %3483 = vmatpush1.bf16.msra.mxu0 %v3377
        %3484 = vmatprep.subr.bf16.mxu0 %v3382
        %3485 = vmatpush1.bf16.msra.mxu0 %v3381
        %3486 = vmatprep.subr.bf16.mxu0 %v3386
        %3487 = vmatpush1.bf16.msra.mxu0 %v3385
        %3488 = vmatprep.subr.bf16.mxu0 0
        %3489 = vmatpush1.bf16.msra.mxu0 0
        %3490 = vmatprep.subr.bf16.mxu0 0
        %3491 = vmatpush1.bf16.msra.mxu0 0
        %3492 = vmatprep.subr.bf16.mxu0 0
        %3493 = vmatpush1.bf16.msra.mxu0 0
        %3494 = vmatprep.subr.bf16.mxu0 0
        %3495 = vmatpush1.bf16.msra.mxu0 0
        %3496 = vmatprep.subr.bf16.mxu0 0
        %3497 = vmatpush1.bf16.msra.mxu0 0
        %3498 = vmatprep.subr.bf16.mxu0 0
        %3499 = vmatpush1.bf16.msra.mxu0 0
        %3500 = vmatprep.subr.bf16.mxu0 0
        %3501 = vmatpush1.bf16.msra.mxu0 0
        %3502 = vmatprep.subr.bf16.mxu0 0
        %3503 = vmatpush1.bf16.msra.mxu0 0
        %3504 = vmatprep.mubr.bf16.mxu0 0
        %3505 = vmatmul.mubr.bf16.gmra.mrb[0].mxu0 %v1807
        %v3506 = vpop.f32.mrb[0].mxu0
        %v3507 = vadd.f32 %v3250, %v3506
        %v3508 = vpop.f32.mrb[0].mxu0
        %v3509 = vadd.f32 %v3254, %v3508
        %v3510 = vpop.f32.mrb[0].mxu0
        %v3511 = vadd.f32 %v3250, %v3510
        %v3512 = vpop.f32.mrb[0].mxu0
        %v3513 = vadd.f32 %v3254, %v3512
        %3514 = vmatprep.mubr.bf16.mxu0 0
        %3515 = vmatmul.mubr.bf16.gmra.mrb[0].mxu0 %v1808
        %v3516 = vpop.f32.mrb[0].mxu0
        %v3517 = vadd.f32 %v3250, %v3516
        %v3518 = vpop.f32.mrb[0].mxu0
        %v3519 = vadd.f32 %v3254, %v3518
        %v3520 = vpop.f32.mrb[0].mxu0
        %v3521 = vadd.f32 %v3250, %v3520
        %v3522 = vpop.f32.mrb[0].mxu0
        %v3523 = vadd.f32 %v3254, %v3522
        %3524 = vdwg.mxu0
        %v3525 = vmax.f32 %v3454, 0.0
        %v3526 = vmax.f32 %v3456, 0.0
        %v3527 = vmax.f32 %v3507, 0.0
        %v3528 = vmax.f32 %v3509, 0.0
        %v3529 = vmax.f32 %v3458, 0.0
        %v3530 = vmax.f32 %v3460, 0.0
        %v3531 = vmax.f32 %v3511, 0.0
        %v3532 = vmax.f32 %v3513, 0.0
        %v3533 = vmax.f32 %v3464, 0.0
        %v3534 = vmax.f32 %v3466, 0.0
        %v3535 = vmax.f32 %v3517, 0.0
        %v3536 = vmax.f32 %v3519, 0.0
        %v3537 = vmax.f32 %v3468, 0.0
        %v3538 = vmax.f32 %v3470, 0.0
        %v3539 = vmax.f32 %v3521, 0.0
        %v3540 = vmax.f32 %v3523, 0.0
        %v3541 = vpack.c.bf16 %v3529, %v3525
        %v3542 = vpack.c.bf16 %v3530, %v3526
        %v3543 = vpack.c.bf16 %v3531, %v3527
        %v3544 = vpack.c.bf16 %v3532, %v3528
        %v3545 = vpack.c.bf16 %v3537, %v3533
        %v3546 = vpack.c.bf16 %v3538, %v3534
        %v3547 = vpack.c.bf16 %v3539, %v3535
        %v3548 = vpack.c.bf16 %v3540, %v3536
        %v3549 = vld [vmem:[%s459 + $0x200] sm:$0xf]
        %v3550 = vld [vmem:[%s459 + $0x204] sm:$0xf]
        %v3551 = vld [vmem:[%s459 + $0x208] sm:$0xf]
        %v3552 = vld [vmem:[%s459 + $0x20c] sm:$0xf]
        %v3553 = vld [vmem:[%s459 + $0x210] sm:$0xf]
        %v3554 = vld [vmem:[%s459 + $0x214] sm:$0xf]
        %v3555 = vld [vmem:[%s459 + $0x218] sm:$0xf]
        %v3556 = vld [vmem:[%s459 + $0x21c] sm:$0xf]
        %v3557 = vld [vmem:[%s459 + $0x220] sm:$0xf]
        %v3558 = vld [vmem:[%s459 + $0x224] sm:$0xf]
        %v3559 = vld [vmem:[%s459 + $0x228] sm:$0xf]
        %v3560 = vld [vmem:[%s459 + $0x22c] sm:$0xf]
        %v3561 = vld [vmem:[%s459 + $0x230] sm:$0xf]
        %v3562 = vld [vmem:[%s459 + $0x234] sm:$0xf]
        %v3563 = vld [vmem:[%s459 + $0x238] sm:$0xf]
        %v3564 = vld [vmem:[%s459 + $0x23c] sm:$0xf]
        %v3565 = vld [vmem:[%s459 + $0x240] sm:$0xf]
        %v3566 = vld [vmem:[%s459 + $0x244] sm:$0xf]
        %v3567 = vld [vmem:[%s459 + $0x248] sm:$0xf]
        %v3568 = vld [vmem:[%s459 + $0x24c] sm:$0xf]
        %v3569 = vld [vmem:[%s459 + $0x250] sm:$0xf]
        %v3570 = vld [vmem:[%s459 + $0x254] sm:$0xf]
        %v3571 = vld [vmem:[%s459 + $0x258] sm:$0xf]
        %v3572 = vld [vmem:[%s459 + $0x25c] sm:$0xf]
        %v3573 = vld [vmem:[%s459 + $0x260] sm:$0xf]
        %v3574 = vld [vmem:[%s459 + $0x264] sm:$0xf]
        %v3575 = vld [vmem:[%s459 + $0x268] sm:$0xf]
        %v3576 = vld [vmem:[%s459 + $0x26c] sm:$0xf]
        %v3577 = vld [vmem:[%s459 + $0x270] sm:$0xf]
        %v3578 = vld [vmem:[%s459 + $0x274] sm:$0xf]
        %v3579 = vld [vmem:[%s459 + $0x278] sm:$0xf]
        %v3580 = vld [vmem:[%s459 + $0x27c] sm:$0xf]
        %v3581 = vld [vmem:[%s459 + $0x280] sm:$0xf]
        %v3582 = vld [vmem:[%s459 + $0x284] sm:$0xf]
        %v3583 = vld [vmem:[%s459 + $0x288] sm:$0xf]
        %v3584 = vld [vmem:[%s459 + $0x28c] sm:$0xf]
        %v3585 = vld [vmem:[%s459 + $0x290] sm:$0xf]
        %v3586 = vld [vmem:[%s459 + $0x294] sm:$0xf]
        %v3587 = vld [vmem:[%s459 + $0x298] sm:$0xf]
        %v3588 = vld [vmem:[%s459 + $0x29c] sm:$0xf]
        %v3589 = vld [vmem:[%s459 + $0x2a0] sm:$0xf]
        %v3590 = vld [vmem:[%s459 + $0x2a4] sm:$0xf]
        %v3591 = vld [vmem:[%s459 + $0x2a8] sm:$0xf]
        %v3592 = vld [vmem:[%s459 + $0x2ac] sm:$0xf]
        %v3593 = vld [vmem:[%s459 + $0x2b0] sm:$0xf]
        %v3594 = vld [vmem:[%s459 + $0x2b4] sm:$0xf]
        %v3595 = vld [vmem:[%s459 + $0x2b8] sm:$0xf]
        %v3596 = vld [vmem:[%s459 + $0x2bc] sm:$0xf]
        %v3597 = vld [vmem:[%s459 + $0x2c0] sm:$0xf]
        %v3598 = vld [vmem:[%s459 + $0x2c4] sm:$0xf]
        %v3599 = vld [vmem:[%s459 + $0x2c8] sm:$0xf]
        %v3600 = vld [vmem:[%s459 + $0x2cc] sm:$0xf]
        %v3601 = vld [vmem:[%s459 + $0x2d0] sm:$0xf]
        %v3602 = vld [vmem:[%s459 + $0x2d4] sm:$0xf]
        %v3603 = vld [vmem:[%s459 + $0x2d8] sm:$0xf]
        %v3604 = vld [vmem:[%s459 + $0x2dc] sm:$0xf]
        %v3605 = vld [vmem:[%s459 + $0x2e0] sm:$0xf]
        %v3606 = vld [vmem:[%s459 + $0x2e4] sm:$0xf]
        %v3607 = vld [vmem:[%s459 + $0x2e8] sm:$0xf]
        %v3608 = vld [vmem:[%s459 + $0x2ec] sm:$0xf]
        %v3609 = vld [vmem:[%s459 + $0x2f0] sm:$0xf]
        %v3610 = vld [vmem:[%s459 + $0x2f4] sm:$0xf]
        %v3611 = vld [vmem:[%s459 + $0x2f8] sm:$0xf]
        %v3612 = vld [vmem:[%s459 + $0x2fc] sm:$0xf]
        %v3677 = vunpack.c.l.b16 %v3549
        %v3678 = vunpack.c.l.b16 %v3550
        %v3679 = vunpack.c.l.b16 %v3551
        %v3680 = vunpack.c.l.b16 %v3552
        %v3681 = vunpack.c.l.b16 %v3553
        %v3682 = vunpack.c.l.b16 %v3554
        %v3683 = vunpack.c.l.b16 %v3555
        %v3684 = vunpack.c.l.b16 %v3556
        %v3685 = vunpack.c.l.b16 %v3557
        %v3686 = vunpack.c.l.b16 %v3558
        %v3687 = vunpack.c.l.b16 %v3559
        %v3688 = vunpack.c.l.b16 %v3560
        %v3689 = vunpack.c.l.b16 %v3561
        %v3690 = vunpack.c.l.b16 %v3562
        %v3691 = vunpack.c.l.b16 %v3563
        %v3692 = vunpack.c.l.b16 %v3564
        %v3693 = vunpack.c.l.b16 %v3565
        %v3694 = vunpack.c.l.b16 %v3566
        %v3695 = vunpack.c.l.b16 %v3567
        %v3696 = vunpack.c.l.b16 %v3568
        %v3697 = vunpack.c.l.b16 %v3569
        %v3698 = vunpack.c.l.b16 %v3570
        %v3699 = vunpack.c.l.b16 %v3571
        %v3700 = vunpack.c.l.b16 %v3572
        %v3701 = vunpack.c.l.b16 %v3573
        %v3702 = vunpack.c.l.b16 %v3574
        %v3703 = vunpack.c.l.b16 %v3575
        %v3704 = vunpack.c.l.b16 %v3576
        %v3705 = vunpack.c.l.b16 %v3577
        %v3706 = vunpack.c.l.b16 %v3578
        %v3707 = vunpack.c.l.b16 %v3579
        %v3708 = vunpack.c.l.b16 %v3580
        %v3709 = vunpack.c.l.b16 %v3581
        %v3710 = vunpack.c.l.b16 %v3582
        %v3711 = vunpack.c.l.b16 %v3583
        %v3712 = vunpack.c.l.b16 %v3584
        %v3713 = vunpack.c.l.b16 %v3585
        %v3714 = vunpack.c.l.b16 %v3586
        %v3715 = vunpack.c.l.b16 %v3587
        %v3716 = vunpack.c.l.b16 %v3588
        %v3717 = vunpack.c.l.b16 %v3589
        %v3718 = vunpack.c.l.b16 %v3590
        %v3719 = vunpack.c.l.b16 %v3591
        %v3720 = vunpack.c.l.b16 %v3592
        %v3721 = vunpack.c.l.b16 %v3593
        %v3722 = vunpack.c.l.b16 %v3594
        %v3723 = vunpack.c.l.b16 %v3595
        %v3724 = vunpack.c.l.b16 %v3596
        %v3725 = vunpack.c.l.b16 %v3597
        %v3726 = vunpack.c.l.b16 %v3598
        %v3727 = vunpack.c.l.b16 %v3599
        %v3728 = vunpack.c.l.b16 %v3600
        %v3729 = vunpack.c.l.b16 %v3601
        %v3730 = vunpack.c.l.b16 %v3602
        %v3731 = vunpack.c.l.b16 %v3603
        %v3732 = vunpack.c.l.b16 %v3604
        %v3733 = vunpack.c.l.b16 %v3605
        %v3734 = vunpack.c.l.b16 %v3606
        %v3735 = vunpack.c.l.b16 %v3607
        %v3736 = vunpack.c.l.b16 %v3608
        %v3737 = vunpack.c.l.b16 %v3609
        %v3738 = vunpack.c.l.b16 %v3610
        %v3739 = vunpack.c.l.b16 %v3611
        %v3740 = vunpack.c.l.b16 %v3612
        %v3741 = vpack.c.b16 %v3678, %v3677
        %v3742 = vpack.c.b16 %v3680, %v3679
        %v3743 = vpack.c.b16 %v3682, %v3681
        %v3744 = vpack.c.b16 %v3684, %v3683
        %v3745 = vpack.c.b16 %v3686, %v3685
        %v3746 = vpack.c.b16 %v3688, %v3687
        %v3747 = vpack.c.b16 %v3690, %v3689
        %v3748 = vpack.c.b16 %v3692, %v3691
        %v3749 = vpack.c.b16 %v3694, %v3693
        %v3750 = vpack.c.b16 %v3696, %v3695
        %v3751 = vpack.c.b16 %v3698, %v3697
        %v3752 = vpack.c.b16 %v3700, %v3699
        %v3753 = vpack.c.b16 %v3702, %v3701
        %v3754 = vpack.c.b16 %v3704, %v3703
        %v3755 = vpack.c.b16 %v3706, %v3705
        %v3756 = vpack.c.b16 %v3708, %v3707
        %v3757 = vpack.c.b16 %v3710, %v3709
        %v3758 = vpack.c.b16 %v3712, %v3711
        %v3759 = vpack.c.b16 %v3714, %v3713
        %v3760 = vpack.c.b16 %v3716, %v3715
        %v3761 = vpack.c.b16 %v3718, %v3717
        %v3762 = vpack.c.b16 %v3720, %v3719
        %v3763 = vpack.c.b16 %v3722, %v3721
        %v3764 = vpack.c.b16 %v3724, %v3723
        %v3765 = vpack.c.b16 %v3726, %v3725
        %v3766 = vpack.c.b16 %v3728, %v3727
        %v3767 = vpack.c.b16 %v3730, %v3729
        %v3768 = vpack.c.b16 %v3732, %v3731
        %v3769 = vpack.c.b16 %v3734, %v3733
        %v3770 = vpack.c.b16 %v3736, %v3735
        %v3771 = vpack.c.b16 %v3738, %v3737
        %v3772 = vpack.c.b16 %v3740, %v3739
        %3805 = vmatprep.subr.bf16.mxu0 0
        %3806 = vmatpush1.bf16.msra.mxu0 %v3741
        %3807 = vmatprep.subr.bf16.mxu0 0
        %3808 = vmatpush1.bf16.msra.mxu0 %v3742
        %3809 = vmatprep.subr.bf16.mxu0 0
        %3810 = vmatpush1.bf16.msra.mxu0 %v3743
        %3811 = vmatprep.subr.bf16.mxu0 0
        %3812 = vmatpush1.bf16.msra.mxu0 %v3744
        %3813 = vmatprep.subr.bf16.mxu0 0
        %3814 = vmatpush1.bf16.msra.mxu0 %v3745
        %3815 = vmatprep.subr.bf16.mxu0 0
        %3816 = vmatpush1.bf16.msra.mxu0 %v3746
        %3817 = vmatprep.subr.bf16.mxu0 0
        %3818 = vmatpush1.bf16.msra.mxu0 %v3747
        %3819 = vmatprep.subr.bf16.mxu0 0
        %3820 = vmatpush1.bf16.msra.mxu0 %v3748
        %3821 = vmatprep.subr.bf16.mxu0 0
        %3822 = vmatpush1.bf16.msra.mxu0 %v3749
        %3823 = vmatprep.subr.bf16.mxu0 0
        %3824 = vmatpush1.bf16.msra.mxu0 %v3750
        %3825 = vmatprep.subr.bf16.mxu0 0
        %3826 = vmatpush1.bf16.msra.mxu0 %v3751
        %3827 = vmatprep.subr.bf16.mxu0 0
        %3828 = vmatpush1.bf16.msra.mxu0 %v3752
        %3829 = vmatprep.subr.bf16.mxu0 0
        %3830 = vmatpush1.bf16.msra.mxu0 %v3753
        %3831 = vmatprep.subr.bf16.mxu0 0
        %3832 = vmatpush1.bf16.msra.mxu0 %v3754
        %3833 = vmatprep.subr.bf16.mxu0 0
        %3834 = vmatpush1.bf16.msra.mxu0 %v3755
        %3835 = vmatprep.subr.bf16.mxu0 0
        %3836 = vmatpush1.bf16.msra.mxu0 %v3756
        %3837 = vmatprep.mubr.bf16.mxu0 %v3542
        %3838 = vmatmul.mubr.bf16.gmra.mrb[0].mxu0 %v3541
        %v3839 = vpop.f32.mrb[0].mxu0
        %v3840 = vadd.f32 0.0, %v3839
        %v3841 = vpop.f32.mrb[0].mxu0
        %v3842 = vpop.f32.mrb[0].mxu0
        %v3843 = vadd.f32 0.0, %v3842
        %v3844 = vpop.f32.mrb[0].mxu0
        %3845 = vmatprep.mubr.bf16.mxu0 %v3546
        %3846 = vmatmul.mubr.bf16.gmra.mrb[0].mxu0 %v3545
        %v3847 = vpop.f32.mrb[0].mxu0
        %v3848 = vadd.f32 0.0, %v3847
        %v3849 = vpop.f32.mrb[0].mxu0
        %v3850 = vpop.f32.mrb[0].mxu0
        %v3851 = vadd.f32 0.0, %v3850
        %v3852 = vpop.f32.mrb[0].mxu0
        %3853 = vdwg.mxu0
        %3854 = vmatprep.subr.bf16.mxu0 0
        %3855 = vmatpush1.bf16.msra.mxu0 %v3757
        %3856 = vmatprep.subr.bf16.mxu0 0
        %3857 = vmatpush1.bf16.msra.mxu0 %v3758
        %3858 = vmatprep.subr.bf16.mxu0 0
        %3859 = vmatpush1.bf16.msra.mxu0 %v3759
        %3860 = vmatprep.subr.bf16.mxu0 0
        %3861 = vmatpush1.bf16.msra.mxu0 %v3760
        %3862 = vmatprep.subr.bf16.mxu0 0
        %3863 = vmatpush1.bf16.msra.mxu0 %v3761
        %3864 = vmatprep.subr.bf16.mxu0 0
        %3865 = vmatpush1.bf16.msra.mxu0 %v3762
        %3866 = vmatprep.subr.bf16.mxu0 0
        %3867 = vmatpush1.bf16.msra.mxu0 %v3763
        %3868 = vmatprep.subr.bf16.mxu0 0
        %3869 = vmatpush1.bf16.msra.mxu0 %v3764
        %3870 = vmatprep.subr.bf16.mxu0 0
        %3871 = vmatpush1.bf16.msra.mxu0 %v3765
        %3872 = vmatprep.subr.bf16.mxu0 0
        %3873 = vmatpush1.bf16.msra.mxu0 %v3766
        %3874 = vmatprep.subr.bf16.mxu0 0
        %3875 = vmatpush1.bf16.msra.mxu0 %v3767
        %3876 = vmatprep.subr.bf16.mxu0 0
        %3877 = vmatpush1.bf16.msra.mxu0 %v3768
        %3878 = vmatprep.subr.bf16.mxu0 0
        %3879 = vmatpush1.bf16.msra.mxu0 %v3769
        %3880 = vmatprep.subr.bf16.mxu0 0
        %3881 = vmatpush1.bf16.msra.mxu0 %v3770
        %3882 = vmatprep.subr.bf16.mxu0 0
        %3883 = vmatpush1.bf16.msra.mxu0 %v3771
        %3884 = vmatprep.subr.bf16.mxu0 0
        %3885 = vmatpush1.bf16.msra.mxu0 %v3772
        %3886 = vmatprep.mubr.bf16.mxu0 %v3544
        %3887 = vmatmul.mubr.bf16.gmra.mrb[0].mxu0 %v3543
        %v3888 = vpop.f32.mrb[0].mxu0
        %v3889 = vadd.f32 %v3840, %v3888
        %v3890 = vpop.f32.mrb[0].mxu0
        %v3891 = vpop.f32.mrb[0].mxu0
        %v3892 = vadd.f32 %v3843, %v3891
        %v3893 = vpop.f32.mrb[0].mxu0
        %3894 = vmatprep.mubr.bf16.mxu0 %v3548
        %3895 = vmatmul.mubr.bf16.gmra.mrb[0].mxu0 %v3547
        %v3896 = vpop.f32.mrb[0].mxu0
        %v3897 = vadd.f32 %v3848, %v3896
        %v3898 = vpop.f32.mrb[0].mxu0
        %v3899 = vpop.f32.mrb[0].mxu0
        %v3900 = vadd.f32 %v3851, %v3899
        %v3901 = vpop.f32.mrb[0].mxu0
        %3902 = vdwg.mxu0
        %v3903 = vadd.f32 %v3191, %v3889
        %v3904 = vadd.f32 %v3194, %v3892
        %v3905 = vadd.f32 %v3199, %v3897
        %v3906 = vadd.f32 %v3202, %v3900
        %v3907 = vld [vmem:[%s450 + $0x30] sm:$0xff]
        %v3908 = vld [vmem:[%s450 + $0x38] sm:$0xff]
        %v3909 = vld [vmem:[%s450 + $0x70] sm:$0xff]
        %v3910 = vld [vmem:[%s450 + $0x78] sm:$0xff]
        %v3911 = vld [vmem:[%s450 + $0xb0] sm:$0xff]
        %v3912 = vld [vmem:[%s450 + $0xb8] sm:$0xff]
        %v3913 = vld [vmem:[%s450 + $0xf0] sm:$0xff]
        %v3914 = vld [vmem:[%s450 + $0xf8] sm:$0xff]
        %v3915 = vld [vmem:[%s450 + $0x130] sm:$0xff]
        %v3916 = vld [vmem:[%s450 + $0x138] sm:$0xff]
        %v3917 = vld [vmem:[%s450 + $0x170] sm:$0xff]
        %v3918 = vld [vmem:[%s450 + $0x178] sm:$0xff]
        %v3919 = vld [vmem:[%s450 + $0x1b0] sm:$0xff]
        %v3920 = vld [vmem:[%s450 + $0x1b8] sm:$0xff]
        %v3921 = vld [vmem:[%s450 + $0x1f0] sm:$0xff]
        %v3922 = vld [vmem:[%s450 + $0x1f8] sm:$0xff]
        %v3923 = vld [vmem:[%s450 + $0x230] sm:$0xff]
        %v3924 = vld [vmem:[%s450 + $0x238] sm:$0xff]
        %v3925 = vld [vmem:[%s450 + $0x270] sm:$0xff]
        %v3926 = vld [vmem:[%s450 + $0x278] sm:$0xff]
        %v3927 = vld [vmem:[%s450 + $0x2b0] sm:$0xff]
        %v3928 = vld [vmem:[%s450 + $0x2b8] sm:$0xff]
        %v3929 = vld [vmem:[%s450 + $0x2f0] sm:$0xff]
        %v3930 = vld [vmem:[%s450 + $0x2f8] sm:$0xff]
        %v3931 = vld [vmem:[%s450 + $0x330] sm:$0xff]
        %v3932 = vld [vmem:[%s450 + $0x338] sm:$0xff]
        %v3933 = vld [vmem:[%s450 + $0x370] sm:$0xff]
        %v3934 = vld [vmem:[%s450 + $0x378] sm:$0xff]
        %v3935 = vld [vmem:[%s450 + $0x3b0] sm:$0xff]
        %v3936 = vld [vmem:[%s450 + $0x3b8] sm:$0xff]
        %v3937 = vld [vmem:[%s450 + $0x3f0] sm:$0xff]
        %v3938 = vld [vmem:[%s450 + $0x3f8] sm:$0xff]
        %v3939 = vld [vmem:[%s477 + $0xc] sm:$0xf]
        %v3941 = vlaneseq
        %v3942 = vshrl.u32 %v3941, 7
        %v3943 = vsub.s32 0, %v3942
        %v3944 = vrot.slane %v3939, %v3943
        %v3945 = vlaneseq
        %v3946 = vshrl.u32 %v3945, 7
        %v3947 = vsub.s32 1, %v3946
        %v3948 = vrot.slane %v3939, %v3947
        %v3949 = vlaneseq
        %v3950 = vshrl.u32 %v3949, 7
        %v3951 = vsub.s32 2, %v3950
        %v3952 = vrot.slane %v3939, %v3951
        %v3953 = vlaneseq
        %v3954 = vshrl.u32 %v3953, 7
        %v3955 = vsub.s32 3, %v3954
        %v3956 = vrot.slane %v3939, %v3955
        %v3993 = vunpack.c.l.b16 %v3907
        %v3994 = vunpack.c.h.b16 %v3907
        %v3995 = vunpack.c.l.b16 %v3908
        %v3996 = vunpack.c.h.b16 %v3908
        %v3997 = vunpack.c.l.b16 %v3909
        %v3998 = vunpack.c.h.b16 %v3909
        %v3999 = vunpack.c.l.b16 %v3910
        %v4000 = vunpack.c.h.b16 %v3910
        %v4001 = vunpack.c.l.b16 %v3911
        %v4002 = vunpack.c.h.b16 %v3911
        %v4003 = vunpack.c.l.b16 %v3912
        %v4004 = vunpack.c.h.b16 %v3912
        %v4005 = vunpack.c.l.b16 %v3913
        %v4006 = vunpack.c.h.b16 %v3913
        %v4007 = vunpack.c.l.b16 %v3914
        %v4008 = vunpack.c.h.b16 %v3914
        %v4009 = vunpack.c.l.b16 %v3915
        %v4010 = vunpack.c.h.b16 %v3915
        %v4011 = vunpack.c.l.b16 %v3916
        %v4012 = vunpack.c.h.b16 %v3916
        %v4013 = vunpack.c.l.b16 %v3917
        %v4014 = vunpack.c.h.b16 %v3917
        %v4015 = vunpack.c.l.b16 %v3918
        %v4016 = vunpack.c.h.b16 %v3918
        %v4017 = vunpack.c.l.b16 %v3919
        %v4018 = vunpack.c.h.b16 %v3919
        %v4019 = vunpack.c.l.b16 %v3920
        %v4020 = vunpack.c.h.b16 %v3920
        %v4021 = vunpack.c.l.b16 %v3921
        %v4022 = vunpack.c.h.b16 %v3921
        %v4023 = vunpack.c.l.b16 %v3922
        %v4024 = vunpack.c.h.b16 %v3922
        %v4025 = vunpack.c.l.b16 %v3923
        %v4026 = vunpack.c.h.b16 %v3923
        %v4027 = vunpack.c.l.b16 %v3924
        %v4028 = vunpack.c.h.b16 %v3924
        %v4029 = vunpack.c.l.b16 %v3925
        %v4030 = vunpack.c.h.b16 %v3925
        %v4031 = vunpack.c.l.b16 %v3926
        %v4032 = vunpack.c.h.b16 %v3926
        %v4033 = vunpack.c.l.b16 %v3927
        %v4034 = vunpack.c.h.b16 %v3927
        %v4035 = vunpack.c.l.b16 %v3928
        %v4036 = vunpack.c.h.b16 %v3928
        %v4037 = vunpack.c.l.b16 %v3929
        %v4038 = vunpack.c.h.b16 %v3929
        %v4039 = vunpack.c.l.b16 %v3930
        %v4040 = vunpack.c.h.b16 %v3930
        %v4041 = vunpack.c.l.b16 %v3931
        %v4042 = vunpack.c.h.b16 %v3931
        %v4043 = vunpack.c.l.b16 %v3932
        %v4044 = vunpack.c.h.b16 %v3932
        %v4045 = vunpack.c.l.b16 %v3933
        %v4046 = vunpack.c.h.b16 %v3933
        %v4047 = vunpack.c.l.b16 %v3934
        %v4048 = vunpack.c.h.b16 %v3934
        %v4049 = vunpack.c.l.b16 %v3935
        %v4050 = vunpack.c.h.b16 %v3935
        %v4051 = vunpack.c.l.b16 %v3936
        %v4052 = vunpack.c.h.b16 %v3936
        %v4053 = vunpack.c.l.b16 %v3937
        %v4054 = vunpack.c.h.b16 %v3937
        %v4055 = vunpack.c.l.b16 %v3938
        %v4056 = vunpack.c.h.b16 %v3938
        %v4057 = vpack.c.b16 %v3997, %v3993
        %v4058 = vpack.c.b16 %v3998, %v3994
        %v4059 = vpack.c.b16 %v3999, %v3995
        %v4060 = vpack.c.b16 %v4000, %v3996
        %v4061 = vpack.c.b16 %v4005, %v4001
        %v4062 = vpack.c.b16 %v4006, %v4002
        %v4063 = vpack.c.b16 %v4007, %v4003
        %v4064 = vpack.c.b16 %v4008, %v4004
        %v4065 = vpack.c.b16 %v4013, %v4009
        %v4066 = vpack.c.b16 %v4014, %v4010
        %v4067 = vpack.c.b16 %v4015, %v4011
        %v4068 = vpack.c.b16 %v4016, %v4012
        %v4069 = vpack.c.b16 %v4021, %v4017
        %v4070 = vpack.c.b16 %v4022, %v4018
        %v4071 = vpack.c.b16 %v4023, %v4019
        %v4072 = vpack.c.b16 %v4024, %v4020
        %v4073 = vpack.c.b16 %v4029, %v4025
        %v4074 = vpack.c.b16 %v4030, %v4026
        %v4075 = vpack.c.b16 %v4031, %v4027
        %v4076 = vpack.c.b16 %v4032, %v4028
        %v4077 = vpack.c.b16 %v4037, %v4033
        %v4078 = vpack.c.b16 %v4038, %v4034
        %v4079 = vpack.c.b16 %v4039, %v4035
        %v4080 = vpack.c.b16 %v4040, %v4036
        %v4081 = vpack.c.b16 %v4045, %v4041
        %v4082 = vpack.c.b16 %v4046, %v4042
        %v4083 = vpack.c.b16 %v4047, %v4043
        %v4084 = vpack.c.b16 %v4048, %v4044
        %v4085 = vpack.c.b16 %v4053, %v4049
        %v4086 = vpack.c.b16 %v4054, %v4050
        %v4087 = vpack.c.b16 %v4055, %v4051
        %v4088 = vpack.c.b16 %v4056, %v4052
        %4121 = vmatprep.subr.bf16.mxu0 %v4058
        %4122 = vmatpush1.bf16.msra.mxu0 %v4057
        %4123 = vmatprep.subr.bf16.mxu0 %v4062
        %4124 = vmatpush1.bf16.msra.mxu0 %v4061
        %4125 = vmatprep.subr.bf16.mxu0 %v4066
        %4126 = vmatpush1.bf16.msra.mxu0 %v4065
        %4127 = vmatprep.subr.bf16.mxu0 %v4070
        %4128 = vmatpush1.bf16.msra.mxu0 %v4069
        %4129 = vmatprep.subr.bf16.mxu0 %v4074
        %4130 = vmatpush1.bf16.msra.mxu0 %v4073
        %4131 = vmatprep.subr.bf16.mxu0 %v4078
        %4132 = vmatpush1.bf16.msra.mxu0 %v4077
        %4133 = vmatprep.subr.bf16.mxu0 %v4082
        %4134 = vmatpush1.bf16.msra.mxu0 %v4081
        %4135 = vmatprep.subr.bf16.mxu0 %v4086
        %4136 = vmatpush1.bf16.msra.mxu0 %v4085
        %4137 = vmatprep.subr.bf16.mxu0 0
        %4138 = vmatpush1.bf16.msra.mxu0 0
        %4139 = vmatprep.subr.bf16.mxu0 0
        %4140 = vmatpush1.bf16.msra.mxu0 0
        %4141 = vmatprep.subr.bf16.mxu0 0
        %4142 = vmatpush1.bf16.msra.mxu0 0
        %4143 = vmatprep.subr.bf16.mxu0 0
        %4144 = vmatpush1.bf16.msra.mxu0 0
        %4145 = vmatprep.subr.bf16.mxu0 0
        %4146 = vmatpush1.bf16.msra.mxu0 0
        %4147 = vmatprep.subr.bf16.mxu0 0
        %4148 = vmatpush1.bf16.msra.mxu0 0
        %4149 = vmatprep.subr.bf16.mxu0 0
        %4150 = vmatpush1.bf16.msra.mxu0 0
        %4151 = vmatprep.subr.bf16.mxu0 0
        %4152 = vmatpush1.bf16.msra.mxu0 0
        %4153 = vmatprep.mubr.bf16.mxu0 0
        %4154 = vmatmul.mubr.bf16.gmra.mrb[0].mxu0 %v1807
        %v4155 = vpop.f32.mrb[0].mxu0
        %v4156 = vadd.f32 %v3944, %v4155
        %v4157 = vpop.f32.mrb[0].mxu0
        %v4158 = vadd.f32 %v3948, %v4157
        %v4159 = vpop.f32.mrb[0].mxu0
        %v4160 = vadd.f32 %v3944, %v4159
        %v4161 = vpop.f32.mrb[0].mxu0
        %v4162 = vadd.f32 %v3948, %v4161
        %4163 = vmatprep.mubr.bf16.mxu0 0
        %4164 = vmatmul.mubr.bf16.gmra.mrb[0].mxu0 %v1808
        %v4165 = vpop.f32.mrb[0].mxu0
        %v4166 = vadd.f32 %v3944, %v4165
        %v4167 = vpop.f32.mrb[0].mxu0
        %v4168 = vadd.f32 %v3948, %v4167
        %v4169 = vpop.f32.mrb[0].mxu0
        %v4170 = vadd.f32 %v3944, %v4169
        %v4171 = vpop.f32.mrb[0].mxu0
        %v4172 = vadd.f32 %v3948, %v4171
        %4173 = vdwg.mxu0
        %4174 = vmatprep.subr.bf16.mxu0 %v4060
        %4175 = vmatpush1.bf16.msra.mxu0 %v4059
        %4176 = vmatprep.subr.bf16.mxu0 %v4064
        %4177 = vmatpush1.bf16.msra.mxu0 %v4063
        %4178 = vmatprep.subr.bf16.mxu0 %v4068
        %4179 = vmatpush1.bf16.msra.mxu0 %v4067
        %4180 = vmatprep.subr.bf16.mxu0 %v4072
        %4181 = vmatpush1.bf16.msra.mxu0 %v4071
        %4182 = vmatprep.subr.bf16.mxu0 %v4076
        %4183 = vmatpush1.bf16.msra.mxu0 %v4075
        %4184 = vmatprep.subr.bf16.mxu0 %v4080
        %4185 = vmatpush1.bf16.msra.mxu0 %v4079
        %4186 = vmatprep.subr.bf16.mxu0 %v4084
        %4187 = vmatpush1.bf16.msra.mxu0 %v4083
        %4188 = vmatprep.subr.bf16.mxu0 %v4088
        %4189 = vmatpush1.bf16.msra.mxu0 %v4087
        %4190 = vmatprep.subr.bf16.mxu0 0
        %4191 = vmatpush1.bf16.msra.mxu0 0
        %4192 = vmatprep.subr.bf16.mxu0 0
        %4193 = vmatpush1.bf16.msra.mxu0 0
        %4194 = vmatprep.subr.bf16.mxu0 0
        %4195 = vmatpush1.bf16.msra.mxu0 0
        %4196 = vmatprep.subr.bf16.mxu0 0
        %4197 = vmatpush1.bf16.msra.mxu0 0
        %4198 = vmatprep.subr.bf16.mxu0 0
        %4199 = vmatpush1.bf16.msra.mxu0 0
        %4200 = vmatprep.subr.bf16.mxu0 0
        %4201 = vmatpush1.bf16.msra.mxu0 0
        %4202 = vmatprep.subr.bf16.mxu0 0
        %4203 = vmatpush1.bf16.msra.mxu0 0
        %4204 = vmatprep.subr.bf16.mxu0 0
        %4205 = vmatpush1.bf16.msra.mxu0 0
        %4206 = vmatprep.mubr.bf16.mxu0 0
        %4207 = vmatmul.mubr.bf16.gmra.mrb[0].mxu0 %v1807
        %v4208 = vpop.f32.mrb[0].mxu0
        %v4209 = vadd.f32 %v3952, %v4208
        %v4210 = vpop.f32.mrb[0].mxu0
        %v4211 = vadd.f32 %v3956, %v4210
        %v4212 = vpop.f32.mrb[0].mxu0
        %v4213 = vadd.f32 %v3952, %v4212
        %v4214 = vpop.f32.mrb[0].mxu0
        %v4215 = vadd.f32 %v3956, %v4214
        %4216 = vmatprep.mubr.bf16.mxu0 0
        %4217 = vmatmul.mubr.bf16.gmra.mrb[0].mxu0 %v1808
        %v4218 = vpop.f32.mrb[0].mxu0
        %v4219 = vadd.f32 %v3952, %v4218
        %v4220 = vpop.f32.mrb[0].mxu0
        %v4221 = vadd.f32 %v3956, %v4220
        %v4222 = vpop.f32.mrb[0].mxu0
        %v4223 = vadd.f32 %v3952, %v4222
        %v4224 = vpop.f32.mrb[0].mxu0
        %v4225 = vadd.f32 %v3956, %v4224
        %4226 = vdwg.mxu0
        %v4227 = vmax.f32 %v4156, 0.0
        %v4228 = vmax.f32 %v4158, 0.0
        %v4229 = vmax.f32 %v4209, 0.0
        %v4230 = vmax.f32 %v4211, 0.0
        %v4231 = vmax.f32 %v4160, 0.0
        %v4232 = vmax.f32 %v4162, 0.0
        %v4233 = vmax.f32 %v4213, 0.0
        %v4234 = vmax.f32 %v4215, 0.0
        %v4235 = vmax.f32 %v4166, 0.0
        %v4236 = vmax.f32 %v4168, 0.0
        %v4237 = vmax.f32 %v4219, 0.0
        %v4238 = vmax.f32 %v4221, 0.0
        %v4239 = vmax.f32 %v4170, 0.0
        %v4240 = vmax.f32 %v4172, 0.0
        %v4241 = vmax.f32 %v4223, 0.0
        %v4242 = vmax.f32 %v4225, 0.0
        %v4243 = vpack.c.bf16 %v4231, %v4227
        %v4244 = vpack.c.bf16 %v4232, %v4228
        %v4245 = vpack.c.bf16 %v4233, %v4229
        %v4246 = vpack.c.bf16 %v4234, %v4230
        %v4247 = vpack.c.bf16 %v4239, %v4235
        %v4248 = vpack.c.bf16 %v4240, %v4236
        %v4249 = vpack.c.bf16 %v4241, %v4237
        %v4250 = vpack.c.bf16 %v4242, %v4238
        %v4251 = vld [vmem:[%s459 + $0x300] sm:$0xf]
        %v4252 = vld [vmem:[%s459 + $0x304] sm:$0xf]
        %v4253 = vld [vmem:[%s459 + $0x308] sm:$0xf]
        %v4254 = vld [vmem:[%s459 + $0x30c] sm:$0xf]
        %v4255 = vld [vmem:[%s459 + $0x310] sm:$0xf]
        %v4256 = vld [vmem:[%s459 + $0x314] sm:$0xf]
        %v4257 = vld [vmem:[%s459 + $0x318] sm:$0xf]
        %v4258 = vld [vmem:[%s459 + $0x31c] sm:$0xf]
        %v4259 = vld [vmem:[%s459 + $0x320] sm:$0xf]
        %v4260 = vld [vmem:[%s459 + $0x324] sm:$0xf]
        %v4261 = vld [vmem:[%s459 + $0x328] sm:$0xf]
        %v4262 = vld [vmem:[%s459 + $0x32c] sm:$0xf]
        %v4263 = vld [vmem:[%s459 + $0x330] sm:$0xf]
        %v4264 = vld [vmem:[%s459 + $0x334] sm:$0xf]
        %v4265 = vld [vmem:[%s459 + $0x338] sm:$0xf]
        %v4266 = vld [vmem:[%s459 + $0x33c] sm:$0xf]
        %v4267 = vld [vmem:[%s459 + $0x340] sm:$0xf]
        %v4268 = vld [vmem:[%s459 + $0x344] sm:$0xf]
        %v4269 = vld [vmem:[%s459 + $0x348] sm:$0xf]
        %v4270 = vld [vmem:[%s459 + $0x34c] sm:$0xf]
        %v4271 = vld [vmem:[%s459 + $0x350] sm:$0xf]
        %v4272 = vld [vmem:[%s459 + $0x354] sm:$0xf]
        %v4273 = vld [vmem:[%s459 + $0x358] sm:$0xf]
        %v4274 = vld [vmem:[%s459 + $0x35c] sm:$0xf]
        %v4275 = vld [vmem:[%s459 + $0x360] sm:$0xf]
        %v4276 = vld [vmem:[%s459 + $0x364] sm:$0xf]
        %v4277 = vld [vmem:[%s459 + $0x368] sm:$0xf]
        %v4278 = vld [vmem:[%s459 + $0x36c] sm:$0xf]
        %v4279 = vld [vmem:[%s459 + $0x370] sm:$0xf]
        %v4280 = vld [vmem:[%s459 + $0x374] sm:$0xf]
        %v4281 = vld [vmem:[%s459 + $0x378] sm:$0xf]
        %v4282 = vld [vmem:[%s459 + $0x37c] sm:$0xf]
        %v4283 = vld [vmem:[%s459 + $0x380] sm:$0xf]
        %v4284 = vld [vmem:[%s459 + $0x384] sm:$0xf]
        %v4285 = vld [vmem:[%s459 + $0x388] sm:$0xf]
        %v4286 = vld [vmem:[%s459 + $0x38c] sm:$0xf]
        %v4287 = vld [vmem:[%s459 + $0x390] sm:$0xf]
        %v4288 = vld [vmem:[%s459 + $0x394] sm:$0xf]
        %v4289 = vld [vmem:[%s459 + $0x398] sm:$0xf]
        %v4290 = vld [vmem:[%s459 + $0x39c] sm:$0xf]
        %v4291 = vld [vmem:[%s459 + $0x3a0] sm:$0xf]
        %v4292 = vld [vmem:[%s459 + $0x3a4] sm:$0xf]
        %v4293 = vld [vmem:[%s459 + $0x3a8] sm:$0xf]
        %v4294 = vld [vmem:[%s459 + $0x3ac] sm:$0xf]
        %v4295 = vld [vmem:[%s459 + $0x3b0] sm:$0xf]
        %v4296 = vld [vmem:[%s459 + $0x3b4] sm:$0xf]
        %v4297 = vld [vmem:[%s459 + $0x3b8] sm:$0xf]
        %v4298 = vld [vmem:[%s459 + $0x3bc] sm:$0xf]
        %v4299 = vld [vmem:[%s459 + $0x3c0] sm:$0xf]
        %v4300 = vld [vmem:[%s459 + $0x3c4] sm:$0xf]
        %v4301 = vld [vmem:[%s459 + $0x3c8] sm:$0xf]
        %v4302 = vld [vmem:[%s459 + $0x3cc] sm:$0xf]
        %v4303 = vld [vmem:[%s459 + $0x3d0] sm:$0xf]
        %v4304 = vld [vmem:[%s459 + $0x3d4] sm:$0xf]
        %v4305 = vld [vmem:[%s459 + $0x3d8] sm:$0xf]
        %v4306 = vld [vmem:[%s459 + $0x3dc] sm:$0xf]
        %v4307 = vld [vmem:[%s459 + $0x3e0] sm:$0xf]
        %v4308 = vld [vmem:[%s459 + $0x3e4] sm:$0xf]
        %v4309 = vld [vmem:[%s459 + $0x3e8] sm:$0xf]
        %v4310 = vld [vmem:[%s459 + $0x3ec] sm:$0xf]
        %v4311 = vld [vmem:[%s459 + $0x3f0] sm:$0xf]
        %v4312 = vld [vmem:[%s459 + $0x3f4] sm:$0xf]
        %v4313 = vld [vmem:[%s459 + $0x3f8] sm:$0xf]
        %v4314 = vld [vmem:[%s459 + $0x3fc] sm:$0xf]
        %v4379 = vunpack.c.l.b16 %v4251
        %v4380 = vunpack.c.l.b16 %v4252
        %v4381 = vunpack.c.l.b16 %v4253
        %v4382 = vunpack.c.l.b16 %v4254
        %v4383 = vunpack.c.l.b16 %v4255
        %v4384 = vunpack.c.l.b16 %v4256
        %v4385 = vunpack.c.l.b16 %v4257
        %v4386 = vunpack.c.l.b16 %v4258
        %v4387 = vunpack.c.l.b16 %v4259
        %v4388 = vunpack.c.l.b16 %v4260
        %v4389 = vunpack.c.l.b16 %v4261
        %v4390 = vunpack.c.l.b16 %v4262
        %v4391 = vunpack.c.l.b16 %v4263
        %v4392 = vunpack.c.l.b16 %v4264
        %v4393 = vunpack.c.l.b16 %v4265
        %v4394 = vunpack.c.l.b16 %v4266
        %v4395 = vunpack.c.l.b16 %v4267
        %v4396 = vunpack.c.l.b16 %v4268
        %v4397 = vunpack.c.l.b16 %v4269
        %v4398 = vunpack.c.l.b16 %v4270
        %v4399 = vunpack.c.l.b16 %v4271
        %v4400 = vunpack.c.l.b16 %v4272
        %v4401 = vunpack.c.l.b16 %v4273
        %v4402 = vunpack.c.l.b16 %v4274
        %v4403 = vunpack.c.l.b16 %v4275
        %v4404 = vunpack.c.l.b16 %v4276
        %v4405 = vunpack.c.l.b16 %v4277
        %v4406 = vunpack.c.l.b16 %v4278
        %v4407 = vunpack.c.l.b16 %v4279
        %v4408 = vunpack.c.l.b16 %v4280
        %v4409 = vunpack.c.l.b16 %v4281
        %v4410 = vunpack.c.l.b16 %v4282
        %v4411 = vunpack.c.l.b16 %v4283
        %v4412 = vunpack.c.l.b16 %v4284
        %v4413 = vunpack.c.l.b16 %v4285
        %v4414 = vunpack.c.l.b16 %v4286
        %v4415 = vunpack.c.l.b16 %v4287
        %v4416 = vunpack.c.l.b16 %v4288
        %v4417 = vunpack.c.l.b16 %v4289
        %v4418 = vunpack.c.l.b16 %v4290
        %v4419 = vunpack.c.l.b16 %v4291
        %v4420 = vunpack.c.l.b16 %v4292
        %v4421 = vunpack.c.l.b16 %v4293
        %v4422 = vunpack.c.l.b16 %v4294
        %v4423 = vunpack.c.l.b16 %v4295
        %v4424 = vunpack.c.l.b16 %v4296
        %v4425 = vunpack.c.l.b16 %v4297
        %v4426 = vunpack.c.l.b16 %v4298
        %v4427 = vunpack.c.l.b16 %v4299
        %v4428 = vunpack.c.l.b16 %v4300
        %v4429 = vunpack.c.l.b16 %v4301
        %v4430 = vunpack.c.l.b16 %v4302
        %v4431 = vunpack.c.l.b16 %v4303
        %v4432 = vunpack.c.l.b16 %v4304
        %v4433 = vunpack.c.l.b16 %v4305
        %v4434 = vunpack.c.l.b16 %v4306
        %v4435 = vunpack.c.l.b16 %v4307
        %v4436 = vunpack.c.l.b16 %v4308
        %v4437 = vunpack.c.l.b16 %v4309
        %v4438 = vunpack.c.l.b16 %v4310
        %v4439 = vunpack.c.l.b16 %v4311
        %v4440 = vunpack.c.l.b16 %v4312
        %v4441 = vunpack.c.l.b16 %v4313
        %v4442 = vunpack.c.l.b16 %v4314
        %v4443 = vpack.c.b16 %v4380, %v4379
        %v4444 = vpack.c.b16 %v4382, %v4381
        %v4445 = vpack.c.b16 %v4384, %v4383
        %v4446 = vpack.c.b16 %v4386, %v4385
        %v4447 = vpack.c.b16 %v4388, %v4387
        %v4448 = vpack.c.b16 %v4390, %v4389
        %v4449 = vpack.c.b16 %v4392, %v4391
        %v4450 = vpack.c.b16 %v4394, %v4393
        %v4451 = vpack.c.b16 %v4396, %v4395
        %v4452 = vpack.c.b16 %v4398, %v4397
        %v4453 = vpack.c.b16 %v4400, %v4399
        %v4454 = vpack.c.b16 %v4402, %v4401
        %v4455 = vpack.c.b16 %v4404, %v4403
        %v4456 = vpack.c.b16 %v4406, %v4405
        %v4457 = vpack.c.b16 %v4408, %v4407
        %v4458 = vpack.c.b16 %v4410, %v4409
        %v4459 = vpack.c.b16 %v4412, %v4411
        %v4460 = vpack.c.b16 %v4414, %v4413
        %v4461 = vpack.c.b16 %v4416, %v4415
        %v4462 = vpack.c.b16 %v4418, %v4417
        %v4463 = vpack.c.b16 %v4420, %v4419
        %v4464 = vpack.c.b16 %v4422, %v4421
        %v4465 = vpack.c.b16 %v4424, %v4423
        %v4466 = vpack.c.b16 %v4426, %v4425
        %v4467 = vpack.c.b16 %v4428, %v4427
        %v4468 = vpack.c.b16 %v4430, %v4429
        %v4469 = vpack.c.b16 %v4432, %v4431
        %v4470 = vpack.c.b16 %v4434, %v4433
        %v4471 = vpack.c.b16 %v4436, %v4435
        %v4472 = vpack.c.b16 %v4438, %v4437
        %v4473 = vpack.c.b16 %v4440, %v4439
        %v4474 = vpack.c.b16 %v4442, %v4441
        %4507 = vmatprep.subr.bf16.mxu0 0
        %4508 = vmatpush1.bf16.msra.mxu0 %v4443
        %4509 = vmatprep.subr.bf16.mxu0 0
        %4510 = vmatpush1.bf16.msra.mxu0 %v4444
        %4511 = vmatprep.subr.bf16.mxu0 0
        %4512 = vmatpush1.bf16.msra.mxu0 %v4445
        %4513 = vmatprep.subr.bf16.mxu0 0
        %4514 = vmatpush1.bf16.msra.mxu0 %v4446
        %4515 = vmatprep.subr.bf16.mxu0 0
        %4516 = vmatpush1.bf16.msra.mxu0 %v4447
        %4517 = vmatprep.subr.bf16.mxu0 0
        %4518 = vmatpush1.bf16.msra.mxu0 %v4448
        %4519 = vmatprep.subr.bf16.mxu0 0
        %4520 = vmatpush1.bf16.msra.mxu0 %v4449
        %4521 = vmatprep.subr.bf16.mxu0 0
        %4522 = vmatpush1.bf16.msra.mxu0 %v4450
        %4523 = vmatprep.subr.bf16.mxu0 0
        %4524 = vmatpush1.bf16.msra.mxu0 %v4451
        %4525 = vmatprep.subr.bf16.mxu0 0
        %4526 = vmatpush1.bf16.msra.mxu0 %v4452
        %4527 = vmatprep.subr.bf16.mxu0 0
        %4528 = vmatpush1.bf16.msra.mxu0 %v4453
        %4529 = vmatprep.subr.bf16.mxu0 0
        %4530 = vmatpush1.bf16.msra.mxu0 %v4454
        %4531 = vmatprep.subr.bf16.mxu0 0
        %4532 = vmatpush1.bf16.msra.mxu0 %v4455
        %4533 = vmatprep.subr.bf16.mxu0 0
        %4534 = vmatpush1.bf16.msra.mxu0 %v4456
        %4535 = vmatprep.subr.bf16.mxu0 0
        %4536 = vmatpush1.bf16.msra.mxu0 %v4457
        %4537 = vmatprep.subr.bf16.mxu0 0
        %4538 = vmatpush1.bf16.msra.mxu0 %v4458
        %4539 = vmatprep.mubr.bf16.mxu0 %v4244
        %4540 = vmatmul.mubr.bf16.gmra.mrb[0].mxu0 %v4243
        %v4541 = vpop.f32.mrb[0].mxu0
        %v4542 = vadd.f32 0.0, %v4541
        %v4543 = vpop.f32.mrb[0].mxu0
        %v4544 = vpop.f32.mrb[0].mxu0
        %v4545 = vadd.f32 0.0, %v4544
        %v4546 = vpop.f32.mrb[0].mxu0
        %4547 = vmatprep.mubr.bf16.mxu0 %v4248
        %4548 = vmatmul.mubr.bf16.gmra.mrb[0].mxu0 %v4247
        %v4549 = vpop.f32.mrb[0].mxu0
        %v4550 = vadd.f32 0.0, %v4549
        %v4551 = vpop.f32.mrb[0].mxu0
        %v4552 = vpop.f32.mrb[0].mxu0
        %v4553 = vadd.f32 0.0, %v4552
        %v4554 = vpop.f32.mrb[0].mxu0
        %4555 = vdwg.mxu0
        %4556 = vmatprep.subr.bf16.mxu0 0
        %4557 = vmatpush1.bf16.msra.mxu0 %v4459
        %4558 = vmatprep.subr.bf16.mxu0 0
        %4559 = vmatpush1.bf16.msra.mxu0 %v4460
        %4560 = vmatprep.subr.bf16.mxu0 0
        %4561 = vmatpush1.bf16.msra.mxu0 %v4461
        %4562 = vmatprep.subr.bf16.mxu0 0
        %4563 = vmatpush1.bf16.msra.mxu0 %v4462
        %4564 = vmatprep.subr.bf16.mxu0 0
        %4565 = vmatpush1.bf16.msra.mxu0 %v4463
        %4566 = vmatprep.subr.bf16.mxu0 0
        %4567 = vmatpush1.bf16.msra.mxu0 %v4464
        %4568 = vmatprep.subr.bf16.mxu0 0
        %4569 = vmatpush1.bf16.msra.mxu0 %v4465
        %4570 = vmatprep.subr.bf16.mxu0 0
        %4571 = vmatpush1.bf16.msra.mxu0 %v4466
        %4572 = vmatprep.subr.bf16.mxu0 0
        %4573 = vmatpush1.bf16.msra.mxu0 %v4467
        %4574 = vmatprep.subr.bf16.mxu0 0
        %4575 = vmatpush1.bf16.msra.mxu0 %v4468
        %4576 = vmatprep.subr.bf16.mxu0 0
        %4577 = vmatpush1.bf16.msra.mxu0 %v4469
        %4578 = vmatprep.subr.bf16.mxu0 0
        %4579 = vmatpush1.bf16.msra.mxu0 %v4470
        %4580 = vmatprep.subr.bf16.mxu0 0
        %4581 = vmatpush1.bf16.msra.mxu0 %v4471
        %4582 = vmatprep.subr.bf16.mxu0 0
        %4583 = vmatpush1.bf16.msra.mxu0 %v4472
        %4584 = vmatprep.subr.bf16.mxu0 0
        %4585 = vmatpush1.bf16.msra.mxu0 %v4473
        %4586 = vmatprep.subr.bf16.mxu0 0
        %4587 = vmatpush1.bf16.msra.mxu0 %v4474
        %4588 = vmatprep.mubr.bf16.mxu0 %v4246
        %4589 = vmatmul.mubr.bf16.gmra.mrb[0].mxu0 %v4245
        %v4590 = vpop.f32.mrb[0].mxu0
        %v4591 = vadd.f32 %v4542, %v4590
        %v4592 = vpop.f32.mrb[0].mxu0
        %v4593 = vpop.f32.mrb[0].mxu0
        %v4594 = vadd.f32 %v4545, %v4593
        %v4595 = vpop.f32.mrb[0].mxu0
        %4596 = vmatprep.mubr.bf16.mxu0 %v4250
        %4597 = vmatmul.mubr.bf16.gmra.mrb[0].mxu0 %v4249
        %v4598 = vpop.f32.mrb[0].mxu0
        %v4599 = vadd.f32 %v4550, %v4598
        %v4600 = vpop.f32.mrb[0].mxu0
        %v4601 = vpop.f32.mrb[0].mxu0
        %v4602 = vadd.f32 %v4553, %v4601
        %v4603 = vpop.f32.mrb[0].mxu0
        %4604 = vdwg.mxu0
        %v4605 = vadd.f32 %v3903, %v4591
        %v4606 = vadd.f32 %v3904, %v4594
        %v4607 = vadd.f32 %v3905, %v4599
        %v4608 = vadd.f32 %v3906, %v4602
        %v4609 = vld [vmem:[%s468 + $0x4] sm:$0x1]
        %v4610 = vlaneseq
        %v4611 = vshrl.u32 %v4610, 7
        %v4612 = vsub.s32 0, %v4611
        %v4613 = vrot.slane %v4609, %v4612
        %v4614 = vadd.f32 %v4605, %v4613
        %v4615 = vadd.f32 %v4606, %v4613
        %v4616 = vadd.f32 %v4607, %v4613
        %v4617 = vadd.f32 %v4608, %v4613
        %v4618 = vadd.f32 %v1803, %v4614
        %v4619 = vadd.f32 %v1804, %v4615
        %v4620 = vadd.f32 %v1805, %v4616
        %v4621 = vadd.f32 %v1806, %v4617
        %v4622 = vld [vmem:[%s468 + $0x7] sm:$0x1]
        %v4623 = vld [vmem:[%s468 + $0x8] sm:$0x1]
        %4624 = vadd.xlane.f32.xlu0 %v4618
        %v4625 = vpop.xlane.xlu0 %4624
        %4626 = vadd.xlane.f32.xlu0 %v4619
        %v4627 = vpop.xlane.xlu0 %4626
        %4628 = vadd.xlane.f32.xlu0 %v4620
        %v4629 = vpop.xlane.xlu0 %4628
        %4630 = vadd.xlane.f32.xlu0 %v4621
        %v4631 = vpop.xlane.xlu0 %4630
        %v4632 = vmul.f32 %v4625, %v1754
        %v4633 = vmul.f32 %v4627, %v1754
        %v4634 = vmul.f32 %v4629, %v1754
        %v4635 = vmul.f32 %v4631, %v1754
        %v4636 = vsub.f32 %v4618, %v4632
        %v4637 = vsub.f32 %v4619, %v4633
        %v4638 = vsub.f32 %v4620, %v4634
        %v4639 = vsub.f32 %v4621, %v4635
        %v4640 = vmul.f32 %v4636, %v4636
        %v4641 = vmul.f32 %v4637, %v4637
        %v4642 = vmul.f32 %v4638, %v4638
        %v4643 = vmul.f32 %v4639, %v4639
        %4644 = vadd.xlane.f32.xlu0 %v4640
        %v4645 = vpop.xlane.xlu0 %4644
        %4646 = vadd.xlane.f32.xlu0 %v4641
        %v4647 = vpop.xlane.xlu0 %4646
        %4648 = vadd.xlane.f32.xlu0 %v4642
        %v4649 = vpop.xlane.xlu0 %4648
        %4650 = vadd.xlane.f32.xlu0 %v4643
        %v4651 = vpop.xlane.xlu0 %4650
        %v4652 = vmul.f32 %v4645, %v1754
        %v4653 = vmul.f32 %v4647, %v1754
        %v4654 = vmul.f32 %v4649, %v1754
        %v4655 = vmul.f32 %v4651, %v1754
        %v4656 = vadd.f32 %v4652, 1e-05
        %v4657 = vadd.f32 %v4653, 1e-05
        %v4658 = vadd.f32 %v4654, 1e-05
        %v4659 = vadd.f32 %v4655, 1e-05
        %v4660 = vrsqrt.pop %v4656
        %v4661 = vrsqrt.pop %v4657
        %v4662 = vrsqrt.pop %v4658
        %v4663 = vrsqrt.pop %v4659
        %v4664 = vmul.f32 %v4636, %v4660
        %v4665 = vmul.f32 %v4637, %v4661
        %v4666 = vmul.f32 %v4638, %v4662
        %v4667 = vmul.f32 %v4639, %v4663
        %v4668 = vlaneseq
        %v4669 = vshrl.u32 %v4668, 7
        %v4670 = vsub.s32 0, %v4669
        %v4671 = vrot.slane %v4622, %v4670
        %v4672 = vmul.f32 %v4664, %v4671
        %v4673 = vmul.f32 %v4665, %v4671
        %v4674 = vmul.f32 %v4666, %v4671
        %v4675 = vmul.f32 %v4667, %v4671
        %v4676 = vlaneseq
        %v4677 = vshrl.u32 %v4676, 7
        %v4678 = vsub.s32 0, %v4677
        %v4679 = vrot.slane %v4623, %v4678
        %v4680 = vadd.f32 %v4672, %v4679
        %v4681 = vadd.f32 %v4673, %v4679
        %v4682 = vadd.f32 %v4674, %v4679
        %v4683 = vadd.f32 %v4675, %v4679
        %4684 = vst [vmem:[#allocation2] sm:$0xff] %v4680
        %4685 = vst [vmem:[#allocation2 + $0x8] sm:$0xff] %v4681
        %4686 = vst [vmem:[#allocation2 + $0x10] sm:$0xff] %v4682
        %4687 = vst [vmem:[#allocation2 + $0x18] sm:$0xff] %v4683
        %p4688 = scmp.eq.s32.totalorder %s38, 1
        // Predicated region
        $region81: #{tpu_custom_call.1} parent=47 // pred_check
          %p4689 = pneg %p4688
        $region82: #{tpu_custom_call.1} parent=47 // pred_check_branch
          %4691 = sbr.rel (%p4689) target = $region84
        $region83: #{tpu_custom_call.1} parent=47 // pred_region
          %v4692 = vld [vmem:[#allocation2] sm:$0xff]
          %v4693 = vld [vmem:[#allocation2 + $0x8] sm:$0xff]
          %v4694 = vld [vmem:[#allocation2 + $0x10] sm:$0xff]
          %v4695 = vld [vmem:[#allocation2 + $0x18] sm:$0xff]
          %4696 = vst [vmem:[%s537] sm:$0xff] %v4692
          %4697 = vst [vmem:[%s537 + $0x8] sm:$0xff] %v4693
          %4698 = vst [vmem:[%s537 + $0x10] sm:$0xff] %v4694
          %4699 = vst [vmem:[%s537 + $0x18] sm:$0xff] %v4695
        $region84: #{tpu_custom_call.1} parent=47 // pred_fallthru
          _
        %s4700 = sand.u32 %s235, 1
        %s4701 = scalar_lea.sflag [#allocation6], %s4700
        %s4702 = sand.u32 %s235, 1
        %s4703 = smul.addr %s4702, 32
        %s4704 = scalar_lea.vmem [#allocation16], %s4703
        // Predicated region
        $region85: #{tpu_custom_call.1} parent=47 // pred_check
          %p4705 = pneg %p245
        $region86: #{tpu_custom_call.1} parent=47 // pred_check_branch
          %4707 = sbr.rel (%p4705) target = $region88
        $region87: #{tpu_custom_call.1} parent=47 // pred_region
          %s4709 = ssub.s32 512, 512
          %4710 = vsyncadd %s4701, %s4709
          %s4711 = smul.addr %s37, 4
          %s4712 = smul.addr %s4711, 128
          %s4713 = scalar_lea.hbm %s7, %s4712
          %s4714 = sshll.u32 %s4704, 4
          %s4715 = int_to_ptr.vmem [resolvable:$true] %s4714
          %4720 = dma.vmem_to_hbm [thread:$0]  %s4715, 512, %s4713, %s4701, 128, 128, 8
        $region88: #{tpu_custom_call.1} parent=47 // pred_fallthru
          _
      $region48: #{tpu_custom_call.1} parent=5 // pred_fallthru
        _
      %p4721 = scmp.le.s32.totalorder 2, %s28
      // Predicated region
      $region89: #{tpu_custom_call.1} parent=5 // pred_check
        %p4722 = pneg %p4721
      $region90: #{tpu_custom_call.1} parent=5 // pred_check_branch
        %4724 = sbr.rel (%p4722) target = $region92
      $region91: #{tpu_custom_call.1} parent=5 // pred_region
        %s4725 = ssub.s32 %s28, 2
        // Predicated region
        $region93: #{tpu_custom_call.1} parent=91 // pred_check
          %p4726 = pneg %p251
        $region94: #{tpu_custom_call.1} parent=91 // pred_check_branch
          %4728 = sbr.rel (%p4726) target = $region96
        $region95: #{tpu_custom_call.1} parent=91 // pred_region
          %s4729 = sand.u32 %s236, 1
          %s4730 = scalar_lea.sflag [#allocation6], %s4729
          %s4731 = sand.u32 %s236, 1
          %s4732 = smul.addr %s4731, 32
          %s4733 = scalar_lea.vmem [#allocation16], %s4732
          %4734 = dma.done %s4730, 512
        $region96: #{tpu_custom_call.1} parent=91 // pred_fallthru
          _
      $region92: #{tpu_custom_call.1} parent=5 // pred_fallthru
        _
    $region6: #{tpu_custom_call.1} parent=1 // loop_footer
      %s32 = sadd.s32 1, %s28
    $region7: #{tpu_custom_call.1} parent=1 // loop_footer_branch
      %27 = sbr.rel target = $region3
    $region8: #{tpu_custom_call.1} parent=1 // loop_exit
      _
    %4735 = vsyncpa [#allocation5], 1
    %s4736 = scalar_lea.sflag [#allocation5], 1
    %4737 = vsyncpa %s4736, 1
    %4738 = vsyncpa [#allocation8], 1
    %s4739 = scalar_lea.sflag [#allocation8], 1
    %4740 = vsyncpa %s4739, 1
    %4741 = vsyncpa [#allocation11], 1
    %s4742 = scalar_lea.sflag [#allocation11], 1
    %4743 = vsyncpa %s4742, 1
    %4744 = vsyncpa [#allocation14], 1
    %s4745 = scalar_lea.sflag [#allocation14], 1
    %4746 = vsyncpa %s4745, 1
    %4747 = vsyncpa [#allocation6], 1
    %s4748 = scalar_lea.sflag [#allocation6], 1
    %4749 = vsyncpa %s4748, 1

</llo_original>
